<compile_context>
chip_gen: v7x
topology: tpu7x:2x2x1
jax: 0.10.0
libtpu: 0.0.40
codegen_flags: <defaults>
</compile_context>

<pallas_src>
import functools

import jax
import jax.numpy as jnp
from jax.experimental import pallas as pl
from jax.experimental.pallas import tpu as pltpu

SK_EPSILON = 1e-4
SK_ITER_NUM = 6
SK_TAU = 1.0


# ---------------------------------------------------------------- kernel -----

def _mata_fused_kernel(feat_ref, adj_ref,
                       w_init_ref, b_init_ref,
                       w_c1_ref, b_c1_ref, w_c2_ref, b_c2_ref, w_c3_ref, b_c3_ref,
                       a_sym_ref, w_s1_ref, b_s1_ref, w_s2_ref, b_s2_ref,
                       score_ref, sim1_ref, sim2_ref,
                       *, n_nodes, n_iter, tau, eps):
    N = n_nodes
    F = w_init_ref.shape[1]

    feat = feat_ref[0]                       # (2N, Din)  graph1 rows [:N], graph2 rows [N:]
    adj = adj_ref[0]                         # (2N, 2N)   block-diag(Â1, Â2)

    # --- init_layer: Linear + ReLU, both graphs in one MXU pass
    f = jnp.dot(feat, w_init_ref[...], preferred_element_type=jnp.float32) + b_init_ref[...]
    f = jnp.maximum(f, 0.0)                  # (2N, F)

    # --- convolutional_pass: Â @ (relu(x) @ W) + b   (dropout is identity in eval mode)
    def gcn(x, w_ref, b_ref, relu_input):
        if relu_input:
            x = jnp.maximum(x, 0.0)
        xw = jnp.dot(x, w_ref[...], preferred_element_type=jnp.float32)      # (2N, F)
        return jnp.dot(adj, xw, preferred_element_type=jnp.float32) + b_ref[...]

    af1 = gcn(f,   w_c1_ref, b_c1_ref, relu_input=False)
    af2 = gcn(af1, w_c2_ref, b_c2_ref, relu_input=True)
    af3 = gcn(af2, w_c3_ref, b_c3_ref, relu_input=True)

    # --- affinity (x1 A x2^T) + Sinkhorn normalization (a_sym resident once, reused twice)
    a_sym = a_sym_ref[...]                   # (F, F), symmetric

    def affinity_sinkhorn(x_stack):
        x1 = x_stack[:N]                     # (N, F)
        x2 = x_stack[N:]                     # (N, F)
        t = jnp.dot(x1, a_sym, preferred_element_type=jnp.float32)           # (N, F)
        # contract feature axes directly: avoids materializing x2^T on the XLU
        m = jax.lax.dot_general(t, x2, dimension_numbers=(((1,), (1,)), ((), ())),
                                preferred_element_type=jnp.float32)          # (N, N)
        if tau != 1.0:                       # tau == 1.0 -> divide elided at trace time
            m = m * (1.0 / tau)
        # log-domain stabilization: subtract global max before exp
        m_max = jnp.max(jnp.max(m, axis=1, keepdims=True), axis=0, keepdims=True)
        s = jnp.exp(m - m_max)
        for _ in range(n_iter):              # Sinkhorn iterations (row then col normalize)
            s = s * pl.reciprocal(jnp.sum(s, axis=1, keepdims=True) + eps, approx=True)
            s = s * pl.reciprocal(jnp.sum(s, axis=0, keepdims=True) + eps, approx=True)
        return s

    sim1_ref[0] = affinity_sinkhorn(f)
    sim2_ref[0] = affinity_sinkhorn(af3)

    # --- global add-pool (graph 1) / max-pool (graph 2) + scoring MLP, all in VMEM
    layers = (f, af1, af2, af3)
    w_s1 = w_s1_ref[...]                     # (8F, H): rows [0,4F)=add-pool g1, [4F,8F)=max-pool g2
    h = b_s1_ref[...]                        # (1, H)
    for k, lyr in enumerate(layers):
        p = jnp.sum(lyr[:N], axis=0, keepdims=True)                           # (1, F)
        h = h + jnp.dot(p, w_s1[k * F:(k + 1) * F, :], preferred_element_type=jnp.float32)
    for k, lyr in enumerate(layers):
        p = jnp.max(lyr[N:], axis=0, keepdims=True)                           # (1, F)
        h = h + jnp.dot(p, w_s1[(4 + k) * F:(5 + k) * F, :], preferred_element_type=jnp.float32)
    h = jnp.maximum(h, 0.0)
    y = jnp.dot(h, w_s2_ref[...], preferred_element_type=jnp.float32) + b_s2_ref[...]
    score_ref[0] = jax.nn.sigmoid(y)         # (1, 1)


# ------------------------------------------------------------------- glue ----

def normalize_adj(adj):
    """Â = D^-1/2 (A + I) D^-1/2 (GCNConv normalization), batched."""
    N = adj.shape[-1]
    a = adj + jnp.eye(N, dtype=adj.dtype)[None]
    deg = jnp.sum(a, axis=-1)
    dinv = 1.0 / jnp.sqrt(jnp.maximum(deg, 1e-12))
    return a * dinv[:, :, None] * dinv[:, None, :]


def mata_forward(params, x1, cent1, rw1, adj1, x2, cent2, rw2, adj2):
    B, N, _ = x1.shape

    # --- input features: cat([x, degree_emb[cent_pe], rw_pe]) (nonstruc=False branch)
    f1_in = jnp.concatenate([x1, jnp.take(params["degree_emb"], cent1, axis=0), rw1], axis=-1)
    f2_in = jnp.concatenate([x2, jnp.take(params["degree_emb"], cent2, axis=0), rw2], axis=-1)
    feat = jnp.concatenate([f1_in, f2_in], axis=1)                  # (B, 2N, Din)

    # --- block-diagonal normalized adjacency: one GCN matmul covers both graphs
    a1h = normalize_adj(adj1)
    a2h = normalize_adj(adj2)
    z = jnp.zeros_like(a1h)
    adj_blk = jnp.concatenate(
        [jnp.concatenate([a1h, z], axis=2),
         jnp.concatenate([z, a2h], axis=2)], axis=1)                # (B, 2N, 2N)

    a_sym = 0.5 * (params["aff_A"] + params["aff_A"].T)

    Din = feat.shape[-1]
    F = params["w_init"].shape[1]
    H = params["w_s1"].shape[1]

    score, sim1, sim2 = pl.pallas_call(
        functools.partial(_mata_fused_kernel, n_nodes=N,
                          n_iter=SK_ITER_NUM, tau=SK_TAU, eps=SK_EPSILON),
        out_shape=(jax.ShapeDtypeStruct((B, 1, 1), jnp.float32),
                   jax.ShapeDtypeStruct((B, N, N), jnp.float32),
                   jax.ShapeDtypeStruct((B, N, N), jnp.float32)),
        grid=(B,),
        in_specs=[
            pl.BlockSpec((1, 2 * N, Din), lambda i: (i, 0, 0)),     # stacked features
            pl.BlockSpec((1, 2 * N, 2 * N), lambda i: (i, 0, 0)),   # block-diag adjacency
            pl.BlockSpec((Din, F), lambda i: (0, 0)),               # w_init
            pl.BlockSpec((1, F), lambda i: (0, 0)),                 # b_init
            pl.BlockSpec((F, F), lambda i: (0, 0)),                 # w_c1
            pl.BlockSpec((1, F), lambda i: (0, 0)),                 # b_c1
            pl.BlockSpec((F, F), lambda i: (0, 0)),                 # w_c2
            pl.BlockSpec((1, F), lambda i: (0, 0)),                 # b_c2
            pl.BlockSpec((F, F), lambda i: (0, 0)),                 # w_c3
            pl.BlockSpec((1, F), lambda i: (0, 0)),                 # b_c3
            pl.BlockSpec((F, F), lambda i: (0, 0)),                 # a_sym
            pl.BlockSpec((8 * F, H), lambda i: (0, 0)),             # w_s1
            pl.BlockSpec((1, H), lambda i: (0, 0)),                 # b_s1
            pl.BlockSpec((H, 1), lambda i: (0, 0)),                 # w_s2
            pl.BlockSpec((1, 1), lambda i: (0, 0)),                 # b_s2
        ],
        out_specs=(
            pl.BlockSpec((1, 1, 1), lambda i: (i, 0, 0)),
            pl.BlockSpec((1, N, N), lambda i: (i, 0, 0)),
            pl.BlockSpec((1, N, N), lambda i: (i, 0, 0)),
        ),
        compiler_params=pltpu.CompilerParams(dimension_semantics=("parallel",)),
    )(feat, adj_blk,
      params["w_init"], params["b_init"].reshape(1, -1),
      params["w_c1"], params["b_c1"].reshape(1, -1),
      params["w_c2"], params["b_c2"].reshape(1, -1),
      params["w_c3"], params["b_c3"].reshape(1, -1),
      a_sym,
      params["w_s1"], params["b_s1"].reshape(1, -1),
      params["w_s2"], params["b_s2"].reshape(1, -1))

    return score.reshape(B), sim1, sim2


# -------------------------------------------------------------- param init ---

def xavier(key, shape):
    fan_in, fan_out = shape[0], shape[1]
    lim = (6.0 / (fan_in + fan_out)) ** 0.5
    return jax.random.uniform(key, shape, jnp.float32, minval=-lim, maxval=lim)


def init_params(key, num_labels, F, max_degree, hidden=64):
    ks = jax.random.split(key, 10)
    return {
        "degree_emb": xavier(ks[0], (max_degree, max_degree)),
        "w_init": xavier(ks[1], (num_labels, F)), "b_init": jnp.zeros((F,), jnp.float32),
        "w_c1": xavier(ks[2], (F, F)), "b_c1": jnp.zeros((F,), jnp.float32),
        "w_c2": xavier(ks[3], (F, F)), "b_c2": jnp.zeros((F,), jnp.float32),
        "w_c3": xavier(ks[4], (F, F)), "b_c3": jnp.zeros((F,), jnp.float32),
        "aff_A": xavier(ks[5], (F, F)),
        "w_s1": xavier(ks[6], (8 * F, hidden)), "b_s1": jnp.zeros((hidden,), jnp.float32),
        "w_s2": xavier(ks[7], (hidden, 1)), "b_s2": jnp.zeros((1,), jnp.float32),
    }


# -------------------------------------------------------------------- main ---

if __name__ == "__main__":
    B, N = 2, 16            # graph pairs, nodes per graph (dense, no padding)
    X_DIM, MAX_DEG, RW_DIM = 8, 16, 8
    NUM_LABELS = X_DIM + MAX_DEG + RW_DIM   # = 32, input dim of init_layer
    F = 32                                  # filter_1 = filter_2 = filter_3

    key = jax.random.PRNGKey(0)
    kp, kx1, kx2, kc1, kc2, kr1, kr2, ka1, ka2 = jax.random.split(key, 9)

    params = init_params(kp, NUM_LABELS, F, MAX_DEG)

    def make_graph(kx, kc, kr, ka):
        x = jax.random.normal(kx, (B, N, X_DIM), jnp.float32)
        cent = jax.random.randint(kc, (B, N), 0, MAX_DEG, jnp.int32)
        rw = jax.random.normal(kr, (B, N, RW_DIM), jnp.float32)
        a = (jax.random.uniform(ka, (B, N, N)) < 0.3).astype(jnp.float32)
        a = jnp.maximum(a, jnp.transpose(a, (0, 2, 1)))
        a = a * (1.0 - jnp.eye(N, dtype=jnp.float32)[None])
        return x, cent, rw, a

    x1, cent1, rw1, adj1 = make_graph(kx1, kc1, kr1, ka1)
    x2, cent2, rw2, adj2 = make_graph(kx2, kc2, kr2, ka2)

    ged_score, sim_mat1, sim_mat2 = mata_forward(
        params, x1, cent1, rw1, adj1, x2, cent2, rw2, adj2)
    jax.block_until_ready((ged_score, sim_mat1, sim_mat2))

    assert ged_score.shape == (B,)
    assert sim_mat1.shape == (B, N, N) and sim_mat2.shape == (B, N, N)
    assert bool(jnp.all(jnp.isfinite(ged_score)))
    assert bool(jnp.all(jnp.isfinite(sim_mat1))) and bool(jnp.all(jnp.isfinite(sim_mat2)))
    print("KERNEL_OK")
</pallas_src>

<mosaic_0001>
module attributes {stable_mosaic.version = 11 : i64} {
  func.func @_mata_fused_kernel(%arg0: i32, %arg1: memref<1x32x32xf32, #tpu.memory_space<vmem>>, %arg2: memref<1x32x32xf32, #tpu.memory_space<vmem>>, %arg3: memref<32x32xf32, #tpu.memory_space<vmem>>, %arg4: memref<1x32xf32, #tpu.memory_space<vmem>>, %arg5: memref<32x32xf32, #tpu.memory_space<vmem>>, %arg6: memref<1x32xf32, #tpu.memory_space<vmem>>, %arg7: memref<32x32xf32, #tpu.memory_space<vmem>>, %arg8: memref<1x32xf32, #tpu.memory_space<vmem>>, %arg9: memref<32x32xf32, #tpu.memory_space<vmem>>, %arg10: memref<1x32xf32, #tpu.memory_space<vmem>>, %arg11: memref<32x32xf32, #tpu.memory_space<vmem>>, %arg12: memref<256x64xf32, #tpu.memory_space<vmem>>, %arg13: memref<1x64xf32, #tpu.memory_space<vmem>>, %arg14: memref<64x1xf32, #tpu.memory_space<vmem>>, %arg15: memref<1x1xf32, #tpu.memory_space<vmem>>, %arg16: memref<1x1x1xf32, #tpu.memory_space<vmem>>, %arg17: memref<1x16x16xf32, #tpu.memory_space<vmem>>, %arg18: memref<1x16x16xf32, #tpu.memory_space<vmem>>) attributes {dimension_semantics = [#tpu.dimension_semantics<parallel>], iteration_bounds = array<i64: 2>, scalar_prefetch = 0 : i64, scratch_operands = 0 : i64, tpu.core_type = #tpu.core_type<tc>, window_params = [{transform_indices = @transform_0, window_bounds = array<i64: 1, 32, 32>}, {transform_indices = @transform_1, window_bounds = array<i64: 1, 32, 32>}, {pipeline_mode = #tpu.pipeline_mode<synchronous>, transform_indices = @transform_2, window_bounds = array<i64: 32, 32>}, {pipeline_mode = #tpu.pipeline_mode<synchronous>, transform_indices = @transform_3, window_bounds = array<i64: 1, 32>}, {pipeline_mode = #tpu.pipeline_mode<synchronous>, transform_indices = @transform_4, window_bounds = array<i64: 32, 32>}, {pipeline_mode = #tpu.pipeline_mode<synchronous>, transform_indices = @transform_5, window_bounds = array<i64: 1, 32>}, {pipeline_mode = #tpu.pipeline_mode<synchronous>, transform_indices = @transform_6, window_bounds = array<i64: 32, 32>}, {pipeline_mode = #tpu.pipeline_mode<synchronous>, transform_indices = @transform_7, window_bounds = array<i64: 1, 32>}, {pipeline_mode = #tpu.pipeline_mode<synchronous>, transform_indices = @transform_8, window_bounds = array<i64: 32, 32>}, {pipeline_mode = #tpu.pipeline_mode<synchronous>, transform_indices = @transform_9, window_bounds = array<i64: 1, 32>}, {pipeline_mode = #tpu.pipeline_mode<synchronous>, transform_indices = @transform_10, window_bounds = array<i64: 32, 32>}, {pipeline_mode = #tpu.pipeline_mode<synchronous>, transform_indices = @transform_11, window_bounds = array<i64: 256, 64>}, {pipeline_mode = #tpu.pipeline_mode<synchronous>, transform_indices = @transform_12, window_bounds = array<i64: 1, 64>}, {pipeline_mode = #tpu.pipeline_mode<synchronous>, transform_indices = @transform_13, window_bounds = array<i64: 64, 1>}, {pipeline_mode = #tpu.pipeline_mode<synchronous>, transform_indices = @transform_14, window_bounds = array<i64: 1, 1>}, {transform_indices = @transform_15, window_bounds = array<i64: 1, 1, 1>}, {transform_indices = @transform_16, window_bounds = array<i64: 1, 16, 16>}, {transform_indices = @transform_17, window_bounds = array<i64: 1, 16, 16>}]} {
    %c0 = arith.constant 0 : index
    %c0_0 = arith.constant 0 : index
    %c0_1 = arith.constant 0 : index
    %0 = vector.load %arg1[%c0, %c0_0, %c0_1] : memref<1x32x32xf32, #tpu.memory_space<vmem>>, vector<1x32x32xf32>
    %1 = vector.shape_cast %0 : vector<1x32x32xf32> to vector<32x32xf32>
    %c0_2 = arith.constant 0 : index
    %c0_3 = arith.constant 0 : index
    %c0_4 = arith.constant 0 : index
    %2 = vector.load %arg2[%c0_2, %c0_3, %c0_4] : memref<1x32x32xf32, #tpu.memory_space<vmem>>, vector<1x32x32xf32>
    %3 = vector.shape_cast %2 : vector<1x32x32xf32> to vector<32x32xf32>
    %c0_5 = arith.constant 0 : index
    %c0_6 = arith.constant 0 : index
    %4 = vector.load %arg3[%c0_5, %c0_6] : memref<32x32xf32, #tpu.memory_space<vmem>>, vector<32x32xf32>
    %cst = arith.constant dense<0.000000e+00> : vector<32x32xf32>
    %5 = tpu.matmul %1, %4, %cst {dimension_numbers = #tpu.dot_dimension_numbers<[1], [0], [0], [1], [0, 0, 1, 1], [], []>} : vector<32x32xf32>, vector<32x32xf32>, vector<32x32xf32> -> vector<32x32xf32>
    %c0_7 = arith.constant 0 : index
    %c0_8 = arith.constant 0 : index
    %6 = vector.load %arg4[%c0_7, %c0_8] : memref<1x32xf32, #tpu.memory_space<vmem>>, vector<1x32xf32>
    %7 = vector.broadcast %6 : vector<1x32xf32> to vector<32x32xf32>
    %8 = arith.addf %5, %7 : vector<32x32xf32>
    %cst_9 = arith.constant 0.000000e+00 : f32
    %9 = vector.broadcast %cst_9 : f32 to vector<32x32xf32>
    %10 = arith.maximumf %8, %9 : vector<32x32xf32>
    %c0_10 = arith.constant 0 : index
    %c0_11 = arith.constant 0 : index
    %11 = vector.load %arg5[%c0_10, %c0_11] : memref<32x32xf32, #tpu.memory_space<vmem>>, vector<32x32xf32>
    %cst_12 = arith.constant dense<0.000000e+00> : vector<32x32xf32>
    %12 = tpu.matmul %10, %11, %cst_12 {dimension_numbers = #tpu.dot_dimension_numbers<[1], [0], [0], [1], [0, 0, 1, 1], [], []>} : vector<32x32xf32>, vector<32x32xf32>, vector<32x32xf32> -> vector<32x32xf32>
    %cst_13 = arith.constant dense<0.000000e+00> : vector<32x32xf32>
    %13 = tpu.matmul %3, %12, %cst_13 {dimension_numbers = #tpu.dot_dimension_numbers<[1], [0], [0], [1], [0, 0, 1, 1], [], []>} : vector<32x32xf32>, vector<32x32xf32>, vector<32x32xf32> -> vector<32x32xf32>
    %c0_14 = arith.constant 0 : index
    %c0_15 = arith.constant 0 : index
    %14 = vector.load %arg6[%c0_14, %c0_15] : memref<1x32xf32, #tpu.memory_space<vmem>>, vector<1x32xf32>
    %15 = vector.broadcast %14 : vector<1x32xf32> to vector<32x32xf32>
    %16 = arith.addf %13, %15 : vector<32x32xf32>
    %cst_16 = arith.constant 0.000000e+00 : f32
    %17 = vector.broadcast %cst_16 : f32 to vector<32x32xf32>
    %18 = arith.maximumf %16, %17 : vector<32x32xf32>
    %c0_17 = arith.constant 0 : index
    %c0_18 = arith.constant 0 : index
    %19 = vector.load %arg7[%c0_17, %c0_18] : memref<32x32xf32, #tpu.memory_space<vmem>>, vector<32x32xf32>
    %cst_19 = arith.constant dense<0.000000e+00> : vector<32x32xf32>
    %20 = tpu.matmul %18, %19, %cst_19 {dimension_numbers = #tpu.dot_dimension_numbers<[1], [0], [0], [1], [0, 0, 1, 1], [], []>} : vector<32x32xf32>, vector<32x32xf32>, vector<32x32xf32> -> vector<32x32xf32>
    %cst_20 = arith.constant dense<0.000000e+00> : vector<32x32xf32>
    %21 = tpu.matmul %3, %20, %cst_20 {dimension_numbers = #tpu.dot_dimension_numbers<[1], [0], [0], [1], [0, 0, 1, 1], [], []>} : vector<32x32xf32>, vector<32x32xf32>, vector<32x32xf32> -> vector<32x32xf32>
    %c0_21 = arith.constant 0 : index
    %c0_22 = arith.constant 0 : index
    %22 = vector.load %arg8[%c0_21, %c0_22] : memref<1x32xf32, #tpu.memory_space<vmem>>, vector<1x32xf32>
    %23 = vector.broadcast %22 : vector<1x32xf32> to vector<32x32xf32>
    %24 = arith.addf %21, %23 : vector<32x32xf32>
    %cst_23 = arith.constant 0.000000e+00 : f32
    %25 = vector.broadcast %cst_23 : f32 to vector<32x32xf32>
    %26 = arith.maximumf %24, %25 : vector<32x32xf32>
    %c0_24 = arith.constant 0 : index
    %c0_25 = arith.constant 0 : index
    %27 = vector.load %arg9[%c0_24, %c0_25] : memref<32x32xf32, #tpu.memory_space<vmem>>, vector<32x32xf32>
    %cst_26 = arith.constant dense<0.000000e+00> : vector<32x32xf32>
    %28 = tpu.matmul %26, %27, %cst_26 {dimension_numbers = #tpu.dot_dimension_numbers<[1], [0], [0], [1], [0, 0, 1, 1], [], []>} : vector<32x32xf32>, vector<32x32xf32>, vector<32x32xf32> -> vector<32x32xf32>
    %cst_27 = arith.constant dense<0.000000e+00> : vector<32x32xf32>
    %29 = tpu.matmul %3, %28, %cst_27 {dimension_numbers = #tpu.dot_dimension_numbers<[1], [0], [0], [1], [0, 0, 1, 1], [], []>} : vector<32x32xf32>, vector<32x32xf32>, vector<32x32xf32> -> vector<32x32xf32>
    %c0_28 = arith.constant 0 : index
    %c0_29 = arith.constant 0 : index
    %30 = vector.load %arg10[%c0_28, %c0_29] : memref<1x32xf32, #tpu.memory_space<vmem>>, vector<1x32xf32>
    %31 = vector.broadcast %30 : vector<1x32xf32> to vector<32x32xf32>
    %32 = arith.addf %29, %31 : vector<32x32xf32>
    %c0_30 = arith.constant 0 : index
    %c0_31 = arith.constant 0 : index
    %33 = vector.load %arg11[%c0_30, %c0_31] : memref<32x32xf32, #tpu.memory_space<vmem>>, vector<32x32xf32>
    %34 = vector.extract_strided_slice %10 {offsets = [0, 0], sizes = [16, 32], strides = [1, 1]} : vector<32x32xf32> to vector<16x32xf32>
    %35 = vector.extract_strided_slice %10 {offsets = [16, 0], sizes = [16, 32], strides = [1, 1]} : vector<32x32xf32> to vector<16x32xf32>
    %cst_32 = arith.constant dense<0.000000e+00> : vector<16x32xf32>
    %36 = tpu.matmul %34, %33, %cst_32 {dimension_numbers = #tpu.dot_dimension_numbers<[1], [0], [0], [1], [0, 0, 1, 1], [], []>} : vector<16x32xf32>, vector<32x32xf32>, vector<16x32xf32> -> vector<16x32xf32>
    %cst_33 = arith.constant dense<0.000000e+00> : vector<16x16xf32>
    %37 = tpu.matmul %36, %35, %cst_33 {dimension_numbers = #tpu.dot_dimension_numbers<[1], [1], [0], [0], [0, 0, 1, 0], [], []>} : vector<16x32xf32>, vector<16x32xf32>, vector<16x16xf32> -> vector<16x16xf32>
    %cst_34 = arith.constant dense<0xFF800000> : vector<16xf32>
    %38 = vector.multi_reduction <maximumf>, %37, %cst_34 [1] : vector<16x16xf32> to vector<16xf32>
    %39 = vector.shape_cast %38 : vector<16xf32> to vector<16x1xf32>
    %cst_35 = arith.constant dense<0xFF800000> : vector<1xf32>
    %40 = vector.multi_reduction <maximumf>, %39, %cst_35 [0] : vector<16x1xf32> to vector<1xf32>
    %41 = vector.shape_cast %40 : vector<1xf32> to vector<1x1xf32>
    %42 = vector.broadcast %41 : vector<1x1xf32> to vector<16x16xf32>
    %43 = arith.subf %37, %42 : vector<16x16xf32>
    %44 = math.exp %43 : vector<16x16xf32>
    %cst_36 = arith.constant dense<0.000000e+00> : vector<16xf32>
    %45 = vector.multi_reduction <add>, %44, %cst_36 [1] : vector<16x16xf32> to vector<16xf32>
    %46 = vector.shape_cast %45 : vector<16xf32> to vector<16x1xf32>
    %cst_37 = arith.constant 9.99999974E-5 : f32
    %47 = vector.broadcast %cst_37 : f32 to vector<16x1xf32>
    %48 = arith.addf %46, %47 : vector<16x1xf32>
    %49 = tpu.reciprocal %48 {approx = true} : vector<16x1xf32> -> vector<16x1xf32>
    %50 = vector.broadcast %49 : vector<16x1xf32> to vector<16x16xf32>
    %51 = arith.mulf %44, %50 : vector<16x16xf32>
    %cst_38 = arith.constant dense<0.000000e+00> : vector<16xf32>
    %52 = vector.multi_reduction <add>, %51, %cst_38 [0] : vector<16x16xf32> to vector<16xf32>
    %53 = vector.shape_cast %52 : vector<16xf32> to vector<1x16xf32>
    %cst_39 = arith.constant 9.99999974E-5 : f32
    %54 = vector.broadcast %cst_39 : f32 to vector<1x16xf32>
    %55 = arith.addf %53, %54 : vector<1x16xf32>
    %56 = tpu.reciprocal %55 {approx = true} : vector<1x16xf32> -> vector<1x16xf32>
    %57 = vector.broadcast %56 : vector<1x16xf32> to vector<16x16xf32>
    %58 = arith.mulf %51, %57 : vector<16x16xf32>
    %cst_40 = arith.constant dense<0.000000e+00> : vector<16xf32>
    %59 = vector.multi_reduction <add>, %58, %cst_40 [1] : vector<16x16xf32> to vector<16xf32>
    %60 = vector.shape_cast %59 : vector<16xf32> to vector<16x1xf32>
    %cst_41 = arith.constant 9.99999974E-5 : f32
    %61 = vector.broadcast %cst_41 : f32 to vector<16x1xf32>
    %62 = arith.addf %60, %61 : vector<16x1xf32>
    %63 = tpu.reciprocal %62 {approx = true} : vector<16x1xf32> -> vector<16x1xf32>
    %64 = vector.broadcast %63 : vector<16x1xf32> to vector<16x16xf32>
    %65 = arith.mulf %58, %64 : vector<16x16xf32>
    %cst_42 = arith.constant dense<0.000000e+00> : vector<16xf32>
    %66 = vector.multi_reduction <add>, %65, %cst_42 [0] : vector<16x16xf32> to vector<16xf32>
    %67 = vector.shape_cast %66 : vector<16xf32> to vector<1x16xf32>
    %cst_43 = arith.constant 9.99999974E-5 : f32
    %68 = vector.broadcast %cst_43 : f32 to vector<1x16xf32>
    %69 = arith.addf %67, %68 : vector<1x16xf32>
    %70 = tpu.reciprocal %69 {approx = true} : vector<1x16xf32> -> vector<1x16xf32>
    %71 = vector.broadcast %70 : vector<1x16xf32> to vector<16x16xf32>
    %72 = arith.mulf %65, %71 : vector<16x16xf32>
    %cst_44 = arith.constant dense<0.000000e+00> : vector<16xf32>
    %73 = vector.multi_reduction <add>, %72, %cst_44 [1] : vector<16x16xf32> to vector<16xf32>
    %74 = vector.shape_cast %73 : vector<16xf32> to vector<16x1xf32>
    %cst_45 = arith.constant 9.99999974E-5 : f32
    %75 = vector.broadcast %cst_45 : f32 to vector<16x1xf32>
    %76 = arith.addf %74, %75 : vector<16x1xf32>
    %77 = tpu.reciprocal %76 {approx = true} : vector<16x1xf32> -> vector<16x1xf32>
    %78 = vector.broadcast %77 : vector<16x1xf32> to vector<16x16xf32>
    %79 = arith.mulf %72, %78 : vector<16x16xf32>
    %cst_46 = arith.constant dense<0.000000e+00> : vector<16xf32>
    %80 = vector.multi_reduction <add>, %79, %cst_46 [0] : vector<16x16xf32> to vector<16xf32>
    %81 = vector.shape_cast %80 : vector<16xf32> to vector<1x16xf32>
    %cst_47 = arith.constant 9.99999974E-5 : f32
    %82 = vector.broadcast %cst_47 : f32 to vector<1x16xf32>
    %83 = arith.addf %81, %82 : vector<1x16xf32>
    %84 = tpu.reciprocal %83 {approx = true} : vector<1x16xf32> -> vector<1x16xf32>
    %85 = vector.broadcast %84 : vector<1x16xf32> to vector<16x16xf32>
    %86 = arith.mulf %79, %85 : vector<16x16xf32>
    %cst_48 = arith.constant dense<0.000000e+00> : vector<16xf32>
    %87 = vector.multi_reduction <add>, %86, %cst_48 [1] : vector<16x16xf32> to vector<16xf32>
    %88 = vector.shape_cast %87 : vector<16xf32> to vector<16x1xf32>
    %cst_49 = arith.constant 9.99999974E-5 : f32
    %89 = vector.broadcast %cst_49 : f32 to vector<16x1xf32>
    %90 = arith.addf %88, %89 : vector<16x1xf32>
    %91 = tpu.reciprocal %90 {approx = true} : vector<16x1xf32> -> vector<16x1xf32>
    %92 = vector.broadcast %91 : vector<16x1xf32> to vector<16x16xf32>
    %93 = arith.mulf %86, %92 : vector<16x16xf32>
    %cst_50 = arith.constant dense<0.000000e+00> : vector<16xf32>
    %94 = vector.multi_reduction <add>, %93, %cst_50 [0] : vector<16x16xf32> to vector<16xf32>
    %95 = vector.shape_cast %94 : vector<16xf32> to vector<1x16xf32>
    %cst_51 = arith.constant 9.99999974E-5 : f32
    %96 = vector.broadcast %cst_51 : f32 to vector<1x16xf32>
    %97 = arith.addf %95, %96 : vector<1x16xf32>
    %98 = tpu.reciprocal %97 {approx = true} : vector<1x16xf32> -> vector<1x16xf32>
    %99 = vector.broadcast %98 : vector<1x16xf32> to vector<16x16xf32>
    %100 = arith.mulf %93, %99 : vector<16x16xf32>
    %cst_52 = arith.constant dense<0.000000e+00> : vector<16xf32>
    %101 = vector.multi_reduction <add>, %100, %cst_52 [1] : vector<16x16xf32> to vector<16xf32>
    %102 = vector.shape_cast %101 : vector<16xf32> to vector<16x1xf32>
    %cst_53 = arith.constant 9.99999974E-5 : f32
    %103 = vector.broadcast %cst_53 : f32 to vector<16x1xf32>
    %104 = arith.addf %102, %103 : vector<16x1xf32>
    %105 = tpu.reciprocal %104 {approx = true} : vector<16x1xf32> -> vector<16x1xf32>
    %106 = vector.broadcast %105 : vector<16x1xf32> to vector<16x16xf32>
    %107 = arith.mulf %100, %106 : vector<16x16xf32>
    %cst_54 = arith.constant dense<0.000000e+00> : vector<16xf32>
    %108 = vector.multi_reduction <add>, %107, %cst_54 [0] : vector<16x16xf32> to vector<16xf32>
    %109 = vector.shape_cast %108 : vector<16xf32> to vector<1x16xf32>
    %cst_55 = arith.constant 9.99999974E-5 : f32
    %110 = vector.broadcast %cst_55 : f32 to vector<1x16xf32>
    %111 = arith.addf %109, %110 : vector<1x16xf32>
    %112 = tpu.reciprocal %111 {approx = true} : vector<1x16xf32> -> vector<1x16xf32>
    %113 = vector.broadcast %112 : vector<1x16xf32> to vector<16x16xf32>
    %114 = arith.mulf %107, %113 : vector<16x16xf32>
    %cst_56 = arith.constant dense<0.000000e+00> : vector<16xf32>
    %115 = vector.multi_reduction <add>, %114, %cst_56 [1] : vector<16x16xf32> to vector<16xf32>
    %116 = vector.shape_cast %115 : vector<16xf32> to vector<16x1xf32>
    %cst_57 = arith.constant 9.99999974E-5 : f32
    %117 = vector.broadcast %cst_57 : f32 to vector<16x1xf32>
    %118 = arith.addf %116, %117 : vector<16x1xf32>
    %119 = tpu.reciprocal %118 {approx = true} : vector<16x1xf32> -> vector<16x1xf32>
    %120 = vector.broadcast %119 : vector<16x1xf32> to vector<16x16xf32>
    %121 = arith.mulf %114, %120 : vector<16x16xf32>
    %cst_58 = arith.constant dense<0.000000e+00> : vector<16xf32>
    %122 = vector.multi_reduction <add>, %121, %cst_58 [0] : vector<16x16xf32> to vector<16xf32>
    %123 = vector.shape_cast %122 : vector<16xf32> to vector<1x16xf32>
    %cst_59 = arith.constant 9.99999974E-5 : f32
    %124 = vector.broadcast %cst_59 : f32 to vector<1x16xf32>
    %125 = arith.addf %123, %124 : vector<1x16xf32>
    %126 = tpu.reciprocal %125 {approx = true} : vector<1x16xf32> -> vector<1x16xf32>
    %127 = vector.broadcast %126 : vector<1x16xf32> to vector<16x16xf32>
    %128 = arith.mulf %121, %127 : vector<16x16xf32>
    %c0_60 = arith.constant 0 : index
    %c0_61 = arith.constant 0 : index
    %c0_62 = arith.constant 0 : index
    %129 = vector.load %arg17[%c0_60, %c0_61, %c0_62] : memref<1x16x16xf32, #tpu.memory_space<vmem>>, vector<1x16x16xf32>
    %130 = vector.shape_cast %129 : vector<1x16x16xf32> to vector<16x16xf32>
    %131 = vector.shape_cast %128 : vector<16x16xf32> to vector<1x16x16xf32>
    tpu.vector_store %arg17[%c0_60, %c0_61, %c0_62], %131 {strides = array<i32>} : memref<1x16x16xf32, #tpu.memory_space<vmem>>, vector<1x16x16xf32>,
    %132 = vector.extract_strided_slice %32 {offsets = [0, 0], sizes = [16, 32], strides = [1, 1]} : vector<32x32xf32> to vector<16x32xf32>
    %133 = vector.extract_strided_slice %32 {offsets = [16, 0], sizes = [16, 32], strides = [1, 1]} : vector<32x32xf32> to vector<16x32xf32>
    %cst_63 = arith.constant dense<0.000000e+00> : vector<16x32xf32>
    %134 = tpu.matmul %132, %33, %cst_63 {dimension_numbers = #tpu.dot_dimension_numbers<[1], [0], [0], [1], [0, 0, 1, 1], [], []>} : vector<16x32xf32>, vector<32x32xf32>, vector<16x32xf32> -> vector<16x32xf32>
    %cst_64 = arith.constant dense<0.000000e+00> : vector<16x16xf32>
    %135 = tpu.matmul %134, %133, %cst_64 {dimension_numbers = #tpu.dot_dimension_numbers<[1], [1], [0], [0], [0, 0, 1, 0], [], []>} : vector<16x32xf32>, vector<16x32xf32>, vector<16x16xf32> -> vector<16x16xf32>
    %cst_65 = arith.constant dense<0xFF800000> : vector<16xf32>
    %136 = vector.multi_reduction <maximumf>, %135, %cst_65 [1] : vector<16x16xf32> to vector<16xf32>
    %137 = vector.shape_cast %136 : vector<16xf32> to vector<16x1xf32>
    %cst_66 = arith.constant dense<0xFF800000> : vector<1xf32>
    %138 = vector.multi_reduction <maximumf>, %137, %cst_66 [0] : vector<16x1xf32> to vector<1xf32>
    %139 = vector.shape_cast %138 : vector<1xf32> to vector<1x1xf32>
    %140 = vector.broadcast %139 : vector<1x1xf32> to vector<16x16xf32>
    %141 = arith.subf %135, %140 : vector<16x16xf32>
    %142 = math.exp %141 : vector<16x16xf32>
    %cst_67 = arith.constant dense<0.000000e+00> : vector<16xf32>
    %143 = vector.multi_reduction <add>, %142, %cst_67 [1] : vector<16x16xf32> to vector<16xf32>
    %144 = vector.shape_cast %143 : vector<16xf32> to vector<16x1xf32>
    %cst_68 = arith.constant 9.99999974E-5 : f32
    %145 = vector.broadcast %cst_68 : f32 to vector<16x1xf32>
    %146 = arith.addf %144, %145 : vector<16x1xf32>
    %147 = tpu.reciprocal %146 {approx = true} : vector<16x1xf32> -> vector<16x1xf32>
    %148 = vector.broadcast %147 : vector<16x1xf32> to vector<16x16xf32>
    %149 = arith.mulf %142, %148 : vector<16x16xf32>
    %cst_69 = arith.constant dense<0.000000e+00> : vector<16xf32>
    %150 = vector.multi_reduction <add>, %149, %cst_69 [0] : vector<16x16xf32> to vector<16xf32>
    %151 = vector.shape_cast %150 : vector<16xf32> to vector<1x16xf32>
    %cst_70 = arith.constant 9.99999974E-5 : f32
    %152 = vector.broadcast %cst_70 : f32 to vector<1x16xf32>
    %153 = arith.addf %151, %152 : vector<1x16xf32>
    %154 = tpu.reciprocal %153 {approx = true} : vector<1x16xf32> -> vector<1x16xf32>
    %155 = vector.broadcast %154 : vector<1x16xf32> to vector<16x16xf32>
    %156 = arith.mulf %149, %155 : vector<16x16xf32>
    %cst_71 = arith.constant dense<0.000000e+00> : vector<16xf32>
    %157 = vector.multi_reduction <add>, %156, %cst_71 [1] : vector<16x16xf32> to vector<16xf32>
    %158 = vector.shape_cast %157 : vector<16xf32> to vector<16x1xf32>
    %cst_72 = arith.constant 9.99999974E-5 : f32
    %159 = vector.broadcast %cst_72 : f32 to vector<16x1xf32>
    %160 = arith.addf %158, %159 : vector<16x1xf32>
    %161 = tpu.reciprocal %160 {approx = true} : vector<16x1xf32> -> vector<16x1xf32>
    %162 = vector.broadcast %161 : vector<16x1xf32> to vector<16x16xf32>
    %163 = arith.mulf %156, %162 : vector<16x16xf32>
    %cst_73 = arith.constant dense<0.000000e+00> : vector<16xf32>
    %164 = vector.multi_reduction <add>, %163, %cst_73 [0] : vector<16x16xf32> to vector<16xf32>
    %165 = vector.shape_cast %164 : vector<16xf32> to vector<1x16xf32>
    %cst_74 = arith.constant 9.99999974E-5 : f32
    %166 = vector.broadcast %cst_74 : f32 to vector<1x16xf32>
    %167 = arith.addf %165, %166 : vector<1x16xf32>
    %168 = tpu.reciprocal %167 {approx = true} : vector<1x16xf32> -> vector<1x16xf32>
    %169 = vector.broadcast %168 : vector<1x16xf32> to vector<16x16xf32>
    %170 = arith.mulf %163, %169 : vector<16x16xf32>
    %cst_75 = arith.constant dense<0.000000e+00> : vector<16xf32>
    %171 = vector.multi_reduction <add>, %170, %cst_75 [1] : vector<16x16xf32> to vector<16xf32>
    %172 = vector.shape_cast %171 : vector<16xf32> to vector<16x1xf32>
    %cst_76 = arith.constant 9.99999974E-5 : f32
    %173 = vector.broadcast %cst_76 : f32 to vector<16x1xf32>
    %174 = arith.addf %172, %173 : vector<16x1xf32>
    %175 = tpu.reciprocal %174 {approx = true} : vector<16x1xf32> -> vector<16x1xf32>
    %176 = vector.broadcast %175 : vector<16x1xf32> to vector<16x16xf32>
    %177 = arith.mulf %170, %176 : vector<16x16xf32>
    %cst_77 = arith.constant dense<0.000000e+00> : vector<16xf32>
    %178 = vector.multi_reduction <add>, %177, %cst_77 [0] : vector<16x16xf32> to vector<16xf32>
    %179 = vector.shape_cast %178 : vector<16xf32> to vector<1x16xf32>
    %cst_78 = arith.constant 9.99999974E-5 : f32
    %180 = vector.broadcast %cst_78 : f32 to vector<1x16xf32>
    %181 = arith.addf %179, %180 : vector<1x16xf32>
    %182 = tpu.reciprocal %181 {approx = true} : vector<1x16xf32> -> vector<1x16xf32>
    %183 = vector.broadcast %182 : vector<1x16xf32> to vector<16x16xf32>
    %184 = arith.mulf %177, %183 : vector<16x16xf32>
    %cst_79 = arith.constant dense<0.000000e+00> : vector<16xf32>
    %185 = vector.multi_reduction <add>, %184, %cst_79 [1] : vector<16x16xf32> to vector<16xf32>
    %186 = vector.shape_cast %185 : vector<16xf32> to vector<16x1xf32>
    %cst_80 = arith.constant 9.99999974E-5 : f32
    %187 = vector.broadcast %cst_80 : f32 to vector<16x1xf32>
    %188 = arith.addf %186, %187 : vector<16x1xf32>
    %189 = tpu.reciprocal %188 {approx = true} : vector<16x1xf32> -> vector<16x1xf32>
    %190 = vector.broadcast %189 : vector<16x1xf32> to vector<16x16xf32>
    %191 = arith.mulf %184, %190 : vector<16x16xf32>
    %cst_81 = arith.constant dense<0.000000e+00> : vector<16xf32>
    %192 = vector.multi_reduction <add>, %191, %cst_81 [0] : vector<16x16xf32> to vector<16xf32>
    %193 = vector.shape_cast %192 : vector<16xf32> to vector<1x16xf32>
    %cst_82 = arith.constant 9.99999974E-5 : f32
    %194 = vector.broadcast %cst_82 : f32 to vector<1x16xf32>
    %195 = arith.addf %193, %194 : vector<1x16xf32>
    %196 = tpu.reciprocal %195 {approx = true} : vector<1x16xf32> -> vector<1x16xf32>
    %197 = vector.broadcast %196 : vector<1x16xf32> to vector<16x16xf32>
    %198 = arith.mulf %191, %197 : vector<16x16xf32>
    %cst_83 = arith.constant dense<0.000000e+00> : vector<16xf32>
    %199 = vector.multi_reduction <add>, %198, %cst_83 [1] : vector<16x16xf32> to vector<16xf32>
    %200 = vector.shape_cast %199 : vector<16xf32> to vector<16x1xf32>
    %cst_84 = arith.constant 9.99999974E-5 : f32
    %201 = vector.broadcast %cst_84 : f32 to vector<16x1xf32>
    %202 = arith.addf %200, %201 : vector<16x1xf32>
    %203 = tpu.reciprocal %202 {approx = true} : vector<16x1xf32> -> vector<16x1xf32>
    %204 = vector.broadcast %203 : vector<16x1xf32> to vector<16x16xf32>
    %205 = arith.mulf %198, %204 : vector<16x16xf32>
    %cst_85 = arith.constant dense<0.000000e+00> : vector<16xf32>
    %206 = vector.multi_reduction <add>, %205, %cst_85 [0] : vector<16x16xf32> to vector<16xf32>
    %207 = vector.shape_cast %206 : vector<16xf32> to vector<1x16xf32>
    %cst_86 = arith.constant 9.99999974E-5 : f32
    %208 = vector.broadcast %cst_86 : f32 to vector<1x16xf32>
    %209 = arith.addf %207, %208 : vector<1x16xf32>
    %210 = tpu.reciprocal %209 {approx = true} : vector<1x16xf32> -> vector<1x16xf32>
    %211 = vector.broadcast %210 : vector<1x16xf32> to vector<16x16xf32>
    %212 = arith.mulf %205, %211 : vector<16x16xf32>
    %cst_87 = arith.constant dense<0.000000e+00> : vector<16xf32>
    %213 = vector.multi_reduction <add>, %212, %cst_87 [1] : vector<16x16xf32> to vector<16xf32>
    %214 = vector.shape_cast %213 : vector<16xf32> to vector<16x1xf32>
    %cst_88 = arith.constant 9.99999974E-5 : f32
    %215 = vector.broadcast %cst_88 : f32 to vector<16x1xf32>
    %216 = arith.addf %214, %215 : vector<16x1xf32>
    %217 = tpu.reciprocal %216 {approx = true} : vector<16x1xf32> -> vector<16x1xf32>
    %218 = vector.broadcast %217 : vector<16x1xf32> to vector<16x16xf32>
    %219 = arith.mulf %212, %218 : vector<16x16xf32>
    %cst_89 = arith.constant dense<0.000000e+00> : vector<16xf32>
    %220 = vector.multi_reduction <add>, %219, %cst_89 [0] : vector<16x16xf32> to vector<16xf32>
    %221 = vector.shape_cast %220 : vector<16xf32> to vector<1x16xf32>
    %cst_90 = arith.constant 9.99999974E-5 : f32
    %222 = vector.broadcast %cst_90 : f32 to vector<1x16xf32>
    %223 = arith.addf %221, %222 : vector<1x16xf32>
    %224 = tpu.reciprocal %223 {approx = true} : vector<1x16xf32> -> vector<1x16xf32>
    %225 = vector.broadcast %224 : vector<1x16xf32> to vector<16x16xf32>
    %226 = arith.mulf %219, %225 : vector<16x16xf32>
    %c0_91 = arith.constant 0 : index
    %c0_92 = arith.constant 0 : index
    %c0_93 = arith.constant 0 : index
    %227 = vector.load %arg18[%c0_91, %c0_92, %c0_93] : memref<1x16x16xf32, #tpu.memory_space<vmem>>, vector<1x16x16xf32>
    %228 = vector.shape_cast %227 : vector<1x16x16xf32> to vector<16x16xf32>
    %229 = vector.shape_cast %226 : vector<16x16xf32> to vector<1x16x16xf32>
    tpu.vector_store %arg18[%c0_91, %c0_92, %c0_93], %229 {strides = array<i32>} : memref<1x16x16xf32, #tpu.memory_space<vmem>>, vector<1x16x16xf32>,
    %c0_94 = arith.constant 0 : index
    %c0_95 = arith.constant 0 : index
    %230 = vector.load %arg12[%c0_94, %c0_95] : memref<256x64xf32, #tpu.memory_space<vmem>>, vector<256x64xf32>
    %c0_96 = arith.constant 0 : index
    %c0_97 = arith.constant 0 : index
    %231 = vector.load %arg13[%c0_96, %c0_97] : memref<1x64xf32, #tpu.memory_space<vmem>>, vector<1x64xf32>
    %232 = vector.extract_strided_slice %10 {offsets = [0, 0], sizes = [16, 32], strides = [1, 1]} : vector<32x32xf32> to vector<16x32xf32>
    %cst_98 = arith.constant dense<0.000000e+00> : vector<32xf32>
    %233 = vector.multi_reduction <add>, %232, %cst_98 [0] : vector<16x32xf32> to vector<32xf32>
    %234 = vector.shape_cast %233 : vector<32xf32> to vector<1x32xf32>
    %235 = vector.extract_strided_slice %230 {offsets = [0, 0], sizes = [32, 64], strides = [1, 1]} : vector<256x64xf32> to vector<32x64xf32>
    %cst_99 = arith.constant dense<0.000000e+00> : vector<1x64xf32>
    %236 = tpu.matmul %234, %235, %cst_99 {dimension_numbers = #tpu.dot_dimension_numbers<[1], [0], [0], [1], [0, 0, 1, 1], [], []>} : vector<1x32xf32>, vector<32x64xf32>, vector<1x64xf32> -> vector<1x64xf32>
    %237 = arith.addf %231, %236 : vector<1x64xf32>
    %238 = vector.extract_strided_slice %16 {offsets = [0, 0], sizes = [16, 32], strides = [1, 1]} : vector<32x32xf32> to vector<16x32xf32>
    %cst_100 = arith.constant dense<0.000000e+00> : vector<32xf32>
    %239 = vector.multi_reduction <add>, %238, %cst_100 [0] : vector<16x32xf32> to vector<32xf32>
    %240 = vector.shape_cast %239 : vector<32xf32> to vector<1x32xf32>
    %241 = vector.extract_strided_slice %230 {offsets = [32, 0], sizes = [32, 64], strides = [1, 1]} : vector<256x64xf32> to vector<32x64xf32>
    %cst_101 = arith.constant dense<0.000000e+00> : vector<1x64xf32>
    %242 = tpu.matmul %240, %241, %cst_101 {dimension_numbers = #tpu.dot_dimension_numbers<[1], [0], [0], [1], [0, 0, 1, 1], [], []>} : vector<1x32xf32>, vector<32x64xf32>, vector<1x64xf32> -> vector<1x64xf32>
    %243 = arith.addf %237, %242 : vector<1x64xf32>
    %244 = vector.extract_strided_slice %24 {offsets = [0, 0], sizes = [16, 32], strides = [1, 1]} : vector<32x32xf32> to vector<16x32xf32>
    %cst_102 = arith.constant dense<0.000000e+00> : vector<32xf32>
    %245 = vector.multi_reduction <add>, %244, %cst_102 [0] : vector<16x32xf32> to vector<32xf32>
    %246 = vector.shape_cast %245 : vector<32xf32> to vector<1x32xf32>
    %247 = vector.extract_strided_slice %230 {offsets = [64, 0], sizes = [32, 64], strides = [1, 1]} : vector<256x64xf32> to vector<32x64xf32>
    %cst_103 = arith.constant dense<0.000000e+00> : vector<1x64xf32>
    %248 = tpu.matmul %246, %247, %cst_103 {dimension_numbers = #tpu.dot_dimension_numbers<[1], [0], [0], [1], [0, 0, 1, 1], [], []>} : vector<1x32xf32>, vector<32x64xf32>, vector<1x64xf32> -> vector<1x64xf32>
    %249 = arith.addf %243, %248 : vector<1x64xf32>
    %250 = vector.extract_strided_slice %32 {offsets = [0, 0], sizes = [16, 32], strides = [1, 1]} : vector<32x32xf32> to vector<16x32xf32>
    %cst_104 = arith.constant dense<0.000000e+00> : vector<32xf32>
    %251 = vector.multi_reduction <add>, %250, %cst_104 [0] : vector<16x32xf32> to vector<32xf32>
    %252 = vector.shape_cast %251 : vector<32xf32> to vector<1x32xf32>
    %253 = vector.extract_strided_slice %230 {offsets = [96, 0], sizes = [32, 64], strides = [1, 1]} : vector<256x64xf32> to vector<32x64xf32>
    %cst_105 = arith.constant dense<0.000000e+00> : vector<1x64xf32>
    %254 = tpu.matmul %252, %253, %cst_105 {dimension_numbers = #tpu.dot_dimension_numbers<[1], [0], [0], [1], [0, 0, 1, 1], [], []>} : vector<1x32xf32>, vector<32x64xf32>, vector<1x64xf32> -> vector<1x64xf32>
    %255 = arith.addf %249, %254 : vector<1x64xf32>
    %256 = vector.extract_strided_slice %10 {offsets = [16, 0], sizes = [16, 32], strides = [1, 1]} : vector<32x32xf32> to vector<16x32xf32>
    %cst_106 = arith.constant dense<0xFF800000> : vector<32xf32>
    %257 = vector.multi_reduction <maximumf>, %256, %cst_106 [0] : vector<16x32xf32> to vector<32xf32>
    %258 = vector.shape_cast %257 : vector<32xf32> to vector<1x32xf32>
    %259 = vector.extract_strided_slice %230 {offsets = [128, 0], sizes = [32, 64], strides = [1, 1]} : vector<256x64xf32> to vector<32x64xf32>
    %cst_107 = arith.constant dense<0.000000e+00> : vector<1x64xf32>
    %260 = tpu.matmul %258, %259, %cst_107 {dimension_numbers = #tpu.dot_dimension_numbers<[1], [0], [0], [1], [0, 0, 1, 1], [], []>} : vector<1x32xf32>, vector<32x64xf32>, vector<1x64xf32> -> vector<1x64xf32>
    %261 = arith.addf %255, %260 : vector<1x64xf32>
    %262 = vector.extract_strided_slice %16 {offsets = [16, 0], sizes = [16, 32], strides = [1, 1]} : vector<32x32xf32> to vector<16x32xf32>
    %cst_108 = arith.constant dense<0xFF800000> : vector<32xf32>
    %263 = vector.multi_reduction <maximumf>, %262, %cst_108 [0] : vector<16x32xf32> to vector<32xf32>
    %264 = vector.shape_cast %263 : vector<32xf32> to vector<1x32xf32>
    %265 = vector.extract_strided_slice %230 {offsets = [160, 0], sizes = [32, 64], strides = [1, 1]} : vector<256x64xf32> to vector<32x64xf32>
    %cst_109 = arith.constant dense<0.000000e+00> : vector<1x64xf32>
    %266 = tpu.matmul %264, %265, %cst_109 {dimension_numbers = #tpu.dot_dimension_numbers<[1], [0], [0], [1], [0, 0, 1, 1], [], []>} : vector<1x32xf32>, vector<32x64xf32>, vector<1x64xf32> -> vector<1x64xf32>
    %267 = arith.addf %261, %266 : vector<1x64xf32>
    %268 = vector.extract_strided_slice %24 {offsets = [16, 0], sizes = [16, 32], strides = [1, 1]} : vector<32x32xf32> to vector<16x32xf32>
    %cst_110 = arith.constant dense<0xFF800000> : vector<32xf32>
    %269 = vector.multi_reduction <maximumf>, %268, %cst_110 [0] : vector<16x32xf32> to vector<32xf32>
    %270 = vector.shape_cast %269 : vector<32xf32> to vector<1x32xf32>
    %271 = vector.extract_strided_slice %230 {offsets = [192, 0], sizes = [32, 64], strides = [1, 1]} : vector<256x64xf32> to vector<32x64xf32>
    %cst_111 = arith.constant dense<0.000000e+00> : vector<1x64xf32>
    %272 = tpu.matmul %270, %271, %cst_111 {dimension_numbers = #tpu.dot_dimension_numbers<[1], [0], [0], [1], [0, 0, 1, 1], [], []>} : vector<1x32xf32>, vector<32x64xf32>, vector<1x64xf32> -> vector<1x64xf32>
    %273 = arith.addf %267, %272 : vector<1x64xf32>
    %274 = vector.extract_strided_slice %32 {offsets = [16, 0], sizes = [16, 32], strides = [1, 1]} : vector<32x32xf32> to vector<16x32xf32>
    %cst_112 = arith.constant dense<0xFF800000> : vector<32xf32>
    %275 = vector.multi_reduction <maximumf>, %274, %cst_112 [0] : vector<16x32xf32> to vector<32xf32>
    %276 = vector.shape_cast %275 : vector<32xf32> to vector<1x32xf32>
    %277 = vector.extract_strided_slice %230 {offsets = [224, 0], sizes = [32, 64], strides = [1, 1]} : vector<256x64xf32> to vector<32x64xf32>
    %cst_113 = arith.constant dense<0.000000e+00> : vector<1x64xf32>
    %278 = tpu.matmul %276, %277, %cst_113 {dimension_numbers = #tpu.dot_dimension_numbers<[1], [0], [0], [1], [0, 0, 1, 1], [], []>} : vector<1x32xf32>, vector<32x64xf32>, vector<1x64xf32> -> vector<1x64xf32>
    %279 = arith.addf %273, %278 : vector<1x64xf32>
    %cst_114 = arith.constant 0.000000e+00 : f32
    %280 = vector.broadcast %cst_114 : f32 to vector<1x64xf32>
    %281 = arith.maximumf %279, %280 : vector<1x64xf32>
    %c0_115 = arith.constant 0 : index
    %c0_116 = arith.constant 0 : index
    %282 = vector.load %arg14[%c0_115, %c0_116] : memref<64x1xf32, #tpu.memory_space<vmem>>, vector<64x1xf32>
    %cst_117 = arith.constant dense<0.000000e+00> : vector<1x1xf32>
    %283 = tpu.matmul %281, %282, %cst_117 {dimension_numbers = #tpu.dot_dimension_numbers<[1], [0], [0], [1], [0, 0, 1, 1], [], []>} : vector<1x64xf32>, vector<64x1xf32>, vector<1x1xf32> -> vector<1x1xf32>
    %c0_118 = arith.constant 0 : index
    %c0_119 = arith.constant 0 : index
    %284 = vector.load %arg15[%c0_118, %c0_119] : memref<1x1xf32, #tpu.memory_space<vmem>>, vector<1x1xf32>
    %285 = arith.addf %283, %284 : vector<1x1xf32>
    %286 = arith.negf %285 : vector<1x1xf32>
    %287 = math.exp %286 : vector<1x1xf32>
    %cst_120 = arith.constant 1.000000e+00 : f32
    %288 = vector.broadcast %cst_120 : f32 to vector<1x1xf32>
    %289 = arith.addf %288, %287 : vector<1x1xf32>
    %290 = arith.divf %288, %289 : vector<1x1xf32>
    %c0_121 = arith.constant 0 : index
    %c0_122 = arith.constant 0 : index
    %c0_123 = arith.constant 0 : index
    %291 = vector.load %arg16[%c0_121, %c0_122, %c0_123] : memref<1x1x1xf32, #tpu.memory_space<vmem>>, vector<1x1x1xf32>
    %292 = vector.shape_cast %291 : vector<1x1x1xf32> to vector<1x1xf32>
    %293 = vector.shape_cast %290 : vector<1x1xf32> to vector<1x1x1xf32>
    tpu.vector_store %arg16[%c0_121, %c0_122, %c0_123], %293 {strides = array<i32>} : memref<1x1x1xf32, #tpu.memory_space<vmem>>, vector<1x1x1xf32>,
    return
  }
  func.func @transform_0(%arg0: i32) -> (i32, i32, i32) {
    %c0_i32 = arith.constant 0 : i32
    %c0_i32_0 = arith.constant 0 : i32
    %c0_i32_1 = arith.constant 0 : i32
    return %arg0, %c0_i32, %c0_i32_0 : i32, i32, i32
  }
  func.func @transform_1(%arg0: i32) -> (i32, i32, i32) {
    %c0_i32 = arith.constant 0 : i32
    %c0_i32_0 = arith.constant 0 : i32
    %c0_i32_1 = arith.constant 0 : i32
    return %arg0, %c0_i32, %c0_i32_0 : i32, i32, i32
  }
  func.func @transform_2(%arg0: i32) -> (i32, i32) {
    %c0_i32 = arith.constant 0 : i32
    %c0_i32_0 = arith.constant 0 : i32
    %c0_i32_1 = arith.constant 0 : i32
    return %c0_i32, %c0_i32_0 : i32, i32
  }
  func.func @transform_3(%arg0: i32) -> (i32, i32) {
    %c0_i32 = arith.constant 0 : i32
    %c0_i32_0 = arith.constant 0 : i32
    %c0_i32_1 = arith.constant 0 : i32
    return %c0_i32, %c0_i32_0 : i32, i32
  }
  func.func @transform_4(%arg0: i32) -> (i32, i32) {
    %c0_i32 = arith.constant 0 : i32
    %c0_i32_0 = arith.constant 0 : i32
    %c0_i32_1 = arith.constant 0 : i32
    return %c0_i32, %c0_i32_0 : i32, i32
  }
  func.func @transform_5(%arg0: i32) -> (i32, i32) {
    %c0_i32 = arith.constant 0 : i32
    %c0_i32_0 = arith.constant 0 : i32
    %c0_i32_1 = arith.constant 0 : i32
    return %c0_i32, %c0_i32_0 : i32, i32
  }
  func.func @transform_6(%arg0: i32) -> (i32, i32) {
    %c0_i32 = arith.constant 0 : i32
    %c0_i32_0 = arith.constant 0 : i32
    %c0_i32_1 = arith.constant 0 : i32
    return %c0_i32, %c0_i32_0 : i32, i32
  }
  func.func @transform_7(%arg0: i32) -> (i32, i32) {
    %c0_i32 = arith.constant 0 : i32
    %c0_i32_0 = arith.constant 0 : i32
    %c0_i32_1 = arith.constant 0 : i32
    return %c0_i32, %c0_i32_0 : i32, i32
  }
  func.func @transform_8(%arg0: i32) -> (i32, i32) {
    %c0_i32 = arith.constant 0 : i32
    %c0_i32_0 = arith.constant 0 : i32
    %c0_i32_1 = arith.constant 0 : i32
    return %c0_i32, %c0_i32_0 : i32, i32
  }
  func.func @transform_9(%arg0: i32) -> (i32, i32) {
    %c0_i32 = arith.constant 0 : i32
    %c0_i32_0 = arith.constant 0 : i32
    %c0_i32_1 = arith.constant 0 : i32
    return %c0_i32, %c0_i32_0 : i32, i32
  }
  func.func @transform_10(%arg0: i32) -> (i32, i32) {
    %c0_i32 = arith.constant 0 : i32
    %c0_i32_0 = arith.constant 0 : i32
    %c0_i32_1 = arith.constant 0 : i32
    return %c0_i32, %c0_i32_0 : i32, i32
  }
  func.func @transform_11(%arg0: i32) -> (i32, i32) {
    %c0_i32 = arith.constant 0 : i32
    %c0_i32_0 = arith.constant 0 : i32
    %c0_i32_1 = arith.constant 0 : i32
    return %c0_i32, %c0_i32_0 : i32, i32
  }
  func.func @transform_12(%arg0: i32) -> (i32, i32) {
    %c0_i32 = arith.constant 0 : i32
    %c0_i32_0 = arith.constant 0 : i32
    %c0_i32_1 = arith.constant 0 : i32
    return %c0_i32, %c0_i32_0 : i32, i32
  }
  func.func @transform_13(%arg0: i32) -> (i32, i32) {
    %c0_i32 = arith.constant 0 : i32
    %c0_i32_0 = arith.constant 0 : i32
    %c0_i32_1 = arith.constant 0 : i32
    return %c0_i32, %c0_i32_0 : i32, i32
  }
  func.func @transform_14(%arg0: i32) -> (i32, i32) {
    %c0_i32 = arith.constant 0 : i32
    %c0_i32_0 = arith.constant 0 : i32
    %c0_i32_1 = arith.constant 0 : i32
    return %c0_i32, %c0_i32_0 : i32, i32
  }
  func.func @transform_15(%arg0: i32) -> (i32, i32, i32) {
    %c0_i32 = arith.constant 0 : i32
    %c0_i32_0 = arith.constant 0 : i32
    %c0_i32_1 = arith.constant 0 : i32
    return %arg0, %c0_i32, %c0_i32_0 : i32, i32, i32
  }
  func.func @transform_16(%arg0: i32) -> (i32, i32, i32) {
    %c0_i32 = arith.constant 0 : i32
    %c0_i32_0 = arith.constant 0 : i32
    %c0_i32_1 = arith.constant 0 : i32
    return %arg0, %c0_i32, %c0_i32_0 : i32, i32, i32
  }
  func.func @transform_17(%arg0: i32) -> (i32, i32, i32) {
    %c0_i32 = arith.constant 0 : i32
    %c0_i32_0 = arith.constant 0 : i32
    %c0_i32_1 = arith.constant 0 : i32
    return %arg0, %c0_i32, %c0_i32_0 : i32, i32, i32
  }
}

</mosaic_0001>

<llo_original>
// kernel: tpu_custom_call.1
$region0: #{tpu_custom_call.1}
  #allocation0 [shape = 'u32[]', space=smem, size = 0x4, offset = 0x4, fixed_abs, tag = 'smem constant byte address 0x4 - core index']
  #allocation1 [shape = 'u32[144,128]{1,0:T(1,128)}', space=vmem, size = 0x12000, scoped, tag = 'internal scratch']
  #allocation2 [shape = 'f32[1,1]{1,0:T(1,128)S(1)}', space=vmem, size = 0x200, scoped, tag = 'scoped memory for tpu_custom_call.1']
  %s0 = inlined_call_operand.vmem [shape: f32[2,32,32], index: 0, kind: input, shape index: {}]
  %s1 = inlined_call_operand.vmem [shape: f32[2,32,32], index: 1, kind: input, shape index: {}]
  %s2 = inlined_call_operand.vmem [shape: f32[32,32], index: 2, kind: input, shape index: {}]
  %s3 = inlined_call_operand.vmem [shape: f32[1,32], index: 3, kind: input, shape index: {}]
  %s4 = inlined_call_operand.vmem [shape: f32[32,32], index: 4, kind: input, shape index: {}]
  %s5 = inlined_call_operand.vmem [shape: f32[1,32], index: 5, kind: input, shape index: {}]
  %s6 = inlined_call_operand.vmem [shape: f32[32,32], index: 6, kind: input, shape index: {}]
  %s7 = inlined_call_operand.vmem [shape: f32[1,32], index: 7, kind: input, shape index: {}]
  %s8 = inlined_call_operand.vmem [shape: f32[32,32], index: 8, kind: input, shape index: {}]
  %s9 = inlined_call_operand.vmem [shape: f32[1,32], index: 9, kind: input, shape index: {}]
  %s10 = inlined_call_operand.vmem [shape: f32[32,32], index: 10, kind: input, shape index: {}]
  %s11 = inlined_call_operand.vmem [shape: f32[256,64], index: 11, kind: input, shape index: {}]
  %s12 = inlined_call_operand.vmem [shape: f32[1,64], index: 12, kind: input, shape index: {}]
  %s13 = inlined_call_operand.vmem [shape: f32[64,1], index: 13, kind: input, shape index: {}]
  %s14 = inlined_call_operand.<no memory space> [shape: f32[1,1], index: 14, kind: input, shape index: {}]
  %s15 = inlined_call_operand.vmem [shape: f32[2,1,1], index: 15, kind: output, shape index: {0}]
  %s16 = inlined_call_operand.hbm [shape: f32[2,16,16], index: 16, kind: output, shape index: {1}]
  %s17 = inlined_call_operand.hbm [shape: f32[2,16,16], index: 17, kind: output, shape index: {2}]
  %18 = xla_tuple %s15, %s16, %s17
  %s19 = sld [smem:[#allocation0]]
  $region109: #{tpu_custom_call.1} parent=0
    _
  %s21 = ssub.s32 1, %s19
  %s22 = scalar_select 0, %s21, %s19
  %v23 = vstv %s14
  %24 = vst [vmem:[#allocation2] sm:$0x1] %v23
  $region1: #{tpu_custom_call.1} parent=0
    #allocation3 [shape = 'u8[16384]{0}', space=vmem, size = 0x4000, scoped, tag = 'output window, operand 1']
    #allocation4 [shape = 's32[2]{0}', space=sflag, size = 0x8, scoped, tag = 'scoped memory for tpu_custom_call.1']
    #allocation5 [shape = 'u8[16384]{0}', space=vmem, size = 0x4000, scoped, tag = 'output window, operand 2']
    #allocation6 [shape = 's32[2]{0}', space=sflag, size = 0x8, scoped, tag = 'scoped memory for tpu_custom_call.1']
    %25 = vsyncpa [#allocation4], 0
    %s26 = scalar_lea.sflag [#allocation4], 1
    %27 = vsyncpa %s26, 0
    %28 = vsyncpa [#allocation6], 0
    %s29 = scalar_lea.sflag [#allocation6], 1
    %30 = vsyncpa %s29, 0
    loop: start=0, step=1, limit=4
    $region2: #{tpu_custom_call.1} parent=1 // loop_pre_header
      _
    $region3: #{tpu_custom_call.1} parent=1 // loop_header
      %s32 = sphi 0, %s36
      %p33 = scmp.ge.s32.totalorder %s32, 4
      %s42 = sphi 0, %s44
      %s45 = sphi 0, %s42
      %s46 = sphi 0, %s45
      %s62 = sphi 0, %s46
      %s68 = sphi 0, %s70
      %s71 = sphi 0, %s68
      %s72 = sphi 0, %s71
      %s88 = sphi 0, %s72
      %s92 = sphi 0, %s92
      %s94 = sphi 0, %s92
      %s95 = sphi 0, %s94
      %s109 = sphi 0, %s95
      %s113 = sphi 0, %s113
      %s115 = sphi 0, %s113
      %s116 = sphi 0, %s115
      %s130 = sphi 0, %s116
      %s134 = sphi 0, %s134
      %s136 = sphi 0, %s134
      %s137 = sphi 0, %s136
      %s151 = sphi 0, %s137
      %s155 = sphi 0, %s155
      %s157 = sphi 0, %s155
      %s158 = sphi 0, %s157
      %s172 = sphi 0, %s158
      %s176 = sphi 0, %s176
      %s178 = sphi 0, %s176
      %s179 = sphi 0, %s178
      %s193 = sphi 0, %s179
      %s197 = sphi 0, %s197
      %s199 = sphi 0, %s197
      %s200 = sphi 0, %s199
      %s214 = sphi 0, %s200
      %s218 = sphi 0, %s218
      %s220 = sphi 0, %s218
      %s221 = sphi 0, %s220
      %s235 = sphi 0, %s221
      %s239 = sphi 0, %s239
      %s241 = sphi 0, %s239
      %s242 = sphi 0, %s241
      %s256 = sphi 0, %s242
      %s260 = sphi 0, %s260
      %s262 = sphi 0, %s260
      %s263 = sphi 0, %s262
      %s277 = sphi 0, %s263
      %s281 = sphi 0, %s281
      %s283 = sphi 0, %s281
      %s284 = sphi 0, %s283
      %s298 = sphi 0, %s284
      %s302 = sphi 0, %s302
      %s304 = sphi 0, %s302
      %s305 = sphi 0, %s304
      %s319 = sphi 0, %s305
      %s323 = sphi 0, %s323
      %s325 = sphi 0, %s323
      %s326 = sphi 0, %s325
      %s340 = sphi 0, %s326
      %s344 = sphi 0, %s344
      %s346 = sphi 0, %s344
      %s347 = sphi 0, %s346
      %s361 = sphi 0, %s347
      %s367 = sphi 0, %s369
      %s370 = sphi 0, %s367
      %s371 = sphi 0, %s370
      %s387 = sphi 0, %s371
      %s393 = sphi 0, %s395
      %s396 = sphi 0, %s393
      %s397 = sphi 0, %s396
      %s413 = sphi 0, %s397
      %s419 = sphi 0, %s421
      %s422 = sphi 0, %s419
      %s423 = sphi 0, %s422
      %s439 = sphi 0, %s423
    $region4: #{tpu_custom_call.1} parent=1 // loop_header_branch
      %35 = sbr.rel (%p33) target = $region8
    $region5: #{tpu_custom_call.1} parent=1 // loop_body
      %s37 = ssub.s32 %s32, 1
      %s38 = ssub.s32 %s32, 2
      %s39 = sadd.s32 %s32, 1
      %s40 = ssub.s32 %s32, %s39
      %p41 = scmp.eq.s32.totalorder %s40, 0
      %s43 = sadd.s32 %s42, 1
      %s44 = scalar_select %p41, %s42, %s43
      %p47 = pneg %p41
      %p48 = scmp.eq.s32.totalorder %s32, 1
      %p49 = por %p47, %p48
      %p50 = scmp.ne.s32.totalorder %s42, %s45
      %p51 = scmp.eq.s32.totalorder %s32, 0
      %p52 = por %p50, %p51
      %p53 = scmp.ne.s32.totalorder %s42, %s45
      %p54 = scmp.eq.s32.totalorder %s37, 1
      %p55 = por %p53, %p54
      %p56 = scmp.ne.s32.totalorder %s45, %s46
      %p57 = scmp.eq.s32.totalorder %s37, 0
      %p58 = por %p56, %p57
      %p59 = scmp.ne.s32.totalorder %s45, %s46
      %p60 = scmp.eq.s32.totalorder %s38, 1
      %p61 = por %p59, %p60
      %p63 = scmp.ne.s32.totalorder %s46, %s62
      %p64 = scmp.eq.s32.totalorder %s38, 0
      %p65 = por %p63, %p64
      %s66 = ssub.s32 %s32, %s39
      %p67 = scmp.eq.s32.totalorder %s66, 0
      %s69 = sadd.s32 %s68, 1
      %s70 = scalar_select %p67, %s68, %s69
      %p73 = pneg %p67
      %p74 = scmp.eq.s32.totalorder %s32, 1
      %p75 = por %p73, %p74
      %p76 = scmp.ne.s32.totalorder %s68, %s71
      %p77 = scmp.eq.s32.totalorder %s32, 0
      %p78 = por %p76, %p77
      %p79 = scmp.ne.s32.totalorder %s68, %s71
      %p80 = scmp.eq.s32.totalorder %s37, 1
      %p81 = por %p79, %p80
      %p82 = scmp.ne.s32.totalorder %s71, %s72
      %p83 = scmp.eq.s32.totalorder %s37, 0
      %p84 = por %p82, %p83
      %p85 = scmp.ne.s32.totalorder %s71, %s72
      %p86 = scmp.eq.s32.totalorder %s38, 1
      %p87 = por %p85, %p86
      %p89 = scmp.ne.s32.totalorder %s72, %s88
      %p90 = scmp.eq.s32.totalorder %s38, 0
      %p91 = por %p89, %p90
      %s93 = sadd.s32 %s92, 1
      %p96 = scmp.eq.s32.totalorder %s32, 1
      %p97 = scmp.ne.s32.totalorder %s92, %s94
      %p98 = scmp.eq.s32.totalorder %s32, 0
      %p99 = por %p97, %p98
      %p100 = scmp.ne.s32.totalorder %s92, %s94
      %p101 = scmp.eq.s32.totalorder %s37, 1
      %p102 = por %p100, %p101
      %p103 = scmp.ne.s32.totalorder %s94, %s95
      %p104 = scmp.eq.s32.totalorder %s37, 0
      %p105 = por %p103, %p104
      %p106 = scmp.ne.s32.totalorder %s94, %s95
      %p107 = scmp.eq.s32.totalorder %s38, 1
      %p108 = por %p106, %p107
      %p110 = scmp.ne.s32.totalorder %s95, %s109
      %p111 = scmp.eq.s32.totalorder %s38, 0
      %p112 = por %p110, %p111
      %s114 = sadd.s32 %s113, 1
      %p117 = scmp.eq.s32.totalorder %s32, 1
      %p118 = scmp.ne.s32.totalorder %s113, %s115
      %p119 = scmp.eq.s32.totalorder %s32, 0
      %p120 = por %p118, %p119
      %p121 = scmp.ne.s32.totalorder %s113, %s115
      %p122 = scmp.eq.s32.totalorder %s37, 1
      %p123 = por %p121, %p122
      %p124 = scmp.ne.s32.totalorder %s115, %s116
      %p125 = scmp.eq.s32.totalorder %s37, 0
      %p126 = por %p124, %p125
      %p127 = scmp.ne.s32.totalorder %s115, %s116
      %p128 = scmp.eq.s32.totalorder %s38, 1
      %p129 = por %p127, %p128
      %p131 = scmp.ne.s32.totalorder %s116, %s130
      %p132 = scmp.eq.s32.totalorder %s38, 0
      %p133 = por %p131, %p132
      %s135 = sadd.s32 %s134, 1
      %p138 = scmp.eq.s32.totalorder %s32, 1
      %p139 = scmp.ne.s32.totalorder %s134, %s136
      %p140 = scmp.eq.s32.totalorder %s32, 0
      %p141 = por %p139, %p140
      %p142 = scmp.ne.s32.totalorder %s134, %s136
      %p143 = scmp.eq.s32.totalorder %s37, 1
      %p144 = por %p142, %p143
      %p145 = scmp.ne.s32.totalorder %s136, %s137
      %p146 = scmp.eq.s32.totalorder %s37, 0
      %p147 = por %p145, %p146
      %p148 = scmp.ne.s32.totalorder %s136, %s137
      %p149 = scmp.eq.s32.totalorder %s38, 1
      %p150 = por %p148, %p149
      %p152 = scmp.ne.s32.totalorder %s137, %s151
      %p153 = scmp.eq.s32.totalorder %s38, 0
      %p154 = por %p152, %p153
      %s156 = sadd.s32 %s155, 1
      %p159 = scmp.eq.s32.totalorder %s32, 1
      %p160 = scmp.ne.s32.totalorder %s155, %s157
      %p161 = scmp.eq.s32.totalorder %s32, 0
      %p162 = por %p160, %p161
      %p163 = scmp.ne.s32.totalorder %s155, %s157
      %p164 = scmp.eq.s32.totalorder %s37, 1
      %p165 = por %p163, %p164
      %p166 = scmp.ne.s32.totalorder %s157, %s158
      %p167 = scmp.eq.s32.totalorder %s37, 0
      %p168 = por %p166, %p167
      %p169 = scmp.ne.s32.totalorder %s157, %s158
      %p170 = scmp.eq.s32.totalorder %s38, 1
      %p171 = por %p169, %p170
      %p173 = scmp.ne.s32.totalorder %s158, %s172
      %p174 = scmp.eq.s32.totalorder %s38, 0
      %p175 = por %p173, %p174
      %s177 = sadd.s32 %s176, 1
      %p180 = scmp.eq.s32.totalorder %s32, 1
      %p181 = scmp.ne.s32.totalorder %s176, %s178
      %p182 = scmp.eq.s32.totalorder %s32, 0
      %p183 = por %p181, %p182
      %p184 = scmp.ne.s32.totalorder %s176, %s178
      %p185 = scmp.eq.s32.totalorder %s37, 1
      %p186 = por %p184, %p185
      %p187 = scmp.ne.s32.totalorder %s178, %s179
      %p188 = scmp.eq.s32.totalorder %s37, 0
      %p189 = por %p187, %p188
      %p190 = scmp.ne.s32.totalorder %s178, %s179
      %p191 = scmp.eq.s32.totalorder %s38, 1
      %p192 = por %p190, %p191
      %p194 = scmp.ne.s32.totalorder %s179, %s193
      %p195 = scmp.eq.s32.totalorder %s38, 0
      %p196 = por %p194, %p195
      %s198 = sadd.s32 %s197, 1
      %p201 = scmp.eq.s32.totalorder %s32, 1
      %p202 = scmp.ne.s32.totalorder %s197, %s199
      %p203 = scmp.eq.s32.totalorder %s32, 0
      %p204 = por %p202, %p203
      %p205 = scmp.ne.s32.totalorder %s197, %s199
      %p206 = scmp.eq.s32.totalorder %s37, 1
      %p207 = por %p205, %p206
      %p208 = scmp.ne.s32.totalorder %s199, %s200
      %p209 = scmp.eq.s32.totalorder %s37, 0
      %p210 = por %p208, %p209
      %p211 = scmp.ne.s32.totalorder %s199, %s200
      %p212 = scmp.eq.s32.totalorder %s38, 1
      %p213 = por %p211, %p212
      %p215 = scmp.ne.s32.totalorder %s200, %s214
      %p216 = scmp.eq.s32.totalorder %s38, 0
      %p217 = por %p215, %p216
      %s219 = sadd.s32 %s218, 1
      %p222 = scmp.eq.s32.totalorder %s32, 1
      %p223 = scmp.ne.s32.totalorder %s218, %s220
      %p224 = scmp.eq.s32.totalorder %s32, 0
      %p225 = por %p223, %p224
      %p226 = scmp.ne.s32.totalorder %s218, %s220
      %p227 = scmp.eq.s32.totalorder %s37, 1
      %p228 = por %p226, %p227
      %p229 = scmp.ne.s32.totalorder %s220, %s221
      %p230 = scmp.eq.s32.totalorder %s37, 0
      %p231 = por %p229, %p230
      %p232 = scmp.ne.s32.totalorder %s220, %s221
      %p233 = scmp.eq.s32.totalorder %s38, 1
      %p234 = por %p232, %p233
      %p236 = scmp.ne.s32.totalorder %s221, %s235
      %p237 = scmp.eq.s32.totalorder %s38, 0
      %p238 = por %p236, %p237
      %s240 = sadd.s32 %s239, 1
      %p243 = scmp.eq.s32.totalorder %s32, 1
      %p244 = scmp.ne.s32.totalorder %s239, %s241
      %p245 = scmp.eq.s32.totalorder %s32, 0
      %p246 = por %p244, %p245
      %p247 = scmp.ne.s32.totalorder %s239, %s241
      %p248 = scmp.eq.s32.totalorder %s37, 1
      %p249 = por %p247, %p248
      %p250 = scmp.ne.s32.totalorder %s241, %s242
      %p251 = scmp.eq.s32.totalorder %s37, 0
      %p252 = por %p250, %p251
      %p253 = scmp.ne.s32.totalorder %s241, %s242
      %p254 = scmp.eq.s32.totalorder %s38, 1
      %p255 = por %p253, %p254
      %p257 = scmp.ne.s32.totalorder %s242, %s256
      %p258 = scmp.eq.s32.totalorder %s38, 0
      %p259 = por %p257, %p258
      %s261 = sadd.s32 %s260, 1
      %p264 = scmp.eq.s32.totalorder %s32, 1
      %p265 = scmp.ne.s32.totalorder %s260, %s262
      %p266 = scmp.eq.s32.totalorder %s32, 0
      %p267 = por %p265, %p266
      %p268 = scmp.ne.s32.totalorder %s260, %s262
      %p269 = scmp.eq.s32.totalorder %s37, 1
      %p270 = por %p268, %p269
      %p271 = scmp.ne.s32.totalorder %s262, %s263
      %p272 = scmp.eq.s32.totalorder %s37, 0
      %p273 = por %p271, %p272
      %p274 = scmp.ne.s32.totalorder %s262, %s263
      %p275 = scmp.eq.s32.totalorder %s38, 1
      %p276 = por %p274, %p275
      %p278 = scmp.ne.s32.totalorder %s263, %s277
      %p279 = scmp.eq.s32.totalorder %s38, 0
      %p280 = por %p278, %p279
      %s282 = sadd.s32 %s281, 1
      %p285 = scmp.eq.s32.totalorder %s32, 1
      %p286 = scmp.ne.s32.totalorder %s281, %s283
      %p287 = scmp.eq.s32.totalorder %s32, 0
      %p288 = por %p286, %p287
      %p289 = scmp.ne.s32.totalorder %s281, %s283
      %p290 = scmp.eq.s32.totalorder %s37, 1
      %p291 = por %p289, %p290
      %p292 = scmp.ne.s32.totalorder %s283, %s284
      %p293 = scmp.eq.s32.totalorder %s37, 0
      %p294 = por %p292, %p293
      %p295 = scmp.ne.s32.totalorder %s283, %s284
      %p296 = scmp.eq.s32.totalorder %s38, 1
      %p297 = por %p295, %p296
      %p299 = scmp.ne.s32.totalorder %s284, %s298
      %p300 = scmp.eq.s32.totalorder %s38, 0
      %p301 = por %p299, %p300
      %s303 = sadd.s32 %s302, 1
      %p306 = scmp.eq.s32.totalorder %s32, 1
      %p307 = scmp.ne.s32.totalorder %s302, %s304
      %p308 = scmp.eq.s32.totalorder %s32, 0
      %p309 = por %p307, %p308
      %p310 = scmp.ne.s32.totalorder %s302, %s304
      %p311 = scmp.eq.s32.totalorder %s37, 1
      %p312 = por %p310, %p311
      %p313 = scmp.ne.s32.totalorder %s304, %s305
      %p314 = scmp.eq.s32.totalorder %s37, 0
      %p315 = por %p313, %p314
      %p316 = scmp.ne.s32.totalorder %s304, %s305
      %p317 = scmp.eq.s32.totalorder %s38, 1
      %p318 = por %p316, %p317
      %p320 = scmp.ne.s32.totalorder %s305, %s319
      %p321 = scmp.eq.s32.totalorder %s38, 0
      %p322 = por %p320, %p321
      %s324 = sadd.s32 %s323, 1
      %p327 = scmp.eq.s32.totalorder %s32, 1
      %p328 = scmp.ne.s32.totalorder %s323, %s325
      %p329 = scmp.eq.s32.totalorder %s32, 0
      %p330 = por %p328, %p329
      %p331 = scmp.ne.s32.totalorder %s323, %s325
      %p332 = scmp.eq.s32.totalorder %s37, 1
      %p333 = por %p331, %p332
      %p334 = scmp.ne.s32.totalorder %s325, %s326
      %p335 = scmp.eq.s32.totalorder %s37, 0
      %p336 = por %p334, %p335
      %p337 = scmp.ne.s32.totalorder %s325, %s326
      %p338 = scmp.eq.s32.totalorder %s38, 1
      %p339 = por %p337, %p338
      %p341 = scmp.ne.s32.totalorder %s326, %s340
      %p342 = scmp.eq.s32.totalorder %s38, 0
      %p343 = por %p341, %p342
      %s345 = sadd.s32 %s344, 1
      %p348 = scmp.eq.s32.totalorder %s32, 1
      %p349 = scmp.ne.s32.totalorder %s344, %s346
      %p350 = scmp.eq.s32.totalorder %s32, 0
      %p351 = por %p349, %p350
      %p352 = scmp.ne.s32.totalorder %s344, %s346
      %p353 = scmp.eq.s32.totalorder %s37, 1
      %p354 = por %p352, %p353
      %p355 = scmp.ne.s32.totalorder %s346, %s347
      %p356 = scmp.eq.s32.totalorder %s37, 0
      %p357 = por %p355, %p356
      %p358 = scmp.ne.s32.totalorder %s346, %s347
      %p359 = scmp.eq.s32.totalorder %s38, 1
      %p360 = por %p358, %p359
      %p362 = scmp.ne.s32.totalorder %s347, %s361
      %p363 = scmp.eq.s32.totalorder %s38, 0
      %p364 = por %p362, %p363
      %s365 = ssub.s32 %s32, %s39
      %p366 = scmp.eq.s32.totalorder %s365, 0
      %s368 = sadd.s32 %s367, 1
      %s369 = scalar_select %p366, %s367, %s368
      %p372 = pneg %p366
      %p373 = scmp.eq.s32.totalorder %s32, 1
      %p374 = por %p372, %p373
      %p375 = scmp.ne.s32.totalorder %s367, %s370
      %p376 = scmp.eq.s32.totalorder %s32, 0
      %p377 = por %p375, %p376
      %p378 = scmp.ne.s32.totalorder %s367, %s370
      %p379 = scmp.eq.s32.totalorder %s37, 1
      %p380 = por %p378, %p379
      %p381 = scmp.ne.s32.totalorder %s370, %s371
      %p382 = scmp.eq.s32.totalorder %s37, 0
      %p383 = por %p381, %p382
      %p384 = scmp.ne.s32.totalorder %s370, %s371
      %p385 = scmp.eq.s32.totalorder %s38, 1
      %p386 = por %p384, %p385
      %p388 = scmp.ne.s32.totalorder %s371, %s387
      %p389 = scmp.eq.s32.totalorder %s38, 0
      %p390 = por %p388, %p389
      %s391 = ssub.s32 %s32, %s39
      %p392 = scmp.eq.s32.totalorder %s391, 0
      %s394 = sadd.s32 %s393, 1
      %s395 = scalar_select %p392, %s393, %s394
      %p398 = pneg %p392
      %p399 = scmp.eq.s32.totalorder %s32, 1
      %p400 = por %p398, %p399
      %p401 = scmp.ne.s32.totalorder %s393, %s396
      %p402 = scmp.eq.s32.totalorder %s32, 0
      %p403 = por %p401, %p402
      %p404 = scmp.ne.s32.totalorder %s393, %s396
      %p405 = scmp.eq.s32.totalorder %s37, 1
      %p406 = por %p404, %p405
      %p407 = scmp.ne.s32.totalorder %s396, %s397
      %p408 = scmp.eq.s32.totalorder %s37, 0
      %p409 = por %p407, %p408
      %p410 = scmp.ne.s32.totalorder %s396, %s397
      %p411 = scmp.eq.s32.totalorder %s38, 1
      %p412 = por %p410, %p411
      %p414 = scmp.ne.s32.totalorder %s397, %s413
      %p415 = scmp.eq.s32.totalorder %s38, 0
      %p416 = por %p414, %p415
      %s417 = ssub.s32 %s32, %s39
      %p418 = scmp.eq.s32.totalorder %s417, 0
      %s420 = sadd.s32 %s419, 1
      %s421 = scalar_select %p418, %s419, %s420
      %p424 = pneg %p418
      %p425 = scmp.eq.s32.totalorder %s32, 1
      %p426 = por %p424, %p425
      %p427 = scmp.ne.s32.totalorder %s419, %s422
      %p428 = scmp.eq.s32.totalorder %s32, 0
      %p429 = por %p427, %p428
      %p430 = scmp.ne.s32.totalorder %s419, %s422
      %p431 = scmp.eq.s32.totalorder %s37, 1
      %p432 = por %p430, %p431
      %p433 = scmp.ne.s32.totalorder %s422, %s423
      %p434 = scmp.eq.s32.totalorder %s37, 0
      %p435 = por %p433, %p434
      %p436 = scmp.ne.s32.totalorder %s422, %s423
      %p437 = scmp.eq.s32.totalorder %s38, 1
      %p438 = por %p436, %p437
      %p440 = scmp.ne.s32.totalorder %s423, %s439
      %p441 = scmp.eq.s32.totalorder %s38, 0
      %p442 = por %p440, %p441
      %p443 = scmp.le.s32.totalorder 1, %s32
      %p444 = scmp.lt.s32.totalorder %s32, 3
      %p445 = pnand %p443, %p444
      %p446 = pneg %p445
      // Predicated region
      $region9: #{tpu_custom_call.1} parent=5 // pred_check
        _
      $region10: #{tpu_custom_call.1} parent=5 // pred_check_branch
        %448 = sbr.rel (%p445) target = $region12
      $region11: #{tpu_custom_call.1} parent=5 // pred_region
        %s449 = ssub.s32 %s32, 1
        // Predicated region
        $region13: #{tpu_custom_call.1} parent=11 // pred_check
          %p450 = pneg %p105
        $region14: #{tpu_custom_call.1} parent=11 // pred_check_branch
          %452 = sbr.rel (%p450) target = $region16
        $region15: #{tpu_custom_call.1} parent=11 // pred_region
          _
        $region16: #{tpu_custom_call.1} parent=11 // pred_fallthru
          _
        // Predicated region
        $region17: #{tpu_custom_call.1} parent=11 // pred_check
          %p453 = pneg %p126
        $region18: #{tpu_custom_call.1} parent=11 // pred_check_branch
          %455 = sbr.rel (%p453) target = $region20
        $region19: #{tpu_custom_call.1} parent=11 // pred_region
          _
        $region20: #{tpu_custom_call.1} parent=11 // pred_fallthru
          _
        // Predicated region
        $region21: #{tpu_custom_call.1} parent=11 // pred_check
          %p456 = pneg %p147
        $region22: #{tpu_custom_call.1} parent=11 // pred_check_branch
          %458 = sbr.rel (%p456) target = $region24
        $region23: #{tpu_custom_call.1} parent=11 // pred_region
          _
        $region24: #{tpu_custom_call.1} parent=11 // pred_fallthru
          _
        // Predicated region
        $region25: #{tpu_custom_call.1} parent=11 // pred_check
          %p459 = pneg %p168
        $region26: #{tpu_custom_call.1} parent=11 // pred_check_branch
          %461 = sbr.rel (%p459) target = $region28
        $region27: #{tpu_custom_call.1} parent=11 // pred_region
          _
        $region28: #{tpu_custom_call.1} parent=11 // pred_fallthru
          _
        // Predicated region
        $region29: #{tpu_custom_call.1} parent=11 // pred_check
          %p462 = pneg %p189
        $region30: #{tpu_custom_call.1} parent=11 // pred_check_branch
          %464 = sbr.rel (%p462) target = $region32
        $region31: #{tpu_custom_call.1} parent=11 // pred_region
          _
        $region32: #{tpu_custom_call.1} parent=11 // pred_fallthru
          _
        // Predicated region
        $region33: #{tpu_custom_call.1} parent=11 // pred_check
          %p465 = pneg %p210
        $region34: #{tpu_custom_call.1} parent=11 // pred_check_branch
          %467 = sbr.rel (%p465) target = $region36
        $region35: #{tpu_custom_call.1} parent=11 // pred_region
          _
        $region36: #{tpu_custom_call.1} parent=11 // pred_fallthru
          _
        // Predicated region
        $region37: #{tpu_custom_call.1} parent=11 // pred_check
          %p468 = pneg %p231
        $region38: #{tpu_custom_call.1} parent=11 // pred_check_branch
          %470 = sbr.rel (%p468) target = $region40
        $region39: #{tpu_custom_call.1} parent=11 // pred_region
          _
        $region40: #{tpu_custom_call.1} parent=11 // pred_fallthru
          _
        // Predicated region
        $region41: #{tpu_custom_call.1} parent=11 // pred_check
          %p471 = pneg %p252
        $region42: #{tpu_custom_call.1} parent=11 // pred_check_branch
          %473 = sbr.rel (%p471) target = $region44
        $region43: #{tpu_custom_call.1} parent=11 // pred_region
          _
        $region44: #{tpu_custom_call.1} parent=11 // pred_fallthru
          _
        // Predicated region
        $region45: #{tpu_custom_call.1} parent=11 // pred_check
          %p474 = pneg %p273
        $region46: #{tpu_custom_call.1} parent=11 // pred_check_branch
          %476 = sbr.rel (%p474) target = $region48
        $region47: #{tpu_custom_call.1} parent=11 // pred_region
          _
        $region48: #{tpu_custom_call.1} parent=11 // pred_fallthru
          _
        // Predicated region
        $region49: #{tpu_custom_call.1} parent=11 // pred_check
          %p477 = pneg %p294
        $region50: #{tpu_custom_call.1} parent=11 // pred_check_branch
          %479 = sbr.rel (%p477) target = $region52
        $region51: #{tpu_custom_call.1} parent=11 // pred_region
          _
        $region52: #{tpu_custom_call.1} parent=11 // pred_fallthru
          _
        // Predicated region
        $region53: #{tpu_custom_call.1} parent=11 // pred_check
          %p480 = pneg %p315
        $region54: #{tpu_custom_call.1} parent=11 // pred_check_branch
          %482 = sbr.rel (%p480) target = $region56
        $region55: #{tpu_custom_call.1} parent=11 // pred_region
          _
        $region56: #{tpu_custom_call.1} parent=11 // pred_fallthru
          _
        // Predicated region
        $region57: #{tpu_custom_call.1} parent=11 // pred_check
          %p483 = pneg %p336
        $region58: #{tpu_custom_call.1} parent=11 // pred_check_branch
          %485 = sbr.rel (%p483) target = $region60
        $region59: #{tpu_custom_call.1} parent=11 // pred_region
          _
        $region60: #{tpu_custom_call.1} parent=11 // pred_fallthru
          _
        // Predicated region
        $region61: #{tpu_custom_call.1} parent=11 // pred_check
          %p486 = pneg %p357
        $region62: #{tpu_custom_call.1} parent=11 // pred_check_branch
          %488 = sbr.rel (%p486) target = $region64
        $region63: #{tpu_custom_call.1} parent=11 // pred_region
          _
        $region64: #{tpu_custom_call.1} parent=11 // pred_fallthru
          _
      $region12: #{tpu_custom_call.1} parent=5 // pred_fallthru
        _
      %p489 = scmp.lt.s32.totalorder %s32, 2
      // Predicated region
      $region65: #{tpu_custom_call.1} parent=5 // pred_check
        %p490 = pneg %p489
      $region66: #{tpu_custom_call.1} parent=5 // pred_check_branch
        %492 = sbr.rel (%p490) target = $region68
      $region67: #{tpu_custom_call.1} parent=5 // pred_region
        // Predicated region
        $region69: #{tpu_custom_call.1} parent=67 // pred_check
          %p493 = pneg %p52
        $region70: #{tpu_custom_call.1} parent=67 // pred_check_branch
          %495 = sbr.rel (%p493) target = $region72
        $region71: #{tpu_custom_call.1} parent=67 // pred_region
          %p496 = scmp.lt.s32.totalorder %s32, 1
          %s497 = scalar_select %p496, %s32, 1
          %s498 = smul.addr %s497, 4
          %s499 = smul.addr %s498, 8
          %s500 = scalar_lea.vmem %s0, %s499
        $region72: #{tpu_custom_call.1} parent=67 // pred_fallthru
          _
        // Predicated region
        $region73: #{tpu_custom_call.1} parent=67 // pred_check
          %p501 = pneg %p78
        $region74: #{tpu_custom_call.1} parent=67 // pred_check_branch
          %503 = sbr.rel (%p501) target = $region76
        $region75: #{tpu_custom_call.1} parent=67 // pred_region
          %p504 = scmp.lt.s32.totalorder %s32, 1
          %s505 = scalar_select %p504, %s32, 1
          %s506 = smul.addr %s505, 4
          %s507 = smul.addr %s506, 8
          %s508 = scalar_lea.vmem %s1, %s507
        $region76: #{tpu_custom_call.1} parent=67 // pred_fallthru
          _
      $region68: #{tpu_custom_call.1} parent=5 // pred_fallthru
        _
      %p509 = scmp.le.s32.totalorder 1, %s32
      %p510 = scmp.lt.s32.totalorder %s32, 3
      %p511 = pnand %p509, %p510
      %p512 = pneg %p511
      // Predicated region
      $region77: #{tpu_custom_call.1} parent=5 // pred_check
        _
      $region78: #{tpu_custom_call.1} parent=5 // pred_check_branch
        %514 = sbr.rel (%p511) target = $region80
      $region79: #{tpu_custom_call.1} parent=5 // pred_region
        %s515 = ssub.s32 %s32, 1
        %p516 = scmp.lt.s32.totalorder %s37, 1
        %s517 = scalar_select %p516, %s37, 1
        %s518 = smul.addr %s517, 4
        %s519 = smul.addr %s518, 8
        %s520 = scalar_lea.vmem %s0, %s519
        %p521 = pneg %p58
        %p522 = pneg %p55
        %p523 = scmp.lt.s32.totalorder %s37, 1
        %s524 = scalar_select %p523, %s37, 1
        %s525 = smul.addr %s524, 4
        %s526 = smul.addr %s525, 8
        %s527 = scalar_lea.vmem %s1, %s526
        %p528 = pneg %p84
        %p529 = pneg %p81
        %p530 = pneg %p105
        %p531 = pneg %p102
        %p532 = pneg %p126
        %p533 = pneg %p123
        %p534 = pneg %p147
        %p535 = pneg %p144
        %p536 = pneg %p168
        %p537 = pneg %p165
        %p538 = pneg %p189
        %p539 = pneg %p186
        %p540 = pneg %p210
        %p541 = pneg %p207
        %p542 = pneg %p231
        %p543 = pneg %p228
        %p544 = pneg %p252
        %p545 = pneg %p249
        %p546 = pneg %p273
        %p547 = pneg %p270
        %p548 = pneg %p294
        %p549 = pneg %p291
        %p550 = pneg %p315
        %p551 = pneg %p312
        %p552 = pneg %p336
        %p553 = pneg %p333
        %p554 = pneg %p357
        %p555 = pneg %p354
        %p556 = pneg %p383
        %p557 = pneg %p380
        %p558 = scmp.lt.s32.totalorder %s37, 1
        %s559 = scalar_select %p558, %s37, 1
        %s560 = scalar_lea.vmem %s15, %s559
        %p561 = pneg %p409
        %p562 = pneg %p406
        %s563 = sand.u32 %s396, 1
        %s564 = scalar_lea.sflag [#allocation4], %s563
        %s565 = sand.u32 %s396, 1
        %s566 = smul.addr %s565, 16
        %s567 = scalar_lea.vmem [#allocation3], %s566
        %p568 = pneg %p435
        %p569 = pneg %p432
        %s570 = sand.u32 %s422, 1
        %s571 = scalar_lea.sflag [#allocation6], %s570
        %s572 = sand.u32 %s422, 1
        %s573 = smul.addr %s572, 16
        %s574 = scalar_lea.vmem [#allocation5], %s573
        %p575 = scmp.lt.s32.totalorder %s37, 1
        %s576 = scalar_select %p575, %s37, 1
        %s577 = smul.addr %s576, 4
        %s578 = smul.addr %s577, 8
        %s579 = scalar_lea.vmem %s0, %s578
        %p580 = scmp.lt.s32.totalorder %s37, 1
        %s581 = scalar_select %p580, %s37, 1
        %s582 = smul.addr %s581, 4
        %s583 = smul.addr %s582, 8
        %s584 = scalar_lea.vmem %s1, %s583
        %p585 = scmp.lt.s32.totalorder %s37, 1
        %s586 = scalar_select %p585, %s37, 1
        %s587 = scalar_lea.vmem %s15, %s586
        %v588 = vld [vmem:[%s579] sm:$0xff]
        %v589 = vld [vmem:[%s579 + $0x8] sm:$0xff]
        %v590 = vld [vmem:[%s579 + $0x10] sm:$0xff]
        %v591 = vld [vmem:[%s579 + $0x18] sm:$0xff]
        %v592 = vld [vmem:[%s584] sm:$0xff]
        %v593 = vld [vmem:[%s584 + $0x8] sm:$0xff]
        %v594 = vld [vmem:[%s584 + $0x10] sm:$0xff]
        %v595 = vld [vmem:[%s584 + $0x18] sm:$0xff]
        %v596 = vld [vmem:[%s2] sm:$0xff]
        %v597 = vld [vmem:[%s2 + $0x8] sm:$0xff]
        %v598 = vld [vmem:[%s2 + $0x10] sm:$0xff]
        %v599 = vld [vmem:[%s2 + $0x18] sm:$0xff]
        %v600 = vld [vmem:[%s3] sm:$0x1]
        %v602 = vlaneseq
        %v603 = vshrl.u32 %v602, 7
        %v604 = vsub.s32 0, %v603
        %v605 = vrot.slane %v600, %v604
        %vm607 = vcmask 261120
        %v609 = vsel %vm607, %v588, 0
        %v612 = vsel %vm607, %v589, 0
        %v615 = vsel %vm607, %v590, 0
        %v618 = vsel %vm607, %v591, 0
        %620 = vmatprep.subr.mxu0 0.0
        %621 = vmatpush1.msra.mxu0 %v596
        %622 = vmatprep.subr.mxu0 0.0
        %623 = vmatpush1.msra.mxu0 %v597
        %624 = vmatprep.subr.mxu0 0.0
        %625 = vmatpush1.msra.mxu0 %v598
        %626 = vmatprep.subr.mxu0 0.0
        %627 = vmatpush1.msra.mxu0 %v599
        %628 = vmatprep.subr.mxu0 0.0
        %629 = vmatpush1.msra.mxu0 0.0
        %630 = vmatprep.subr.mxu0 0.0
        %631 = vmatpush1.msra.mxu0 0.0
        %632 = vmatprep.subr.mxu0 0.0
        %633 = vmatpush1.msra.mxu0 0.0
        %634 = vmatprep.subr.mxu0 0.0
        %635 = vmatpush1.msra.mxu0 0.0
        %636 = vmatprep.subr.mxu0 0.0
        %637 = vmatpush1.msra.mxu0 0.0
        %638 = vmatprep.subr.mxu0 0.0
        %639 = vmatpush1.msra.mxu0 0.0
        %640 = vmatprep.subr.mxu0 0.0
        %641 = vmatpush1.msra.mxu0 0.0
        %642 = vmatprep.subr.mxu0 0.0
        %643 = vmatpush1.msra.mxu0 0.0
        %644 = vmatprep.subr.mxu0 0.0
        %645 = vmatpush1.msra.mxu0 0.0
        %646 = vmatprep.subr.mxu0 0.0
        %647 = vmatpush1.msra.mxu0 0.0
        %648 = vmatprep.subr.mxu0 0.0
        %649 = vmatpush1.msra.mxu0 0.0
        %650 = vmatprep.subr.mxu0 0.0
        %651 = vmatpush1.msra.mxu0 0.0
        %652 = vmatprep.subr.mxu0 0.0
        %653 = vmatpush1.msra.mxu0 0.0
        %654 = vmatprep.subr.mxu0 0.0
        %655 = vmatpush1.msra.mxu0 0.0
        %656 = vmatprep.subr.mxu0 0.0
        %657 = vmatpush1.msra.mxu0 0.0
        %658 = vmatprep.subr.mxu0 0.0
        %659 = vmatpush1.msra.mxu0 0.0
        %660 = vmatprep.subr.mxu0 0.0
        %661 = vmatpush1.msra.mxu0 0.0
        %662 = vmatprep.subr.mxu0 0.0
        %663 = vmatpush1.msra.mxu0 0.0
        %664 = vmatprep.subr.mxu0 0.0
        %665 = vmatpush1.msra.mxu0 0.0
        %666 = vmatprep.subr.mxu0 0.0
        %667 = vmatpush1.msra.mxu0 0.0
        %668 = vmatprep.subr.mxu0 0.0
        %669 = vmatpush1.msra.mxu0 0.0
        %670 = vmatprep.subr.mxu0 0.0
        %671 = vmatpush1.msra.mxu0 0.0
        %672 = vmatprep.subr.mxu0 0.0
        %673 = vmatpush1.msra.mxu0 0.0
        %674 = vmatprep.subr.mxu0 0.0
        %675 = vmatpush1.msra.mxu0 0.0
        %676 = vmatprep.subr.mxu0 0.0
        %677 = vmatpush1.msra.mxu0 0.0
        %678 = vmatprep.subr.mxu0 0.0
        %679 = vmatpush1.msra.mxu0 0.0
        %680 = vmatprep.subr.mxu0 0.0
        %681 = vmatpush1.msra.mxu0 0.0
        %682 = vmatprep.subr.mxu0 0.0
        %683 = vmatpush1.msra.mxu0 0.0
        %684 = vmatprep.mubr.f32.mxu0 0.0
        %685 = vmatmul.mubr.f32.gmra.mrb[0].mxu0 %v609
        %v686 = vpop.f32.mrb[0].mxu0
        %v687 = vadd.f32 %v605, %v686
        %v688 = vpop.f32.mrb[0].mxu0
        %689 = vmatprep.mubr.f32.mxu0 0.0
        %690 = vmatmul.mubr.f32.gmra.mrb[0].mxu0 %v612
        %v691 = vpop.f32.mrb[0].mxu0
        %v692 = vadd.f32 %v605, %v691
        %v693 = vpop.f32.mrb[0].mxu0
        %694 = vmatprep.mubr.f32.mxu0 0.0
        %695 = vmatmul.mubr.f32.gmra.mrb[0].mxu0 %v615
        %v696 = vpop.f32.mrb[0].mxu0
        %v697 = vadd.f32 %v605, %v696
        %v698 = vpop.f32.mrb[0].mxu0
        %699 = vmatprep.mubr.f32.mxu0 0.0
        %700 = vmatmul.mubr.f32.gmra.mrb[0].mxu0 %v618
        %v701 = vpop.f32.mrb[0].mxu0
        %v702 = vadd.f32 %v605, %v701
        %v703 = vpop.f32.mrb[0].mxu0
        %704 = vdwg.mxu0
        %v705 = vmax.f32 %v687, 0.0
        %v706 = vmax.f32 %v692, 0.0
        %v707 = vmax.f32 %v697, 0.0
        %v708 = vmax.f32 %v702, 0.0
        %v709 = vld [vmem:[%s4] sm:$0xff]
        %v710 = vld [vmem:[%s4 + $0x8] sm:$0xff]
        %v711 = vld [vmem:[%s4 + $0x10] sm:$0xff]
        %v712 = vld [vmem:[%s4 + $0x18] sm:$0xff]
        %v714 = vsel %vm607, %v705, 0
        %v717 = vsel %vm607, %v706, 0
        %v720 = vsel %vm607, %v707, 0
        %v723 = vsel %vm607, %v708, 0
        %725 = vmatprep.subr.mxu0 0.0
        %726 = vmatpush1.msra.mxu0 %v709
        %727 = vmatprep.subr.mxu0 0.0
        %728 = vmatpush1.msra.mxu0 %v710
        %729 = vmatprep.subr.mxu0 0.0
        %730 = vmatpush1.msra.mxu0 %v711
        %731 = vmatprep.subr.mxu0 0.0
        %732 = vmatpush1.msra.mxu0 %v712
        %733 = vmatprep.subr.mxu0 0.0
        %734 = vmatpush1.msra.mxu0 0.0
        %735 = vmatprep.subr.mxu0 0.0
        %736 = vmatpush1.msra.mxu0 0.0
        %737 = vmatprep.subr.mxu0 0.0
        %738 = vmatpush1.msra.mxu0 0.0
        %739 = vmatprep.subr.mxu0 0.0
        %740 = vmatpush1.msra.mxu0 0.0
        %741 = vmatprep.subr.mxu0 0.0
        %742 = vmatpush1.msra.mxu0 0.0
        %743 = vmatprep.subr.mxu0 0.0
        %744 = vmatpush1.msra.mxu0 0.0
        %745 = vmatprep.subr.mxu0 0.0
        %746 = vmatpush1.msra.mxu0 0.0
        %747 = vmatprep.subr.mxu0 0.0
        %748 = vmatpush1.msra.mxu0 0.0
        %749 = vmatprep.subr.mxu0 0.0
        %750 = vmatpush1.msra.mxu0 0.0
        %751 = vmatprep.subr.mxu0 0.0
        %752 = vmatpush1.msra.mxu0 0.0
        %753 = vmatprep.subr.mxu0 0.0
        %754 = vmatpush1.msra.mxu0 0.0
        %755 = vmatprep.subr.mxu0 0.0
        %756 = vmatpush1.msra.mxu0 0.0
        %757 = vmatprep.subr.mxu0 0.0
        %758 = vmatpush1.msra.mxu0 0.0
        %759 = vmatprep.subr.mxu0 0.0
        %760 = vmatpush1.msra.mxu0 0.0
        %761 = vmatprep.subr.mxu0 0.0
        %762 = vmatpush1.msra.mxu0 0.0
        %763 = vmatprep.subr.mxu0 0.0
        %764 = vmatpush1.msra.mxu0 0.0
        %765 = vmatprep.subr.mxu0 0.0
        %766 = vmatpush1.msra.mxu0 0.0
        %767 = vmatprep.subr.mxu0 0.0
        %768 = vmatpush1.msra.mxu0 0.0
        %769 = vmatprep.subr.mxu0 0.0
        %770 = vmatpush1.msra.mxu0 0.0
        %771 = vmatprep.subr.mxu0 0.0
        %772 = vmatpush1.msra.mxu0 0.0
        %773 = vmatprep.subr.mxu0 0.0
        %774 = vmatpush1.msra.mxu0 0.0
        %775 = vmatprep.subr.mxu0 0.0
        %776 = vmatpush1.msra.mxu0 0.0
        %777 = vmatprep.subr.mxu0 0.0
        %778 = vmatpush1.msra.mxu0 0.0
        %779 = vmatprep.subr.mxu0 0.0
        %780 = vmatpush1.msra.mxu0 0.0
        %781 = vmatprep.subr.mxu0 0.0
        %782 = vmatpush1.msra.mxu0 0.0
        %783 = vmatprep.subr.mxu0 0.0
        %784 = vmatpush1.msra.mxu0 0.0
        %785 = vmatprep.subr.mxu0 0.0
        %786 = vmatpush1.msra.mxu0 0.0
        %787 = vmatprep.subr.mxu0 0.0
        %788 = vmatpush1.msra.mxu0 0.0
        %789 = vmatprep.mubr.f32.mxu0 0.0
        %790 = vmatmul.mubr.f32.gmra.mrb[0].mxu0 %v714
        %v791 = vpop.f32.mrb[0].mxu0
        %v792 = vadd.f32 0.0, %v791
        %v793 = vpop.f32.mrb[0].mxu0
        %794 = vmatprep.mubr.f32.mxu0 0.0
        %795 = vmatmul.mubr.f32.gmra.mrb[0].mxu0 %v717
        %v796 = vpop.f32.mrb[0].mxu0
        %v797 = vadd.f32 0.0, %v796
        %v798 = vpop.f32.mrb[0].mxu0
        %799 = vmatprep.mubr.f32.mxu0 0.0
        %800 = vmatmul.mubr.f32.gmra.mrb[0].mxu0 %v720
        %v801 = vpop.f32.mrb[0].mxu0
        %v802 = vadd.f32 0.0, %v801
        %v803 = vpop.f32.mrb[0].mxu0
        %804 = vmatprep.mubr.f32.mxu0 0.0
        %805 = vmatmul.mubr.f32.gmra.mrb[0].mxu0 %v723
        %v806 = vpop.f32.mrb[0].mxu0
        %v807 = vadd.f32 0.0, %v806
        %v808 = vpop.f32.mrb[0].mxu0
        %809 = vdwg.mxu0
        %v810 = vld [vmem:[%s5] sm:$0x1]
        %v812 = vlaneseq
        %v813 = vshrl.u32 %v812, 7
        %v814 = vsub.s32 0, %v813
        %v815 = vrot.slane %v810, %v814
        %v818 = vsel %vm607, %v592, 0
        %v821 = vsel %vm607, %v593, 0
        %v824 = vsel %vm607, %v594, 0
        %v827 = vsel %vm607, %v595, 0
        %829 = vmatprep.subr.mxu0 0.0
        %830 = vmatpush1.msra.mxu0 %v792
        %831 = vmatprep.subr.mxu0 0.0
        %832 = vmatpush1.msra.mxu0 %v797
        %833 = vmatprep.subr.mxu0 0.0
        %834 = vmatpush1.msra.mxu0 %v802
        %835 = vmatprep.subr.mxu0 0.0
        %836 = vmatpush1.msra.mxu0 %v807
        %837 = vmatprep.subr.mxu0 0.0
        %838 = vmatpush1.msra.mxu0 0.0
        %839 = vmatprep.subr.mxu0 0.0
        %840 = vmatpush1.msra.mxu0 0.0
        %841 = vmatprep.subr.mxu0 0.0
        %842 = vmatpush1.msra.mxu0 0.0
        %843 = vmatprep.subr.mxu0 0.0
        %844 = vmatpush1.msra.mxu0 0.0
        %845 = vmatprep.subr.mxu0 0.0
        %846 = vmatpush1.msra.mxu0 0.0
        %847 = vmatprep.subr.mxu0 0.0
        %848 = vmatpush1.msra.mxu0 0.0
        %849 = vmatprep.subr.mxu0 0.0
        %850 = vmatpush1.msra.mxu0 0.0
        %851 = vmatprep.subr.mxu0 0.0
        %852 = vmatpush1.msra.mxu0 0.0
        %853 = vmatprep.subr.mxu0 0.0
        %854 = vmatpush1.msra.mxu0 0.0
        %855 = vmatprep.subr.mxu0 0.0
        %856 = vmatpush1.msra.mxu0 0.0
        %857 = vmatprep.subr.mxu0 0.0
        %858 = vmatpush1.msra.mxu0 0.0
        %859 = vmatprep.subr.mxu0 0.0
        %860 = vmatpush1.msra.mxu0 0.0
        %861 = vmatprep.subr.mxu0 0.0
        %862 = vmatpush1.msra.mxu0 0.0
        %863 = vmatprep.subr.mxu0 0.0
        %864 = vmatpush1.msra.mxu0 0.0
        %865 = vmatprep.subr.mxu0 0.0
        %866 = vmatpush1.msra.mxu0 0.0
        %867 = vmatprep.subr.mxu0 0.0
        %868 = vmatpush1.msra.mxu0 0.0
        %869 = vmatprep.subr.mxu0 0.0
        %870 = vmatpush1.msra.mxu0 0.0
        %871 = vmatprep.subr.mxu0 0.0
        %872 = vmatpush1.msra.mxu0 0.0
        %873 = vmatprep.subr.mxu0 0.0
        %874 = vmatpush1.msra.mxu0 0.0
        %875 = vmatprep.subr.mxu0 0.0
        %876 = vmatpush1.msra.mxu0 0.0
        %877 = vmatprep.subr.mxu0 0.0
        %878 = vmatpush1.msra.mxu0 0.0
        %879 = vmatprep.subr.mxu0 0.0
        %880 = vmatpush1.msra.mxu0 0.0
        %881 = vmatprep.subr.mxu0 0.0
        %882 = vmatpush1.msra.mxu0 0.0
        %883 = vmatprep.subr.mxu0 0.0
        %884 = vmatpush1.msra.mxu0 0.0
        %885 = vmatprep.subr.mxu0 0.0
        %886 = vmatpush1.msra.mxu0 0.0
        %887 = vmatprep.subr.mxu0 0.0
        %888 = vmatpush1.msra.mxu0 0.0
        %889 = vmatprep.subr.mxu0 0.0
        %890 = vmatpush1.msra.mxu0 0.0
        %891 = vmatprep.subr.mxu0 0.0
        %892 = vmatpush1.msra.mxu0 0.0
        %893 = vmatprep.mubr.f32.mxu0 0.0
        %894 = vmatmul.mubr.f32.gmra.mrb[0].mxu0 %v818
        %v895 = vpop.f32.mrb[0].mxu0
        %v896 = vadd.f32 %v815, %v895
        %v897 = vpop.f32.mrb[0].mxu0
        %898 = vmatprep.mubr.f32.mxu0 0.0
        %899 = vmatmul.mubr.f32.gmra.mrb[0].mxu0 %v821
        %v900 = vpop.f32.mrb[0].mxu0
        %v901 = vadd.f32 %v815, %v900
        %v902 = vpop.f32.mrb[0].mxu0
        %903 = vmatprep.mubr.f32.mxu0 0.0
        %904 = vmatmul.mubr.f32.gmra.mrb[0].mxu0 %v824
        %v905 = vpop.f32.mrb[0].mxu0
        %v906 = vadd.f32 %v815, %v905
        %v907 = vpop.f32.mrb[0].mxu0
        %908 = vmatprep.mubr.f32.mxu0 0.0
        %909 = vmatmul.mubr.f32.gmra.mrb[0].mxu0 %v827
        %v910 = vpop.f32.mrb[0].mxu0
        %v911 = vadd.f32 %v815, %v910
        %v912 = vpop.f32.mrb[0].mxu0
        %913 = vdwg.mxu0
        %v914 = vmax.f32 %v896, 0.0
        %v915 = vmax.f32 %v901, 0.0
        %v916 = vmax.f32 %v906, 0.0
        %v917 = vmax.f32 %v911, 0.0
        %v918 = vld [vmem:[%s6] sm:$0xff]
        %v919 = vld [vmem:[%s6 + $0x8] sm:$0xff]
        %v920 = vld [vmem:[%s6 + $0x10] sm:$0xff]
        %v921 = vld [vmem:[%s6 + $0x18] sm:$0xff]
        %v923 = vsel %vm607, %v914, 0
        %v926 = vsel %vm607, %v915, 0
        %v929 = vsel %vm607, %v916, 0
        %v932 = vsel %vm607, %v917, 0
        %934 = vmatprep.subr.mxu0 0.0
        %935 = vmatpush1.msra.mxu0 %v918
        %936 = vmatprep.subr.mxu0 0.0
        %937 = vmatpush1.msra.mxu0 %v919
        %938 = vmatprep.subr.mxu0 0.0
        %939 = vmatpush1.msra.mxu0 %v920
        %940 = vmatprep.subr.mxu0 0.0
        %941 = vmatpush1.msra.mxu0 %v921
        %942 = vmatprep.subr.mxu0 0.0
        %943 = vmatpush1.msra.mxu0 0.0
        %944 = vmatprep.subr.mxu0 0.0
        %945 = vmatpush1.msra.mxu0 0.0
        %946 = vmatprep.subr.mxu0 0.0
        %947 = vmatpush1.msra.mxu0 0.0
        %948 = vmatprep.subr.mxu0 0.0
        %949 = vmatpush1.msra.mxu0 0.0
        %950 = vmatprep.subr.mxu0 0.0
        %951 = vmatpush1.msra.mxu0 0.0
        %952 = vmatprep.subr.mxu0 0.0
        %953 = vmatpush1.msra.mxu0 0.0
        %954 = vmatprep.subr.mxu0 0.0
        %955 = vmatpush1.msra.mxu0 0.0
        %956 = vmatprep.subr.mxu0 0.0
        %957 = vmatpush1.msra.mxu0 0.0
        %958 = vmatprep.subr.mxu0 0.0
        %959 = vmatpush1.msra.mxu0 0.0
        %960 = vmatprep.subr.mxu0 0.0
        %961 = vmatpush1.msra.mxu0 0.0
        %962 = vmatprep.subr.mxu0 0.0
        %963 = vmatpush1.msra.mxu0 0.0
        %964 = vmatprep.subr.mxu0 0.0
        %965 = vmatpush1.msra.mxu0 0.0
        %966 = vmatprep.subr.mxu0 0.0
        %967 = vmatpush1.msra.mxu0 0.0
        %968 = vmatprep.subr.mxu0 0.0
        %969 = vmatpush1.msra.mxu0 0.0
        %970 = vmatprep.subr.mxu0 0.0
        %971 = vmatpush1.msra.mxu0 0.0
        %972 = vmatprep.subr.mxu0 0.0
        %973 = vmatpush1.msra.mxu0 0.0
        %974 = vmatprep.subr.mxu0 0.0
        %975 = vmatpush1.msra.mxu0 0.0
        %976 = vmatprep.subr.mxu0 0.0
        %977 = vmatpush1.msra.mxu0 0.0
        %978 = vmatprep.subr.mxu0 0.0
        %979 = vmatpush1.msra.mxu0 0.0
        %980 = vmatprep.subr.mxu0 0.0
        %981 = vmatpush1.msra.mxu0 0.0
        %982 = vmatprep.subr.mxu0 0.0
        %983 = vmatpush1.msra.mxu0 0.0
        %984 = vmatprep.subr.mxu0 0.0
        %985 = vmatpush1.msra.mxu0 0.0
        %986 = vmatprep.subr.mxu0 0.0
        %987 = vmatpush1.msra.mxu0 0.0
        %988 = vmatprep.subr.mxu0 0.0
        %989 = vmatpush1.msra.mxu0 0.0
        %990 = vmatprep.subr.mxu0 0.0
        %991 = vmatpush1.msra.mxu0 0.0
        %992 = vmatprep.subr.mxu0 0.0
        %993 = vmatpush1.msra.mxu0 0.0
        %994 = vmatprep.subr.mxu0 0.0
        %995 = vmatpush1.msra.mxu0 0.0
        %996 = vmatprep.subr.mxu0 0.0
        %997 = vmatpush1.msra.mxu0 0.0
        %998 = vmatprep.mubr.f32.mxu0 0.0
        %999 = vmatmul.mubr.f32.gmra.mrb[0].mxu0 %v923
        %v1000 = vpop.f32.mrb[0].mxu0
        %v1001 = vadd.f32 0.0, %v1000
        %v1002 = vpop.f32.mrb[0].mxu0
        %1003 = vmatprep.mubr.f32.mxu0 0.0
        %1004 = vmatmul.mubr.f32.gmra.mrb[0].mxu0 %v926
        %v1005 = vpop.f32.mrb[0].mxu0
        %v1006 = vadd.f32 0.0, %v1005
        %v1007 = vpop.f32.mrb[0].mxu0
        %1008 = vmatprep.mubr.f32.mxu0 0.0
        %1009 = vmatmul.mubr.f32.gmra.mrb[0].mxu0 %v929
        %v1010 = vpop.f32.mrb[0].mxu0
        %v1011 = vadd.f32 0.0, %v1010
        %v1012 = vpop.f32.mrb[0].mxu0
        %1013 = vmatprep.mubr.f32.mxu0 0.0
        %1014 = vmatmul.mubr.f32.gmra.mrb[0].mxu0 %v932
        %v1015 = vpop.f32.mrb[0].mxu0
        %v1016 = vadd.f32 0.0, %v1015
        %v1017 = vpop.f32.mrb[0].mxu0
        %1018 = vdwg.mxu0
        %v1019 = vld [vmem:[%s7] sm:$0x1]
        %v1021 = vlaneseq
        %v1022 = vshrl.u32 %v1021, 7
        %v1023 = vsub.s32 0, %v1022
        %v1024 = vrot.slane %v1019, %v1023
        %1026 = vmatprep.subr.mxu0 0.0
        %1027 = vmatpush1.msra.mxu0 %v1001
        %1028 = vmatprep.subr.mxu0 0.0
        %1029 = vmatpush1.msra.mxu0 %v1006
        %1030 = vmatprep.subr.mxu0 0.0
        %1031 = vmatpush1.msra.mxu0 %v1011
        %1032 = vmatprep.subr.mxu0 0.0
        %1033 = vmatpush1.msra.mxu0 %v1016
        %1034 = vmatprep.subr.mxu0 0.0
        %1035 = vmatpush1.msra.mxu0 0.0
        %1036 = vmatprep.subr.mxu0 0.0
        %1037 = vmatpush1.msra.mxu0 0.0
        %1038 = vmatprep.subr.mxu0 0.0
        %1039 = vmatpush1.msra.mxu0 0.0
        %1040 = vmatprep.subr.mxu0 0.0
        %1041 = vmatpush1.msra.mxu0 0.0
        %1042 = vmatprep.subr.mxu0 0.0
        %1043 = vmatpush1.msra.mxu0 0.0
        %1044 = vmatprep.subr.mxu0 0.0
        %1045 = vmatpush1.msra.mxu0 0.0
        %1046 = vmatprep.subr.mxu0 0.0
        %1047 = vmatpush1.msra.mxu0 0.0
        %1048 = vmatprep.subr.mxu0 0.0
        %1049 = vmatpush1.msra.mxu0 0.0
        %1050 = vmatprep.subr.mxu0 0.0
        %1051 = vmatpush1.msra.mxu0 0.0
        %1052 = vmatprep.subr.mxu0 0.0
        %1053 = vmatpush1.msra.mxu0 0.0
        %1054 = vmatprep.subr.mxu0 0.0
        %1055 = vmatpush1.msra.mxu0 0.0
        %1056 = vmatprep.subr.mxu0 0.0
        %1057 = vmatpush1.msra.mxu0 0.0
        %1058 = vmatprep.subr.mxu0 0.0
        %1059 = vmatpush1.msra.mxu0 0.0
        %1060 = vmatprep.subr.mxu0 0.0
        %1061 = vmatpush1.msra.mxu0 0.0
        %1062 = vmatprep.subr.mxu0 0.0
        %1063 = vmatpush1.msra.mxu0 0.0
        %1064 = vmatprep.subr.mxu0 0.0
        %1065 = vmatpush1.msra.mxu0 0.0
        %1066 = vmatprep.subr.mxu0 0.0
        %1067 = vmatpush1.msra.mxu0 0.0
        %1068 = vmatprep.subr.mxu0 0.0
        %1069 = vmatpush1.msra.mxu0 0.0
        %1070 = vmatprep.subr.mxu0 0.0
        %1071 = vmatpush1.msra.mxu0 0.0
        %1072 = vmatprep.subr.mxu0 0.0
        %1073 = vmatpush1.msra.mxu0 0.0
        %1074 = vmatprep.subr.mxu0 0.0
        %1075 = vmatpush1.msra.mxu0 0.0
        %1076 = vmatprep.subr.mxu0 0.0
        %1077 = vmatpush1.msra.mxu0 0.0
        %1078 = vmatprep.subr.mxu0 0.0
        %1079 = vmatpush1.msra.mxu0 0.0
        %1080 = vmatprep.subr.mxu0 0.0
        %1081 = vmatpush1.msra.mxu0 0.0
        %1082 = vmatprep.subr.mxu0 0.0
        %1083 = vmatpush1.msra.mxu0 0.0
        %1084 = vmatprep.subr.mxu0 0.0
        %1085 = vmatpush1.msra.mxu0 0.0
        %1086 = vmatprep.subr.mxu0 0.0
        %1087 = vmatpush1.msra.mxu0 0.0
        %1088 = vmatprep.subr.mxu0 0.0
        %1089 = vmatpush1.msra.mxu0 0.0
        %1090 = vmatprep.mubr.f32.mxu0 0.0
        %1091 = vmatmul.mubr.f32.gmra.mrb[0].mxu0 %v818
        %v1092 = vpop.f32.mrb[0].mxu0
        %v1093 = vadd.f32 %v1024, %v1092
        %v1094 = vpop.f32.mrb[0].mxu0
        %1095 = vmatprep.mubr.f32.mxu0 0.0
        %1096 = vmatmul.mubr.f32.gmra.mrb[0].mxu0 %v821
        %v1097 = vpop.f32.mrb[0].mxu0
        %v1098 = vadd.f32 %v1024, %v1097
        %v1099 = vpop.f32.mrb[0].mxu0
        %1100 = vmatprep.mubr.f32.mxu0 0.0
        %1101 = vmatmul.mubr.f32.gmra.mrb[0].mxu0 %v824
        %v1102 = vpop.f32.mrb[0].mxu0
        %v1103 = vadd.f32 %v1024, %v1102
        %v1104 = vpop.f32.mrb[0].mxu0
        %1105 = vmatprep.mubr.f32.mxu0 0.0
        %1106 = vmatmul.mubr.f32.gmra.mrb[0].mxu0 %v827
        %v1107 = vpop.f32.mrb[0].mxu0
        %v1108 = vadd.f32 %v1024, %v1107
        %v1109 = vpop.f32.mrb[0].mxu0
        %1110 = vdwg.mxu0
        %v1111 = vmax.f32 %v1093, 0.0
        %v1112 = vmax.f32 %v1098, 0.0
        %v1113 = vmax.f32 %v1103, 0.0
        %v1114 = vmax.f32 %v1108, 0.0
        %v1115 = vld [vmem:[%s8] sm:$0xff]
        %v1116 = vld [vmem:[%s8 + $0x8] sm:$0xff]
        %v1117 = vld [vmem:[%s8 + $0x10] sm:$0xff]
        %v1118 = vld [vmem:[%s8 + $0x18] sm:$0xff]
        %v1120 = vsel %vm607, %v1111, 0
        %v1123 = vsel %vm607, %v1112, 0
        %v1126 = vsel %vm607, %v1113, 0
        %v1129 = vsel %vm607, %v1114, 0
        %1131 = vmatprep.subr.mxu0 0.0
        %1132 = vmatpush1.msra.mxu0 %v1115
        %1133 = vmatprep.subr.mxu0 0.0
        %1134 = vmatpush1.msra.mxu0 %v1116
        %1135 = vmatprep.subr.mxu0 0.0
        %1136 = vmatpush1.msra.mxu0 %v1117
        %1137 = vmatprep.subr.mxu0 0.0
        %1138 = vmatpush1.msra.mxu0 %v1118
        %1139 = vmatprep.subr.mxu0 0.0
        %1140 = vmatpush1.msra.mxu0 0.0
        %1141 = vmatprep.subr.mxu0 0.0
        %1142 = vmatpush1.msra.mxu0 0.0
        %1143 = vmatprep.subr.mxu0 0.0
        %1144 = vmatpush1.msra.mxu0 0.0
        %1145 = vmatprep.subr.mxu0 0.0
        %1146 = vmatpush1.msra.mxu0 0.0
        %1147 = vmatprep.subr.mxu0 0.0
        %1148 = vmatpush1.msra.mxu0 0.0
        %1149 = vmatprep.subr.mxu0 0.0
        %1150 = vmatpush1.msra.mxu0 0.0
        %1151 = vmatprep.subr.mxu0 0.0
        %1152 = vmatpush1.msra.mxu0 0.0
        %1153 = vmatprep.subr.mxu0 0.0
        %1154 = vmatpush1.msra.mxu0 0.0
        %1155 = vmatprep.subr.mxu0 0.0
        %1156 = vmatpush1.msra.mxu0 0.0
        %1157 = vmatprep.subr.mxu0 0.0
        %1158 = vmatpush1.msra.mxu0 0.0
        %1159 = vmatprep.subr.mxu0 0.0
        %1160 = vmatpush1.msra.mxu0 0.0
        %1161 = vmatprep.subr.mxu0 0.0
        %1162 = vmatpush1.msra.mxu0 0.0
        %1163 = vmatprep.subr.mxu0 0.0
        %1164 = vmatpush1.msra.mxu0 0.0
        %1165 = vmatprep.subr.mxu0 0.0
        %1166 = vmatpush1.msra.mxu0 0.0
        %1167 = vmatprep.subr.mxu0 0.0
        %1168 = vmatpush1.msra.mxu0 0.0
        %1169 = vmatprep.subr.mxu0 0.0
        %1170 = vmatpush1.msra.mxu0 0.0
        %1171 = vmatprep.subr.mxu0 0.0
        %1172 = vmatpush1.msra.mxu0 0.0
        %1173 = vmatprep.subr.mxu0 0.0
        %1174 = vmatpush1.msra.mxu0 0.0
        %1175 = vmatprep.subr.mxu0 0.0
        %1176 = vmatpush1.msra.mxu0 0.0
        %1177 = vmatprep.subr.mxu0 0.0
        %1178 = vmatpush1.msra.mxu0 0.0
        %1179 = vmatprep.subr.mxu0 0.0
        %1180 = vmatpush1.msra.mxu0 0.0
        %1181 = vmatprep.subr.mxu0 0.0
        %1182 = vmatpush1.msra.mxu0 0.0
        %1183 = vmatprep.subr.mxu0 0.0
        %1184 = vmatpush1.msra.mxu0 0.0
        %1185 = vmatprep.subr.mxu0 0.0
        %1186 = vmatpush1.msra.mxu0 0.0
        %1187 = vmatprep.subr.mxu0 0.0
        %1188 = vmatpush1.msra.mxu0 0.0
        %1189 = vmatprep.subr.mxu0 0.0
        %1190 = vmatpush1.msra.mxu0 0.0
        %1191 = vmatprep.subr.mxu0 0.0
        %1192 = vmatpush1.msra.mxu0 0.0
        %1193 = vmatprep.subr.mxu0 0.0
        %1194 = vmatpush1.msra.mxu0 0.0
        %1195 = vmatprep.mubr.f32.mxu0 0.0
        %1196 = vmatmul.mubr.f32.gmra.mrb[0].mxu0 %v1120
        %v1197 = vpop.f32.mrb[0].mxu0
        %v1198 = vadd.f32 0.0, %v1197
        %v1199 = vpop.f32.mrb[0].mxu0
        %1200 = vmatprep.mubr.f32.mxu0 0.0
        %1201 = vmatmul.mubr.f32.gmra.mrb[0].mxu0 %v1123
        %v1202 = vpop.f32.mrb[0].mxu0
        %v1203 = vadd.f32 0.0, %v1202
        %v1204 = vpop.f32.mrb[0].mxu0
        %1205 = vmatprep.mubr.f32.mxu0 0.0
        %1206 = vmatmul.mubr.f32.gmra.mrb[0].mxu0 %v1126
        %v1207 = vpop.f32.mrb[0].mxu0
        %v1208 = vadd.f32 0.0, %v1207
        %v1209 = vpop.f32.mrb[0].mxu0
        %1210 = vmatprep.mubr.f32.mxu0 0.0
        %1211 = vmatmul.mubr.f32.gmra.mrb[0].mxu0 %v1129
        %v1212 = vpop.f32.mrb[0].mxu0
        %v1213 = vadd.f32 0.0, %v1212
        %v1214 = vpop.f32.mrb[0].mxu0
        %1215 = vdwg.mxu0
        %v1216 = vld [vmem:[%s9] sm:$0x1]
        %v1218 = vlaneseq
        %v1219 = vshrl.u32 %v1218, 7
        %v1220 = vsub.s32 0, %v1219
        %v1221 = vrot.slane %v1216, %v1220
        %1223 = vmatprep.subr.mxu0 0.0
        %1224 = vmatpush1.msra.mxu0 %v1198
        %1225 = vmatprep.subr.mxu0 0.0
        %1226 = vmatpush1.msra.mxu0 %v1203
        %1227 = vmatprep.subr.mxu0 0.0
        %1228 = vmatpush1.msra.mxu0 %v1208
        %1229 = vmatprep.subr.mxu0 0.0
        %1230 = vmatpush1.msra.mxu0 %v1213
        %1231 = vmatprep.subr.mxu0 0.0
        %1232 = vmatpush1.msra.mxu0 0.0
        %1233 = vmatprep.subr.mxu0 0.0
        %1234 = vmatpush1.msra.mxu0 0.0
        %1235 = vmatprep.subr.mxu0 0.0
        %1236 = vmatpush1.msra.mxu0 0.0
        %1237 = vmatprep.subr.mxu0 0.0
        %1238 = vmatpush1.msra.mxu0 0.0
        %1239 = vmatprep.subr.mxu0 0.0
        %1240 = vmatpush1.msra.mxu0 0.0
        %1241 = vmatprep.subr.mxu0 0.0
        %1242 = vmatpush1.msra.mxu0 0.0
        %1243 = vmatprep.subr.mxu0 0.0
        %1244 = vmatpush1.msra.mxu0 0.0
        %1245 = vmatprep.subr.mxu0 0.0
        %1246 = vmatpush1.msra.mxu0 0.0
        %1247 = vmatprep.subr.mxu0 0.0
        %1248 = vmatpush1.msra.mxu0 0.0
        %1249 = vmatprep.subr.mxu0 0.0
        %1250 = vmatpush1.msra.mxu0 0.0
        %1251 = vmatprep.subr.mxu0 0.0
        %1252 = vmatpush1.msra.mxu0 0.0
        %1253 = vmatprep.subr.mxu0 0.0
        %1254 = vmatpush1.msra.mxu0 0.0
        %1255 = vmatprep.subr.mxu0 0.0
        %1256 = vmatpush1.msra.mxu0 0.0
        %1257 = vmatprep.subr.mxu0 0.0
        %1258 = vmatpush1.msra.mxu0 0.0
        %1259 = vmatprep.subr.mxu0 0.0
        %1260 = vmatpush1.msra.mxu0 0.0
        %1261 = vmatprep.subr.mxu0 0.0
        %1262 = vmatpush1.msra.mxu0 0.0
        %1263 = vmatprep.subr.mxu0 0.0
        %1264 = vmatpush1.msra.mxu0 0.0
        %1265 = vmatprep.subr.mxu0 0.0
        %1266 = vmatpush1.msra.mxu0 0.0
        %1267 = vmatprep.subr.mxu0 0.0
        %1268 = vmatpush1.msra.mxu0 0.0
        %1269 = vmatprep.subr.mxu0 0.0
        %1270 = vmatpush1.msra.mxu0 0.0
        %1271 = vmatprep.subr.mxu0 0.0
        %1272 = vmatpush1.msra.mxu0 0.0
        %1273 = vmatprep.subr.mxu0 0.0
        %1274 = vmatpush1.msra.mxu0 0.0
        %1275 = vmatprep.subr.mxu0 0.0
        %1276 = vmatpush1.msra.mxu0 0.0
        %1277 = vmatprep.subr.mxu0 0.0
        %1278 = vmatpush1.msra.mxu0 0.0
        %1279 = vmatprep.subr.mxu0 0.0
        %1280 = vmatpush1.msra.mxu0 0.0
        %1281 = vmatprep.subr.mxu0 0.0
        %1282 = vmatpush1.msra.mxu0 0.0
        %1283 = vmatprep.subr.mxu0 0.0
        %1284 = vmatpush1.msra.mxu0 0.0
        %1285 = vmatprep.subr.mxu0 0.0
        %1286 = vmatpush1.msra.mxu0 0.0
        %1287 = vmatprep.mubr.f32.mxu0 0.0
        %1288 = vmatmul.mubr.f32.gmra.mrb[0].mxu0 %v818
        %v1289 = vpop.f32.mrb[0].mxu0
        %v1290 = vadd.f32 %v1221, %v1289
        %v1291 = vpop.f32.mrb[0].mxu0
        %1292 = vmatprep.mubr.f32.mxu0 0.0
        %1293 = vmatmul.mubr.f32.gmra.mrb[0].mxu0 %v821
        %v1294 = vpop.f32.mrb[0].mxu0
        %v1295 = vadd.f32 %v1221, %v1294
        %v1296 = vpop.f32.mrb[0].mxu0
        %1297 = vmatprep.mubr.f32.mxu0 0.0
        %1298 = vmatmul.mubr.f32.gmra.mrb[0].mxu0 %v824
        %v1299 = vpop.f32.mrb[0].mxu0
        %v1300 = vadd.f32 %v1221, %v1299
        %v1301 = vpop.f32.mrb[0].mxu0
        %1302 = vmatprep.mubr.f32.mxu0 0.0
        %1303 = vmatmul.mubr.f32.gmra.mrb[0].mxu0 %v827
        %v1304 = vpop.f32.mrb[0].mxu0
        %v1305 = vadd.f32 %v1221, %v1304
        %v1306 = vpop.f32.mrb[0].mxu0
        %1307 = vdwg.mxu0
        %v1308 = vld [vmem:[%s10] sm:$0xff]
        %v1309 = vld [vmem:[%s10 + $0x8] sm:$0xff]
        %v1310 = vld [vmem:[%s10 + $0x10] sm:$0xff]
        %v1311 = vld [vmem:[%s10 + $0x18] sm:$0xff]
        %1312 = vmatprep.subr.mxu0 0.0
        %1313 = vmatpush1.msra.mxu0 %v1308
        %1314 = vmatprep.subr.mxu0 0.0
        %1315 = vmatpush1.msra.mxu0 %v1309
        %1316 = vmatprep.subr.mxu0 0.0
        %1317 = vmatpush1.msra.mxu0 %v1310
        %1318 = vmatprep.subr.mxu0 0.0
        %1319 = vmatpush1.msra.mxu0 %v1311
        %1320 = vmatprep.subr.mxu0 0.0
        %1321 = vmatpush1.msra.mxu0 0.0
        %1322 = vmatprep.subr.mxu0 0.0
        %1323 = vmatpush1.msra.mxu0 0.0
        %1324 = vmatprep.subr.mxu0 0.0
        %1325 = vmatpush1.msra.mxu0 0.0
        %1326 = vmatprep.subr.mxu0 0.0
        %1327 = vmatpush1.msra.mxu0 0.0
        %1328 = vmatprep.subr.mxu0 0.0
        %1329 = vmatpush1.msra.mxu0 0.0
        %1330 = vmatprep.subr.mxu0 0.0
        %1331 = vmatpush1.msra.mxu0 0.0
        %1332 = vmatprep.subr.mxu0 0.0
        %1333 = vmatpush1.msra.mxu0 0.0
        %1334 = vmatprep.subr.mxu0 0.0
        %1335 = vmatpush1.msra.mxu0 0.0
        %1336 = vmatprep.subr.mxu0 0.0
        %1337 = vmatpush1.msra.mxu0 0.0
        %1338 = vmatprep.subr.mxu0 0.0
        %1339 = vmatpush1.msra.mxu0 0.0
        %1340 = vmatprep.subr.mxu0 0.0
        %1341 = vmatpush1.msra.mxu0 0.0
        %1342 = vmatprep.subr.mxu0 0.0
        %1343 = vmatpush1.msra.mxu0 0.0
        %1344 = vmatprep.subr.mxu0 0.0
        %1345 = vmatpush1.msra.mxu0 0.0
        %1346 = vmatprep.subr.mxu0 0.0
        %1347 = vmatpush1.msra.mxu0 0.0
        %1348 = vmatprep.subr.mxu0 0.0
        %1349 = vmatpush1.msra.mxu0 0.0
        %1350 = vmatprep.subr.mxu0 0.0
        %1351 = vmatpush1.msra.mxu0 0.0
        %1352 = vmatprep.subr.mxu0 0.0
        %1353 = vmatpush1.msra.mxu0 0.0
        %1354 = vmatprep.subr.mxu0 0.0
        %1355 = vmatpush1.msra.mxu0 0.0
        %1356 = vmatprep.subr.mxu0 0.0
        %1357 = vmatpush1.msra.mxu0 0.0
        %1358 = vmatprep.subr.mxu0 0.0
        %1359 = vmatpush1.msra.mxu0 0.0
        %1360 = vmatprep.subr.mxu0 0.0
        %1361 = vmatpush1.msra.mxu0 0.0
        %1362 = vmatprep.subr.mxu0 0.0
        %1363 = vmatpush1.msra.mxu0 0.0
        %1364 = vmatprep.subr.mxu0 0.0
        %1365 = vmatpush1.msra.mxu0 0.0
        %1366 = vmatprep.subr.mxu0 0.0
        %1367 = vmatpush1.msra.mxu0 0.0
        %1368 = vmatprep.subr.mxu0 0.0
        %1369 = vmatpush1.msra.mxu0 0.0
        %1370 = vmatprep.subr.mxu0 0.0
        %1371 = vmatpush1.msra.mxu0 0.0
        %1372 = vmatprep.subr.mxu0 0.0
        %1373 = vmatpush1.msra.mxu0 0.0
        %1374 = vmatprep.subr.mxu0 0.0
        %1375 = vmatpush1.msra.mxu0 0.0
        %1376 = vmatprep.mubr.f32.mxu0 0.0
        %1377 = vmatmul.mubr.f32.gmra.mrb[0].mxu0 %v714
        %v1378 = vpop.f32.mrb[0].mxu0
        %v1379 = vadd.f32 0.0, %v1378
        %v1380 = vpop.f32.mrb[0].mxu0
        %1381 = vmatprep.mubr.f32.mxu0 0.0
        %1382 = vmatmul.mubr.f32.gmra.mrb[0].mxu0 %v717
        %v1383 = vpop.f32.mrb[0].mxu0
        %v1384 = vadd.f32 0.0, %v1383
        %v1385 = vpop.f32.mrb[0].mxu0
        %1386 = vdwg.mxu0
        %v1388 = vsel %vm607, %v1379, 0
        %v1391 = vsel %vm607, %v1384, 0
        %1393 = vmatprep.subr.mxu0 0.0
        %1394 = vmatpush1.xpose.msra.mxu0 %v720
        %1395 = vmatprep.subr.mxu0 0.0
        %1396 = vmatpush1.xpose.msra.mxu0 %v723
        %1397 = vmatprep.subr.mxu0 0.0
        %1398 = vmatpush1.xpose.msra.mxu0 0.0
        %1399 = vmatprep.subr.mxu0 0.0
        %1400 = vmatpush1.xpose.msra.mxu0 0.0
        %1401 = vmatprep.subr.mxu0 0.0
        %1402 = vmatpush1.xpose.msra.mxu0 0.0
        %1403 = vmatprep.subr.mxu0 0.0
        %1404 = vmatpush1.xpose.msra.mxu0 0.0
        %1405 = vmatprep.subr.mxu0 0.0
        %1406 = vmatpush1.xpose.msra.mxu0 0.0
        %1407 = vmatprep.subr.mxu0 0.0
        %1408 = vmatpush1.xpose.msra.mxu0 0.0
        %1409 = vmatprep.subr.mxu0 0.0
        %1410 = vmatpush1.xpose.msra.mxu0 0.0
        %1411 = vmatprep.subr.mxu0 0.0
        %1412 = vmatpush1.xpose.msra.mxu0 0.0
        %1413 = vmatprep.subr.mxu0 0.0
        %1414 = vmatpush1.xpose.msra.mxu0 0.0
        %1415 = vmatprep.subr.mxu0 0.0
        %1416 = vmatpush1.xpose.msra.mxu0 0.0
        %1417 = vmatprep.subr.mxu0 0.0
        %1418 = vmatpush1.xpose.msra.mxu0 0.0
        %1419 = vmatprep.subr.mxu0 0.0
        %1420 = vmatpush1.xpose.msra.mxu0 0.0
        %1421 = vmatprep.subr.mxu0 0.0
        %1422 = vmatpush1.xpose.msra.mxu0 0.0
        %1423 = vmatprep.subr.mxu0 0.0
        %1424 = vmatpush1.xpose.msra.mxu0 0.0
        %1425 = vmatprep.subr.mxu0 0.0
        %1426 = vmatpush1.xpose.msra.mxu0 0.0
        %1427 = vmatprep.subr.mxu0 0.0
        %1428 = vmatpush1.xpose.msra.mxu0 0.0
        %1429 = vmatprep.subr.mxu0 0.0
        %1430 = vmatpush1.xpose.msra.mxu0 0.0
        %1431 = vmatprep.subr.mxu0 0.0
        %1432 = vmatpush1.xpose.msra.mxu0 0.0
        %1433 = vmatprep.subr.mxu0 0.0
        %1434 = vmatpush1.xpose.msra.mxu0 0.0
        %1435 = vmatprep.subr.mxu0 0.0
        %1436 = vmatpush1.xpose.msra.mxu0 0.0
        %1437 = vmatprep.subr.mxu0 0.0
        %1438 = vmatpush1.xpose.msra.mxu0 0.0
        %1439 = vmatprep.subr.mxu0 0.0
        %1440 = vmatpush1.xpose.msra.mxu0 0.0
        %1441 = vmatprep.subr.mxu0 0.0
        %1442 = vmatpush1.xpose.msra.mxu0 0.0
        %1443 = vmatprep.subr.mxu0 0.0
        %1444 = vmatpush1.xpose.msra.mxu0 0.0
        %1445 = vmatprep.subr.mxu0 0.0
        %1446 = vmatpush1.xpose.msra.mxu0 0.0
        %1447 = vmatprep.subr.mxu0 0.0
        %1448 = vmatpush1.xpose.msra.mxu0 0.0
        %1449 = vmatprep.subr.mxu0 0.0
        %1450 = vmatpush1.xpose.msra.mxu0 0.0
        %1451 = vmatprep.subr.mxu0 0.0
        %1452 = vmatpush1.xpose.msra.mxu0 0.0
        %1453 = vmatprep.subr.mxu0 0.0
        %1454 = vmatpush1.xpose.msra.mxu0 0.0
        %1455 = vmatprep.subr.mxu0 0.0
        %1456 = vmatpush1.xpose.msra.mxu0 0.0
        %1457 = vmatprep.mubr.f32.mxu0 0.0
        %1458 = vmatmul.mubr.f32.gmra.mrb[0].mxu0 %v1388
        %v1459 = vpop.f32.mrb[0].mxu0
        %v1460 = vadd.f32 0.0, %v1459
        %v1461 = vpop.f32.mrb[0].mxu0
        %1462 = vmatprep.mubr.f32.mxu0 0.0
        %1463 = vmatmul.mubr.f32.gmra.mrb[0].mxu0 %v1391
        %v1464 = vpop.f32.mrb[0].mxu0
        %v1465 = vadd.f32 0.0, %v1464
        %v1466 = vpop.f32.mrb[0].mxu0
        %1467 = vdwg.mxu0
        %vm1468 = vcmask 130048
        %v1469 = vsel %vm1468, %v1460, -inf
        %1470 = vmax.xlane.f32.xlu0 %v1469
        %v1471 = vpop.xlane.xlu0 %1470
        %v1472 = vsel %vm1468, %v1465, -inf
        %1473 = vmax.xlane.f32.xlu0 %v1472
        %v1474 = vpop.xlane.xlu0 %1473
        %v1475 = vmax.f32 %v1471, %v1474
        %v1476 = vrot.slane %v1475, 4
        %v1477 = vmax.f32 %v1475, %v1476
        %v1478 = vrot.slane %v1477, 2
        %v1479 = vmax.f32 %v1477, %v1478
        %v1480 = vrot.slane %v1479, 1
        %v1481 = vmax.f32 %v1479, %v1480
        %v1482 = vsub.f32 %v1460, %v1481
        %v1483 = vsub.f32 %v1465, %v1481
        %v1484 = vmul.f32 %v1482, 1.442695
        %v1485 = vpow.pop %v1484
        %v1486 = vmul.f32 %v1483, 1.442695
        %v1487 = vpow.pop %v1486
        %v1488 = vsel %vm1468, %v1485, 0.0
        %1489 = vadd.xlane.f32.xlu0 %v1488
        %v1490 = vpop.xlane.xlu0 %1489
        %v1491 = vsel %vm1468, %v1487, 0.0
        %1492 = vadd.xlane.f32.xlu0 %v1491
        %v1493 = vpop.xlane.xlu0 %1492
        %v1494 = vadd.f32 %v1490, 0.0001
        %v1495 = vadd.f32 %v1493, 0.0001
        %v1496 = vrcp.pop %v1494
        %v1497 = vrcp.pop %v1495
        %v1498 = vmul.f32 %v1485, %v1496
        %v1499 = vmul.f32 %v1487, %v1497
        %v1500 = vsel %vm1468, %v1498, 0.0
        %v1501 = vsel %vm1468, %v1499, 0.0
        %v1502 = vadd.f32 %v1500, %v1501
        %v1503 = vrot.slane %v1502, 4
        %v1504 = vadd.f32 %v1502, %v1503
        %v1505 = vrot.slane %v1504, 2
        %v1506 = vadd.f32 %v1504, %v1505
        %v1507 = vrot.slane %v1506, 1
        %v1508 = vadd.f32 %v1506, %v1507
        %v1509 = vadd.f32 %v1508, 0.0001
        %v1510 = vrcp.pop %v1509
        %v1511 = vmul.f32 %v1498, %v1510
        %v1512 = vmul.f32 %v1499, %v1510
        %v1513 = vsel %vm1468, %v1511, 0.0
        %1514 = vadd.xlane.f32.xlu0 %v1513
        %v1515 = vpop.xlane.xlu0 %1514
        %v1516 = vsel %vm1468, %v1512, 0.0
        %1517 = vadd.xlane.f32.xlu0 %v1516
        %v1518 = vpop.xlane.xlu0 %1517
        %v1519 = vadd.f32 %v1515, 0.0001
        %v1520 = vadd.f32 %v1518, 0.0001
        %v1521 = vrcp.pop %v1519
        %v1522 = vrcp.pop %v1520
        %v1523 = vmul.f32 %v1511, %v1521
        %v1524 = vmul.f32 %v1512, %v1522
        %v1525 = vsel %vm1468, %v1523, 0.0
        %v1526 = vsel %vm1468, %v1524, 0.0
        %v1527 = vadd.f32 %v1525, %v1526
        %v1528 = vrot.slane %v1527, 4
        %v1529 = vadd.f32 %v1527, %v1528
        %v1530 = vrot.slane %v1529, 2
        %v1531 = vadd.f32 %v1529, %v1530
        %v1532 = vrot.slane %v1531, 1
        %v1533 = vadd.f32 %v1531, %v1532
        %v1534 = vadd.f32 %v1533, 0.0001
        %v1535 = vrcp.pop %v1534
        %v1536 = vmul.f32 %v1523, %v1535
        %v1537 = vmul.f32 %v1524, %v1535
        %v1538 = vsel %vm1468, %v1536, 0.0
        %1539 = vadd.xlane.f32.xlu0 %v1538
        %v1540 = vpop.xlane.xlu0 %1539
        %v1541 = vsel %vm1468, %v1537, 0.0
        %1542 = vadd.xlane.f32.xlu0 %v1541
        %v1543 = vpop.xlane.xlu0 %1542
        %v1544 = vadd.f32 %v1540, 0.0001
        %v1545 = vadd.f32 %v1543, 0.0001
        %v1546 = vrcp.pop %v1544
        %v1547 = vrcp.pop %v1545
        %v1548 = vmul.f32 %v1536, %v1546
        %v1549 = vmul.f32 %v1537, %v1547
        %v1550 = vsel %vm1468, %v1548, 0.0
        %v1551 = vsel %vm1468, %v1549, 0.0
        %v1552 = vadd.f32 %v1550, %v1551
        %v1553 = vrot.slane %v1552, 4
        %v1554 = vadd.f32 %v1552, %v1553
        %v1555 = vrot.slane %v1554, 2
        %v1556 = vadd.f32 %v1554, %v1555
        %v1557 = vrot.slane %v1556, 1
        %v1558 = vadd.f32 %v1556, %v1557
        %v1559 = vadd.f32 %v1558, 0.0001
        %v1560 = vrcp.pop %v1559
        %v1561 = vmul.f32 %v1548, %v1560
        %v1562 = vmul.f32 %v1549, %v1560
        %v1563 = vsel %vm1468, %v1561, 0.0
        %1564 = vadd.xlane.f32.xlu0 %v1563
        %v1565 = vpop.xlane.xlu0 %1564
        %v1566 = vsel %vm1468, %v1562, 0.0
        %1567 = vadd.xlane.f32.xlu0 %v1566
        %v1568 = vpop.xlane.xlu0 %1567
        %v1569 = vadd.f32 %v1565, 0.0001
        %v1570 = vadd.f32 %v1568, 0.0001
        %v1571 = vrcp.pop %v1569
        %v1572 = vrcp.pop %v1570
        %v1573 = vmul.f32 %v1561, %v1571
        %v1574 = vmul.f32 %v1562, %v1572
        %v1575 = vsel %vm1468, %v1573, 0.0
        %v1576 = vsel %vm1468, %v1574, 0.0
        %v1577 = vadd.f32 %v1575, %v1576
        %v1578 = vrot.slane %v1577, 4
        %v1579 = vadd.f32 %v1577, %v1578
        %v1580 = vrot.slane %v1579, 2
        %v1581 = vadd.f32 %v1579, %v1580
        %v1582 = vrot.slane %v1581, 1
        %v1583 = vadd.f32 %v1581, %v1582
        %v1584 = vadd.f32 %v1583, 0.0001
        %v1585 = vrcp.pop %v1584
        %v1586 = vmul.f32 %v1573, %v1585
        %v1587 = vmul.f32 %v1574, %v1585
        %v1588 = vsel %vm1468, %v1586, 0.0
        %1589 = vadd.xlane.f32.xlu0 %v1588
        %v1590 = vpop.xlane.xlu0 %1589
        %v1591 = vsel %vm1468, %v1587, 0.0
        %1592 = vadd.xlane.f32.xlu0 %v1591
        %v1593 = vpop.xlane.xlu0 %1592
        %v1594 = vadd.f32 %v1590, 0.0001
        %v1595 = vadd.f32 %v1593, 0.0001
        %v1596 = vrcp.pop %v1594
        %v1597 = vrcp.pop %v1595
        %v1598 = vmul.f32 %v1586, %v1596
        %v1599 = vmul.f32 %v1587, %v1597
        %v1600 = vsel %vm1468, %v1598, 0.0
        %v1601 = vsel %vm1468, %v1599, 0.0
        %v1602 = vadd.f32 %v1600, %v1601
        %v1603 = vrot.slane %v1602, 4
        %v1604 = vadd.f32 %v1602, %v1603
        %v1605 = vrot.slane %v1604, 2
        %v1606 = vadd.f32 %v1604, %v1605
        %v1607 = vrot.slane %v1606, 1
        %v1608 = vadd.f32 %v1606, %v1607
        %v1609 = vadd.f32 %v1608, 0.0001
        %v1610 = vrcp.pop %v1609
        %v1611 = vmul.f32 %v1598, %v1610
        %v1612 = vmul.f32 %v1599, %v1610
        %v1613 = vsel %vm1468, %v1611, 0.0
        %1614 = vadd.xlane.f32.xlu0 %v1613
        %v1615 = vpop.xlane.xlu0 %1614
        %v1616 = vsel %vm1468, %v1612, 0.0
        %1617 = vadd.xlane.f32.xlu0 %v1616
        %v1618 = vpop.xlane.xlu0 %1617
        %v1619 = vadd.f32 %v1615, 0.0001
        %v1620 = vadd.f32 %v1618, 0.0001
        %v1621 = vrcp.pop %v1619
        %v1622 = vrcp.pop %v1620
        %v1623 = vmul.f32 %v1611, %v1621
        %v1624 = vmul.f32 %v1612, %v1622
        %v1625 = vsel %vm1468, %v1623, 0.0
        %v1626 = vsel %vm1468, %v1624, 0.0
        %v1627 = vadd.f32 %v1625, %v1626
        %v1628 = vrot.slane %v1627, 4
        %v1629 = vadd.f32 %v1627, %v1628
        %v1630 = vrot.slane %v1629, 2
        %v1631 = vadd.f32 %v1629, %v1630
        %v1632 = vrot.slane %v1631, 1
        %v1633 = vadd.f32 %v1631, %v1632
        %v1634 = vadd.f32 %v1633, 0.0001
        %v1635 = vrcp.pop %v1634
        %v1636 = vmul.f32 %v1623, %v1635
        %v1637 = vmul.f32 %v1624, %v1635
        %1638 = vst.msk [vmem:[%s567] sm:$0xff] %vm1468, %v1636
        %1639 = vst.msk [vmem:[%s567 + $0x8] sm:$0xff] %vm1468, %v1637
        %v1641 = vsel %vm607, %v1290, 0
        %v1644 = vsel %vm607, %v1295, 0
        %1646 = vmatprep.subr.mxu0 0.0
        %1647 = vmatpush1.msra.mxu0 %v1308
        %1648 = vmatprep.subr.mxu0 0.0
        %1649 = vmatpush1.msra.mxu0 %v1309
        %1650 = vmatprep.subr.mxu0 0.0
        %1651 = vmatpush1.msra.mxu0 %v1310
        %1652 = vmatprep.subr.mxu0 0.0
        %1653 = vmatpush1.msra.mxu0 %v1311
        %1654 = vmatprep.subr.mxu0 0.0
        %1655 = vmatpush1.msra.mxu0 0.0
        %1656 = vmatprep.subr.mxu0 0.0
        %1657 = vmatpush1.msra.mxu0 0.0
        %1658 = vmatprep.subr.mxu0 0.0
        %1659 = vmatpush1.msra.mxu0 0.0
        %1660 = vmatprep.subr.mxu0 0.0
        %1661 = vmatpush1.msra.mxu0 0.0
        %1662 = vmatprep.subr.mxu0 0.0
        %1663 = vmatpush1.msra.mxu0 0.0
        %1664 = vmatprep.subr.mxu0 0.0
        %1665 = vmatpush1.msra.mxu0 0.0
        %1666 = vmatprep.subr.mxu0 0.0
        %1667 = vmatpush1.msra.mxu0 0.0
        %1668 = vmatprep.subr.mxu0 0.0
        %1669 = vmatpush1.msra.mxu0 0.0
        %1670 = vmatprep.subr.mxu0 0.0
        %1671 = vmatpush1.msra.mxu0 0.0
        %1672 = vmatprep.subr.mxu0 0.0
        %1673 = vmatpush1.msra.mxu0 0.0
        %1674 = vmatprep.subr.mxu0 0.0
        %1675 = vmatpush1.msra.mxu0 0.0
        %1676 = vmatprep.subr.mxu0 0.0
        %1677 = vmatpush1.msra.mxu0 0.0
        %1678 = vmatprep.subr.mxu0 0.0
        %1679 = vmatpush1.msra.mxu0 0.0
        %1680 = vmatprep.subr.mxu0 0.0
        %1681 = vmatpush1.msra.mxu0 0.0
        %1682 = vmatprep.subr.mxu0 0.0
        %1683 = vmatpush1.msra.mxu0 0.0
        %1684 = vmatprep.subr.mxu0 0.0
        %1685 = vmatpush1.msra.mxu0 0.0
        %1686 = vmatprep.subr.mxu0 0.0
        %1687 = vmatpush1.msra.mxu0 0.0
        %1688 = vmatprep.subr.mxu0 0.0
        %1689 = vmatpush1.msra.mxu0 0.0
        %1690 = vmatprep.subr.mxu0 0.0
        %1691 = vmatpush1.msra.mxu0 0.0
        %1692 = vmatprep.subr.mxu0 0.0
        %1693 = vmatpush1.msra.mxu0 0.0
        %1694 = vmatprep.subr.mxu0 0.0
        %1695 = vmatpush1.msra.mxu0 0.0
        %1696 = vmatprep.subr.mxu0 0.0
        %1697 = vmatpush1.msra.mxu0 0.0
        %1698 = vmatprep.subr.mxu0 0.0
        %1699 = vmatpush1.msra.mxu0 0.0
        %1700 = vmatprep.subr.mxu0 0.0
        %1701 = vmatpush1.msra.mxu0 0.0
        %1702 = vmatprep.subr.mxu0 0.0
        %1703 = vmatpush1.msra.mxu0 0.0
        %1704 = vmatprep.subr.mxu0 0.0
        %1705 = vmatpush1.msra.mxu0 0.0
        %1706 = vmatprep.subr.mxu0 0.0
        %1707 = vmatpush1.msra.mxu0 0.0
        %1708 = vmatprep.subr.mxu0 0.0
        %1709 = vmatpush1.msra.mxu0 0.0
        %1710 = vmatprep.mubr.f32.mxu0 0.0
        %1711 = vmatmul.mubr.f32.gmra.mrb[0].mxu0 %v1641
        %v1712 = vpop.f32.mrb[0].mxu0
        %v1713 = vadd.f32 0.0, %v1712
        %v1714 = vpop.f32.mrb[0].mxu0
        %1715 = vmatprep.mubr.f32.mxu0 0.0
        %1716 = vmatmul.mubr.f32.gmra.mrb[0].mxu0 %v1644
        %v1717 = vpop.f32.mrb[0].mxu0
        %v1718 = vadd.f32 0.0, %v1717
        %v1719 = vpop.f32.mrb[0].mxu0
        %1720 = vdwg.mxu0
        %v1722 = vsel %vm607, %v1713, 0
        %v1725 = vsel %vm607, %v1718, 0
        %v1728 = vsel %vm607, %v1300, 0
        %v1731 = vsel %vm607, %v1305, 0
        %1733 = vmatprep.subr.mxu0 0.0
        %1734 = vmatpush1.xpose.msra.mxu0 %v1728
        %1735 = vmatprep.subr.mxu0 0.0
        %1736 = vmatpush1.xpose.msra.mxu0 %v1731
        %1737 = vmatprep.subr.mxu0 0.0
        %1738 = vmatpush1.xpose.msra.mxu0 0.0
        %1739 = vmatprep.subr.mxu0 0.0
        %1740 = vmatpush1.xpose.msra.mxu0 0.0
        %1741 = vmatprep.subr.mxu0 0.0
        %1742 = vmatpush1.xpose.msra.mxu0 0.0
        %1743 = vmatprep.subr.mxu0 0.0
        %1744 = vmatpush1.xpose.msra.mxu0 0.0
        %1745 = vmatprep.subr.mxu0 0.0
        %1746 = vmatpush1.xpose.msra.mxu0 0.0
        %1747 = vmatprep.subr.mxu0 0.0
        %1748 = vmatpush1.xpose.msra.mxu0 0.0
        %1749 = vmatprep.subr.mxu0 0.0
        %1750 = vmatpush1.xpose.msra.mxu0 0.0
        %1751 = vmatprep.subr.mxu0 0.0
        %1752 = vmatpush1.xpose.msra.mxu0 0.0
        %1753 = vmatprep.subr.mxu0 0.0
        %1754 = vmatpush1.xpose.msra.mxu0 0.0
        %1755 = vmatprep.subr.mxu0 0.0
        %1756 = vmatpush1.xpose.msra.mxu0 0.0
        %1757 = vmatprep.subr.mxu0 0.0
        %1758 = vmatpush1.xpose.msra.mxu0 0.0
        %1759 = vmatprep.subr.mxu0 0.0
        %1760 = vmatpush1.xpose.msra.mxu0 0.0
        %1761 = vmatprep.subr.mxu0 0.0
        %1762 = vmatpush1.xpose.msra.mxu0 0.0
        %1763 = vmatprep.subr.mxu0 0.0
        %1764 = vmatpush1.xpose.msra.mxu0 0.0
        %1765 = vmatprep.subr.mxu0 0.0
        %1766 = vmatpush1.xpose.msra.mxu0 0.0
        %1767 = vmatprep.subr.mxu0 0.0
        %1768 = vmatpush1.xpose.msra.mxu0 0.0
        %1769 = vmatprep.subr.mxu0 0.0
        %1770 = vmatpush1.xpose.msra.mxu0 0.0
        %1771 = vmatprep.subr.mxu0 0.0
        %1772 = vmatpush1.xpose.msra.mxu0 0.0
        %1773 = vmatprep.subr.mxu0 0.0
        %1774 = vmatpush1.xpose.msra.mxu0 0.0
        %1775 = vmatprep.subr.mxu0 0.0
        %1776 = vmatpush1.xpose.msra.mxu0 0.0
        %1777 = vmatprep.subr.mxu0 0.0
        %1778 = vmatpush1.xpose.msra.mxu0 0.0
        %1779 = vmatprep.subr.mxu0 0.0
        %1780 = vmatpush1.xpose.msra.mxu0 0.0
        %1781 = vmatprep.subr.mxu0 0.0
        %1782 = vmatpush1.xpose.msra.mxu0 0.0
        %1783 = vmatprep.subr.mxu0 0.0
        %1784 = vmatpush1.xpose.msra.mxu0 0.0
        %1785 = vmatprep.subr.mxu0 0.0
        %1786 = vmatpush1.xpose.msra.mxu0 0.0
        %1787 = vmatprep.subr.mxu0 0.0
        %1788 = vmatpush1.xpose.msra.mxu0 0.0
        %1789 = vmatprep.subr.mxu0 0.0
        %1790 = vmatpush1.xpose.msra.mxu0 0.0
        %1791 = vmatprep.subr.mxu0 0.0
        %1792 = vmatpush1.xpose.msra.mxu0 0.0
        %1793 = vmatprep.subr.mxu0 0.0
        %1794 = vmatpush1.xpose.msra.mxu0 0.0
        %1795 = vmatprep.subr.mxu0 0.0
        %1796 = vmatpush1.xpose.msra.mxu0 0.0
        %1797 = vmatprep.mubr.f32.mxu0 0.0
        %1798 = vmatmul.mubr.f32.gmra.mrb[0].mxu0 %v1722
        %v1799 = vpop.f32.mrb[0].mxu0
        %v1800 = vadd.f32 0.0, %v1799
        %v1801 = vpop.f32.mrb[0].mxu0
        %1802 = vmatprep.mubr.f32.mxu0 0.0
        %1803 = vmatmul.mubr.f32.gmra.mrb[0].mxu0 %v1725
        %v1804 = vpop.f32.mrb[0].mxu0
        %v1805 = vadd.f32 0.0, %v1804
        %v1806 = vpop.f32.mrb[0].mxu0
        %1807 = vdwg.mxu0
        %v1808 = vsel %vm1468, %v1800, -inf
        %1809 = vmax.xlane.f32.xlu0 %v1808
        %v1810 = vpop.xlane.xlu0 %1809
        %v1811 = vsel %vm1468, %v1805, -inf
        %1812 = vmax.xlane.f32.xlu0 %v1811
        %v1813 = vpop.xlane.xlu0 %1812
        %v1814 = vmax.f32 %v1810, %v1813
        %v1815 = vrot.slane %v1814, 4
        %v1816 = vmax.f32 %v1814, %v1815
        %v1817 = vrot.slane %v1816, 2
        %v1818 = vmax.f32 %v1816, %v1817
        %v1819 = vrot.slane %v1818, 1
        %v1820 = vmax.f32 %v1818, %v1819
        %v1821 = vsub.f32 %v1800, %v1820
        %v1822 = vsub.f32 %v1805, %v1820
        %v1823 = vmul.f32 %v1821, 1.442695
        %v1824 = vpow.pop %v1823
        %v1825 = vmul.f32 %v1822, 1.442695
        %v1826 = vpow.pop %v1825
        %v1827 = vsel %vm1468, %v1824, 0.0
        %1828 = vadd.xlane.f32.xlu0 %v1827
        %v1829 = vpop.xlane.xlu0 %1828
        %v1830 = vsel %vm1468, %v1826, 0.0
        %1831 = vadd.xlane.f32.xlu0 %v1830
        %v1832 = vpop.xlane.xlu0 %1831
        %v1833 = vadd.f32 %v1829, 0.0001
        %v1834 = vadd.f32 %v1832, 0.0001
        %v1835 = vrcp.pop %v1833
        %v1836 = vrcp.pop %v1834
        %v1837 = vmul.f32 %v1824, %v1835
        %v1838 = vmul.f32 %v1826, %v1836
        %v1839 = vsel %vm1468, %v1837, 0.0
        %v1840 = vsel %vm1468, %v1838, 0.0
        %v1841 = vadd.f32 %v1839, %v1840
        %v1842 = vrot.slane %v1841, 4
        %v1843 = vadd.f32 %v1841, %v1842
        %v1844 = vrot.slane %v1843, 2
        %v1845 = vadd.f32 %v1843, %v1844
        %v1846 = vrot.slane %v1845, 1
        %v1847 = vadd.f32 %v1845, %v1846
        %v1848 = vadd.f32 %v1847, 0.0001
        %v1849 = vrcp.pop %v1848
        %v1850 = vmul.f32 %v1837, %v1849
        %v1851 = vmul.f32 %v1838, %v1849
        %v1852 = vsel %vm1468, %v1850, 0.0
        %1853 = vadd.xlane.f32.xlu0 %v1852
        %v1854 = vpop.xlane.xlu0 %1853
        %v1855 = vsel %vm1468, %v1851, 0.0
        %1856 = vadd.xlane.f32.xlu0 %v1855
        %v1857 = vpop.xlane.xlu0 %1856
        %v1858 = vadd.f32 %v1854, 0.0001
        %v1859 = vadd.f32 %v1857, 0.0001
        %v1860 = vrcp.pop %v1858
        %v1861 = vrcp.pop %v1859
        %v1862 = vmul.f32 %v1850, %v1860
        %v1863 = vmul.f32 %v1851, %v1861
        %v1864 = vsel %vm1468, %v1862, 0.0
        %v1865 = vsel %vm1468, %v1863, 0.0
        %v1866 = vadd.f32 %v1864, %v1865
        %v1867 = vrot.slane %v1866, 4
        %v1868 = vadd.f32 %v1866, %v1867
        %v1869 = vrot.slane %v1868, 2
        %v1870 = vadd.f32 %v1868, %v1869
        %v1871 = vrot.slane %v1870, 1
        %v1872 = vadd.f32 %v1870, %v1871
        %v1873 = vadd.f32 %v1872, 0.0001
        %v1874 = vrcp.pop %v1873
        %v1875 = vmul.f32 %v1862, %v1874
        %v1876 = vmul.f32 %v1863, %v1874
        %v1877 = vsel %vm1468, %v1875, 0.0
        %1878 = vadd.xlane.f32.xlu0 %v1877
        %v1879 = vpop.xlane.xlu0 %1878
        %v1880 = vsel %vm1468, %v1876, 0.0
        %1881 = vadd.xlane.f32.xlu0 %v1880
        %v1882 = vpop.xlane.xlu0 %1881
        %v1883 = vadd.f32 %v1879, 0.0001
        %v1884 = vadd.f32 %v1882, 0.0001
        %v1885 = vrcp.pop %v1883
        %v1886 = vrcp.pop %v1884
        %v1887 = vmul.f32 %v1875, %v1885
        %v1888 = vmul.f32 %v1876, %v1886
        %v1889 = vsel %vm1468, %v1887, 0.0
        %v1890 = vsel %vm1468, %v1888, 0.0
        %v1891 = vadd.f32 %v1889, %v1890
        %v1892 = vrot.slane %v1891, 4
        %v1893 = vadd.f32 %v1891, %v1892
        %v1894 = vrot.slane %v1893, 2
        %v1895 = vadd.f32 %v1893, %v1894
        %v1896 = vrot.slane %v1895, 1
        %v1897 = vadd.f32 %v1895, %v1896
        %v1898 = vadd.f32 %v1897, 0.0001
        %v1899 = vrcp.pop %v1898
        %v1900 = vmul.f32 %v1887, %v1899
        %v1901 = vmul.f32 %v1888, %v1899
        %v1902 = vsel %vm1468, %v1900, 0.0
        %1903 = vadd.xlane.f32.xlu0 %v1902
        %v1904 = vpop.xlane.xlu0 %1903
        %v1905 = vsel %vm1468, %v1901, 0.0
        %1906 = vadd.xlane.f32.xlu0 %v1905
        %v1907 = vpop.xlane.xlu0 %1906
        %v1908 = vadd.f32 %v1904, 0.0001
        %v1909 = vadd.f32 %v1907, 0.0001
        %v1910 = vrcp.pop %v1908
        %v1911 = vrcp.pop %v1909
        %v1912 = vmul.f32 %v1900, %v1910
        %v1913 = vmul.f32 %v1901, %v1911
        %v1914 = vsel %vm1468, %v1912, 0.0
        %v1915 = vsel %vm1468, %v1913, 0.0
        %v1916 = vadd.f32 %v1914, %v1915
        %v1917 = vrot.slane %v1916, 4
        %v1918 = vadd.f32 %v1916, %v1917
        %v1919 = vrot.slane %v1918, 2
        %v1920 = vadd.f32 %v1918, %v1919
        %v1921 = vrot.slane %v1920, 1
        %v1922 = vadd.f32 %v1920, %v1921
        %v1923 = vadd.f32 %v1922, 0.0001
        %v1924 = vrcp.pop %v1923
        %v1925 = vmul.f32 %v1912, %v1924
        %v1926 = vmul.f32 %v1913, %v1924
        %v1927 = vsel %vm1468, %v1925, 0.0
        %1928 = vadd.xlane.f32.xlu0 %v1927
        %v1929 = vpop.xlane.xlu0 %1928
        %v1930 = vsel %vm1468, %v1926, 0.0
        %1931 = vadd.xlane.f32.xlu0 %v1930
        %v1932 = vpop.xlane.xlu0 %1931
        %v1933 = vadd.f32 %v1929, 0.0001
        %v1934 = vadd.f32 %v1932, 0.0001
        %v1935 = vrcp.pop %v1933
        %v1936 = vrcp.pop %v1934
        %v1937 = vmul.f32 %v1925, %v1935
        %v1938 = vmul.f32 %v1926, %v1936
        %v1939 = vsel %vm1468, %v1937, 0.0
        %v1940 = vsel %vm1468, %v1938, 0.0
        %v1941 = vadd.f32 %v1939, %v1940
        %v1942 = vrot.slane %v1941, 4
        %v1943 = vadd.f32 %v1941, %v1942
        %v1944 = vrot.slane %v1943, 2
        %v1945 = vadd.f32 %v1943, %v1944
        %v1946 = vrot.slane %v1945, 1
        %v1947 = vadd.f32 %v1945, %v1946
        %v1948 = vadd.f32 %v1947, 0.0001
        %v1949 = vrcp.pop %v1948
        %v1950 = vmul.f32 %v1937, %v1949
        %v1951 = vmul.f32 %v1938, %v1949
        %v1952 = vsel %vm1468, %v1950, 0.0
        %1953 = vadd.xlane.f32.xlu0 %v1952
        %v1954 = vpop.xlane.xlu0 %1953
        %v1955 = vsel %vm1468, %v1951, 0.0
        %1956 = vadd.xlane.f32.xlu0 %v1955
        %v1957 = vpop.xlane.xlu0 %1956
        %v1958 = vadd.f32 %v1954, 0.0001
        %v1959 = vadd.f32 %v1957, 0.0001
        %v1960 = vrcp.pop %v1958
        %v1961 = vrcp.pop %v1959
        %v1962 = vmul.f32 %v1950, %v1960
        %v1963 = vmul.f32 %v1951, %v1961
        %v1964 = vsel %vm1468, %v1962, 0.0
        %v1965 = vsel %vm1468, %v1963, 0.0
        %v1966 = vadd.f32 %v1964, %v1965
        %v1967 = vrot.slane %v1966, 4
        %v1968 = vadd.f32 %v1966, %v1967
        %v1969 = vrot.slane %v1968, 2
        %v1970 = vadd.f32 %v1968, %v1969
        %v1971 = vrot.slane %v1970, 1
        %v1972 = vadd.f32 %v1970, %v1971
        %v1973 = vadd.f32 %v1972, 0.0001
        %v1974 = vrcp.pop %v1973
        %v1975 = vmul.f32 %v1962, %v1974
        %v1976 = vmul.f32 %v1963, %v1974
        %1977 = vst.msk [vmem:[%s574] sm:$0xff] %vm1468, %v1975
        %1978 = vst.msk [vmem:[%s574 + $0x8] sm:$0xff] %vm1468, %v1976
        %v1979 = vld [vmem:[%s11] sm:$0xff]
        %v1980 = vld [vmem:[%s11 + $0x8] sm:$0xff]
        %v1981 = vld [vmem:[%s11 + $0x10] sm:$0xff]
        %v1982 = vld [vmem:[%s11 + $0x18] sm:$0xff]
        %v1983 = vld [vmem:[%s11 + $0x20] sm:$0xff]
        %v1984 = vld [vmem:[%s11 + $0x28] sm:$0xff]
        %v1985 = vld [vmem:[%s11 + $0x30] sm:$0xff]
        %v1986 = vld [vmem:[%s11 + $0x38] sm:$0xff]
        %v1987 = vld [vmem:[%s11 + $0x40] sm:$0xff]
        %v1988 = vld [vmem:[%s11 + $0x48] sm:$0xff]
        %v1989 = vld [vmem:[%s11 + $0x50] sm:$0xff]
        %v1990 = vld [vmem:[%s11 + $0x58] sm:$0xff]
        %v1991 = vld [vmem:[%s11 + $0x60] sm:$0xff]
        %v1992 = vld [vmem:[%s11 + $0x68] sm:$0xff]
        %v1993 = vld [vmem:[%s11 + $0x70] sm:$0xff]
        %v1994 = vld [vmem:[%s11 + $0x78] sm:$0xff]
        %v1995 = vld [vmem:[%s11 + $0x80] sm:$0xff]
        %v1996 = vld [vmem:[%s11 + $0x88] sm:$0xff]
        %v1997 = vld [vmem:[%s11 + $0x90] sm:$0xff]
        %v1998 = vld [vmem:[%s11 + $0x98] sm:$0xff]
        %v1999 = vld [vmem:[%s11 + $0xa0] sm:$0xff]
        %v2000 = vld [vmem:[%s11 + $0xa8] sm:$0xff]
        %v2001 = vld [vmem:[%s11 + $0xb0] sm:$0xff]
        %v2002 = vld [vmem:[%s11 + $0xb8] sm:$0xff]
        %v2003 = vld [vmem:[%s11 + $0xc0] sm:$0xff]
        %v2004 = vld [vmem:[%s11 + $0xc8] sm:$0xff]
        %v2005 = vld [vmem:[%s11 + $0xd0] sm:$0xff]
        %v2006 = vld [vmem:[%s11 + $0xd8] sm:$0xff]
        %v2007 = vld [vmem:[%s11 + $0xe0] sm:$0xff]
        %v2008 = vld [vmem:[%s11 + $0xe8] sm:$0xff]
        %v2009 = vld [vmem:[%s11 + $0xf0] sm:$0xff]
        %v2010 = vld [vmem:[%s11 + $0xf8] sm:$0xff]
        %v2011 = vld [vmem:[%s12] sm:$0x1]
        %v2012 = vsel %vm607, %v705, 0.0
        %v2013 = vsel %vm607, %v706, 0.0
        %v2014 = vadd.f32 %v2012, %v2013
        %v2015 = vrot.slane %v2014, 4
        %v2016 = vadd.f32 %v2014, %v2015
        %v2017 = vrot.slane %v2016, 2
        %v2018 = vadd.f32 %v2016, %v2017
        %v2019 = vrot.slane %v2018, 1
        %v2020 = vadd.f32 %v2018, %v2019
        %v2022 = vsel %vm607, %v2020, 0
        %2024 = vmatprep.subr.mxu0 0.0
        %2025 = vmatpush1.msra.mxu0 %v1979
        %2026 = vmatprep.subr.mxu0 0.0
        %2027 = vmatpush1.msra.mxu0 %v1980
        %2028 = vmatprep.subr.mxu0 0.0
        %2029 = vmatpush1.msra.mxu0 %v1981
        %2030 = vmatprep.subr.mxu0 0.0
        %2031 = vmatpush1.msra.mxu0 %v1982
        %2032 = vmatprep.subr.mxu0 0.0
        %2033 = vmatpush1.msra.mxu0 0.0
        %2034 = vmatprep.subr.mxu0 0.0
        %2035 = vmatpush1.msra.mxu0 0.0
        %2036 = vmatprep.subr.mxu0 0.0
        %2037 = vmatpush1.msra.mxu0 0.0
        %2038 = vmatprep.subr.mxu0 0.0
        %2039 = vmatpush1.msra.mxu0 0.0
        %2040 = vmatprep.subr.mxu0 0.0
        %2041 = vmatpush1.msra.mxu0 0.0
        %2042 = vmatprep.subr.mxu0 0.0
        %2043 = vmatpush1.msra.mxu0 0.0
        %2044 = vmatprep.subr.mxu0 0.0
        %2045 = vmatpush1.msra.mxu0 0.0
        %2046 = vmatprep.subr.mxu0 0.0
        %2047 = vmatpush1.msra.mxu0 0.0
        %2048 = vmatprep.subr.mxu0 0.0
        %2049 = vmatpush1.msra.mxu0 0.0
        %2050 = vmatprep.subr.mxu0 0.0
        %2051 = vmatpush1.msra.mxu0 0.0
        %2052 = vmatprep.subr.mxu0 0.0
        %2053 = vmatpush1.msra.mxu0 0.0
        %2054 = vmatprep.subr.mxu0 0.0
        %2055 = vmatpush1.msra.mxu0 0.0
        %2056 = vmatprep.subr.mxu0 0.0
        %2057 = vmatpush1.msra.mxu0 0.0
        %2058 = vmatprep.subr.mxu0 0.0
        %2059 = vmatpush1.msra.mxu0 0.0
        %2060 = vmatprep.subr.mxu0 0.0
        %2061 = vmatpush1.msra.mxu0 0.0
        %2062 = vmatprep.subr.mxu0 0.0
        %2063 = vmatpush1.msra.mxu0 0.0
        %2064 = vmatprep.subr.mxu0 0.0
        %2065 = vmatpush1.msra.mxu0 0.0
        %2066 = vmatprep.subr.mxu0 0.0
        %2067 = vmatpush1.msra.mxu0 0.0
        %2068 = vmatprep.subr.mxu0 0.0
        %2069 = vmatpush1.msra.mxu0 0.0
        %2070 = vmatprep.subr.mxu0 0.0
        %2071 = vmatpush1.msra.mxu0 0.0
        %2072 = vmatprep.subr.mxu0 0.0
        %2073 = vmatpush1.msra.mxu0 0.0
        %2074 = vmatprep.subr.mxu0 0.0
        %2075 = vmatpush1.msra.mxu0 0.0
        %2076 = vmatprep.subr.mxu0 0.0
        %2077 = vmatpush1.msra.mxu0 0.0
        %2078 = vmatprep.subr.mxu0 0.0
        %2079 = vmatpush1.msra.mxu0 0.0
        %2080 = vmatprep.subr.mxu0 0.0
        %2081 = vmatpush1.msra.mxu0 0.0
        %2082 = vmatprep.subr.mxu0 0.0
        %2083 = vmatpush1.msra.mxu0 0.0
        %2084 = vmatprep.subr.mxu0 0.0
        %2085 = vmatpush1.msra.mxu0 0.0
        %2086 = vmatprep.subr.mxu0 0.0
        %2087 = vmatpush1.msra.mxu0 0.0
        %2088 = vmatprep.mubr.f32.mxu0 0.0
        %2089 = vmatmul.mubr.f32.gmra.mrb[0].mxu0 %v2022
        %v2090 = vpop.f32.mrb[0].mxu0
        %v2091 = vadd.f32 0.0, %v2090
        %v2092 = vpop.f32.mrb[0].mxu0
        %2093 = vdwg.mxu0
        %v2094 = vadd.f32 %v2011, %v2091
        %v2095 = vsel %vm607, %v896, 0.0
        %v2096 = vsel %vm607, %v901, 0.0
        %v2097 = vadd.f32 %v2095, %v2096
        %v2098 = vrot.slane %v2097, 4
        %v2099 = vadd.f32 %v2097, %v2098
        %v2100 = vrot.slane %v2099, 2
        %v2101 = vadd.f32 %v2099, %v2100
        %v2102 = vrot.slane %v2101, 1
        %v2103 = vadd.f32 %v2101, %v2102
        %v2105 = vsel %vm607, %v2103, 0
        %2107 = vmatprep.subr.mxu0 0.0
        %2108 = vmatpush1.msra.mxu0 %v1983
        %2109 = vmatprep.subr.mxu0 0.0
        %2110 = vmatpush1.msra.mxu0 %v1984
        %2111 = vmatprep.subr.mxu0 0.0
        %2112 = vmatpush1.msra.mxu0 %v1985
        %2113 = vmatprep.subr.mxu0 0.0
        %2114 = vmatpush1.msra.mxu0 %v1986
        %2115 = vmatprep.subr.mxu0 0.0
        %2116 = vmatpush1.msra.mxu0 0.0
        %2117 = vmatprep.subr.mxu0 0.0
        %2118 = vmatpush1.msra.mxu0 0.0
        %2119 = vmatprep.subr.mxu0 0.0
        %2120 = vmatpush1.msra.mxu0 0.0
        %2121 = vmatprep.subr.mxu0 0.0
        %2122 = vmatpush1.msra.mxu0 0.0
        %2123 = vmatprep.subr.mxu0 0.0
        %2124 = vmatpush1.msra.mxu0 0.0
        %2125 = vmatprep.subr.mxu0 0.0
        %2126 = vmatpush1.msra.mxu0 0.0
        %2127 = vmatprep.subr.mxu0 0.0
        %2128 = vmatpush1.msra.mxu0 0.0
        %2129 = vmatprep.subr.mxu0 0.0
        %2130 = vmatpush1.msra.mxu0 0.0
        %2131 = vmatprep.subr.mxu0 0.0
        %2132 = vmatpush1.msra.mxu0 0.0
        %2133 = vmatprep.subr.mxu0 0.0
        %2134 = vmatpush1.msra.mxu0 0.0
        %2135 = vmatprep.subr.mxu0 0.0
        %2136 = vmatpush1.msra.mxu0 0.0
        %2137 = vmatprep.subr.mxu0 0.0
        %2138 = vmatpush1.msra.mxu0 0.0
        %2139 = vmatprep.subr.mxu0 0.0
        %2140 = vmatpush1.msra.mxu0 0.0
        %2141 = vmatprep.subr.mxu0 0.0
        %2142 = vmatpush1.msra.mxu0 0.0
        %2143 = vmatprep.subr.mxu0 0.0
        %2144 = vmatpush1.msra.mxu0 0.0
        %2145 = vmatprep.subr.mxu0 0.0
        %2146 = vmatpush1.msra.mxu0 0.0
        %2147 = vmatprep.subr.mxu0 0.0
        %2148 = vmatpush1.msra.mxu0 0.0
        %2149 = vmatprep.subr.mxu0 0.0
        %2150 = vmatpush1.msra.mxu0 0.0
        %2151 = vmatprep.subr.mxu0 0.0
        %2152 = vmatpush1.msra.mxu0 0.0
        %2153 = vmatprep.subr.mxu0 0.0
        %2154 = vmatpush1.msra.mxu0 0.0
        %2155 = vmatprep.subr.mxu0 0.0
        %2156 = vmatpush1.msra.mxu0 0.0
        %2157 = vmatprep.subr.mxu0 0.0
        %2158 = vmatpush1.msra.mxu0 0.0
        %2159 = vmatprep.subr.mxu0 0.0
        %2160 = vmatpush1.msra.mxu0 0.0
        %2161 = vmatprep.subr.mxu0 0.0
        %2162 = vmatpush1.msra.mxu0 0.0
        %2163 = vmatprep.subr.mxu0 0.0
        %2164 = vmatpush1.msra.mxu0 0.0
        %2165 = vmatprep.subr.mxu0 0.0
        %2166 = vmatpush1.msra.mxu0 0.0
        %2167 = vmatprep.subr.mxu0 0.0
        %2168 = vmatpush1.msra.mxu0 0.0
        %2169 = vmatprep.subr.mxu0 0.0
        %2170 = vmatpush1.msra.mxu0 0.0
        %2171 = vmatprep.mubr.f32.mxu0 0.0
        %2172 = vmatmul.mubr.f32.gmra.mrb[0].mxu0 %v2105
        %v2173 = vpop.f32.mrb[0].mxu0
        %v2174 = vadd.f32 0.0, %v2173
        %v2175 = vpop.f32.mrb[0].mxu0
        %2176 = vdwg.mxu0
        %v2177 = vadd.f32 %v2094, %v2174
        %v2178 = vsel %vm607, %v1093, 0.0
        %v2179 = vsel %vm607, %v1098, 0.0
        %v2180 = vadd.f32 %v2178, %v2179
        %v2181 = vrot.slane %v2180, 4
        %v2182 = vadd.f32 %v2180, %v2181
        %v2183 = vrot.slane %v2182, 2
        %v2184 = vadd.f32 %v2182, %v2183
        %v2185 = vrot.slane %v2184, 1
        %v2186 = vadd.f32 %v2184, %v2185
        %v2188 = vsel %vm607, %v2186, 0
        %2190 = vmatprep.subr.mxu0 0.0
        %2191 = vmatpush1.msra.mxu0 %v1987
        %2192 = vmatprep.subr.mxu0 0.0
        %2193 = vmatpush1.msra.mxu0 %v1988
        %2194 = vmatprep.subr.mxu0 0.0
        %2195 = vmatpush1.msra.mxu0 %v1989
        %2196 = vmatprep.subr.mxu0 0.0
        %2197 = vmatpush1.msra.mxu0 %v1990
        %2198 = vmatprep.subr.mxu0 0.0
        %2199 = vmatpush1.msra.mxu0 0.0
        %2200 = vmatprep.subr.mxu0 0.0
        %2201 = vmatpush1.msra.mxu0 0.0
        %2202 = vmatprep.subr.mxu0 0.0
        %2203 = vmatpush1.msra.mxu0 0.0
        %2204 = vmatprep.subr.mxu0 0.0
        %2205 = vmatpush1.msra.mxu0 0.0
        %2206 = vmatprep.subr.mxu0 0.0
        %2207 = vmatpush1.msra.mxu0 0.0
        %2208 = vmatprep.subr.mxu0 0.0
        %2209 = vmatpush1.msra.mxu0 0.0
        %2210 = vmatprep.subr.mxu0 0.0
        %2211 = vmatpush1.msra.mxu0 0.0
        %2212 = vmatprep.subr.mxu0 0.0
        %2213 = vmatpush1.msra.mxu0 0.0
        %2214 = vmatprep.subr.mxu0 0.0
        %2215 = vmatpush1.msra.mxu0 0.0
        %2216 = vmatprep.subr.mxu0 0.0
        %2217 = vmatpush1.msra.mxu0 0.0
        %2218 = vmatprep.subr.mxu0 0.0
        %2219 = vmatpush1.msra.mxu0 0.0
        %2220 = vmatprep.subr.mxu0 0.0
        %2221 = vmatpush1.msra.mxu0 0.0
        %2222 = vmatprep.subr.mxu0 0.0
        %2223 = vmatpush1.msra.mxu0 0.0
        %2224 = vmatprep.subr.mxu0 0.0
        %2225 = vmatpush1.msra.mxu0 0.0
        %2226 = vmatprep.subr.mxu0 0.0
        %2227 = vmatpush1.msra.mxu0 0.0
        %2228 = vmatprep.subr.mxu0 0.0
        %2229 = vmatpush1.msra.mxu0 0.0
        %2230 = vmatprep.subr.mxu0 0.0
        %2231 = vmatpush1.msra.mxu0 0.0
        %2232 = vmatprep.subr.mxu0 0.0
        %2233 = vmatpush1.msra.mxu0 0.0
        %2234 = vmatprep.subr.mxu0 0.0
        %2235 = vmatpush1.msra.mxu0 0.0
        %2236 = vmatprep.subr.mxu0 0.0
        %2237 = vmatpush1.msra.mxu0 0.0
        %2238 = vmatprep.subr.mxu0 0.0
        %2239 = vmatpush1.msra.mxu0 0.0
        %2240 = vmatprep.subr.mxu0 0.0
        %2241 = vmatpush1.msra.mxu0 0.0
        %2242 = vmatprep.subr.mxu0 0.0
        %2243 = vmatpush1.msra.mxu0 0.0
        %2244 = vmatprep.subr.mxu0 0.0
        %2245 = vmatpush1.msra.mxu0 0.0
        %2246 = vmatprep.subr.mxu0 0.0
        %2247 = vmatpush1.msra.mxu0 0.0
        %2248 = vmatprep.subr.mxu0 0.0
        %2249 = vmatpush1.msra.mxu0 0.0
        %2250 = vmatprep.subr.mxu0 0.0
        %2251 = vmatpush1.msra.mxu0 0.0
        %2252 = vmatprep.subr.mxu0 0.0
        %2253 = vmatpush1.msra.mxu0 0.0
        %2254 = vmatprep.mubr.f32.mxu0 0.0
        %2255 = vmatmul.mubr.f32.gmra.mrb[0].mxu0 %v2188
        %v2256 = vpop.f32.mrb[0].mxu0
        %v2257 = vadd.f32 0.0, %v2256
        %v2258 = vpop.f32.mrb[0].mxu0
        %2259 = vdwg.mxu0
        %v2260 = vadd.f32 %v2177, %v2257
        %v2261 = vsel %vm607, %v1290, 0.0
        %v2262 = vsel %vm607, %v1295, 0.0
        %v2263 = vadd.f32 %v2261, %v2262
        %v2264 = vrot.slane %v2263, 4
        %v2265 = vadd.f32 %v2263, %v2264
        %v2266 = vrot.slane %v2265, 2
        %v2267 = vadd.f32 %v2265, %v2266
        %v2268 = vrot.slane %v2267, 1
        %v2269 = vadd.f32 %v2267, %v2268
        %v2271 = vsel %vm607, %v2269, 0
        %2273 = vmatprep.subr.mxu0 0.0
        %2274 = vmatpush1.msra.mxu0 %v1991
        %2275 = vmatprep.subr.mxu0 0.0
        %2276 = vmatpush1.msra.mxu0 %v1992
        %2277 = vmatprep.subr.mxu0 0.0
        %2278 = vmatpush1.msra.mxu0 %v1993
        %2279 = vmatprep.subr.mxu0 0.0
        %2280 = vmatpush1.msra.mxu0 %v1994
        %2281 = vmatprep.subr.mxu0 0.0
        %2282 = vmatpush1.msra.mxu0 0.0
        %2283 = vmatprep.subr.mxu0 0.0
        %2284 = vmatpush1.msra.mxu0 0.0
        %2285 = vmatprep.subr.mxu0 0.0
        %2286 = vmatpush1.msra.mxu0 0.0
        %2287 = vmatprep.subr.mxu0 0.0
        %2288 = vmatpush1.msra.mxu0 0.0
        %2289 = vmatprep.subr.mxu0 0.0
        %2290 = vmatpush1.msra.mxu0 0.0
        %2291 = vmatprep.subr.mxu0 0.0
        %2292 = vmatpush1.msra.mxu0 0.0
        %2293 = vmatprep.subr.mxu0 0.0
        %2294 = vmatpush1.msra.mxu0 0.0
        %2295 = vmatprep.subr.mxu0 0.0
        %2296 = vmatpush1.msra.mxu0 0.0
        %2297 = vmatprep.subr.mxu0 0.0
        %2298 = vmatpush1.msra.mxu0 0.0
        %2299 = vmatprep.subr.mxu0 0.0
        %2300 = vmatpush1.msra.mxu0 0.0
        %2301 = vmatprep.subr.mxu0 0.0
        %2302 = vmatpush1.msra.mxu0 0.0
        %2303 = vmatprep.subr.mxu0 0.0
        %2304 = vmatpush1.msra.mxu0 0.0
        %2305 = vmatprep.subr.mxu0 0.0
        %2306 = vmatpush1.msra.mxu0 0.0
        %2307 = vmatprep.subr.mxu0 0.0
        %2308 = vmatpush1.msra.mxu0 0.0
        %2309 = vmatprep.subr.mxu0 0.0
        %2310 = vmatpush1.msra.mxu0 0.0
        %2311 = vmatprep.subr.mxu0 0.0
        %2312 = vmatpush1.msra.mxu0 0.0
        %2313 = vmatprep.subr.mxu0 0.0
        %2314 = vmatpush1.msra.mxu0 0.0
        %2315 = vmatprep.subr.mxu0 0.0
        %2316 = vmatpush1.msra.mxu0 0.0
        %2317 = vmatprep.subr.mxu0 0.0
        %2318 = vmatpush1.msra.mxu0 0.0
        %2319 = vmatprep.subr.mxu0 0.0
        %2320 = vmatpush1.msra.mxu0 0.0
        %2321 = vmatprep.subr.mxu0 0.0
        %2322 = vmatpush1.msra.mxu0 0.0
        %2323 = vmatprep.subr.mxu0 0.0
        %2324 = vmatpush1.msra.mxu0 0.0
        %2325 = vmatprep.subr.mxu0 0.0
        %2326 = vmatpush1.msra.mxu0 0.0
        %2327 = vmatprep.subr.mxu0 0.0
        %2328 = vmatpush1.msra.mxu0 0.0
        %2329 = vmatprep.subr.mxu0 0.0
        %2330 = vmatpush1.msra.mxu0 0.0
        %2331 = vmatprep.subr.mxu0 0.0
        %2332 = vmatpush1.msra.mxu0 0.0
        %2333 = vmatprep.subr.mxu0 0.0
        %2334 = vmatpush1.msra.mxu0 0.0
        %2335 = vmatprep.subr.mxu0 0.0
        %2336 = vmatpush1.msra.mxu0 0.0
        %2337 = vmatprep.mubr.f32.mxu0 0.0
        %2338 = vmatmul.mubr.f32.gmra.mrb[0].mxu0 %v2271
        %v2339 = vpop.f32.mrb[0].mxu0
        %v2340 = vadd.f32 0.0, %v2339
        %v2341 = vpop.f32.mrb[0].mxu0
        %2342 = vdwg.mxu0
        %v2343 = vadd.f32 %v2260, %v2340
        %v2344 = vsel %vm607, %v707, -inf
        %v2345 = vsel %vm607, %v708, -inf
        %v2346 = vmax.f32 %v2344, %v2345
        %v2347 = vrot.slane %v2346, 4
        %v2348 = vmax.f32 %v2346, %v2347
        %v2349 = vrot.slane %v2348, 2
        %v2350 = vmax.f32 %v2348, %v2349
        %v2351 = vrot.slane %v2350, 1
        %v2352 = vmax.f32 %v2350, %v2351
        %v2354 = vsel %vm607, %v2352, 0
        %2356 = vmatprep.subr.mxu0 0.0
        %2357 = vmatpush1.msra.mxu0 %v1995
        %2358 = vmatprep.subr.mxu0 0.0
        %2359 = vmatpush1.msra.mxu0 %v1996
        %2360 = vmatprep.subr.mxu0 0.0
        %2361 = vmatpush1.msra.mxu0 %v1997
        %2362 = vmatprep.subr.mxu0 0.0
        %2363 = vmatpush1.msra.mxu0 %v1998
        %2364 = vmatprep.subr.mxu0 0.0
        %2365 = vmatpush1.msra.mxu0 0.0
        %2366 = vmatprep.subr.mxu0 0.0
        %2367 = vmatpush1.msra.mxu0 0.0
        %2368 = vmatprep.subr.mxu0 0.0
        %2369 = vmatpush1.msra.mxu0 0.0
        %2370 = vmatprep.subr.mxu0 0.0
        %2371 = vmatpush1.msra.mxu0 0.0
        %2372 = vmatprep.subr.mxu0 0.0
        %2373 = vmatpush1.msra.mxu0 0.0
        %2374 = vmatprep.subr.mxu0 0.0
        %2375 = vmatpush1.msra.mxu0 0.0
        %2376 = vmatprep.subr.mxu0 0.0
        %2377 = vmatpush1.msra.mxu0 0.0
        %2378 = vmatprep.subr.mxu0 0.0
        %2379 = vmatpush1.msra.mxu0 0.0
        %2380 = vmatprep.subr.mxu0 0.0
        %2381 = vmatpush1.msra.mxu0 0.0
        %2382 = vmatprep.subr.mxu0 0.0
        %2383 = vmatpush1.msra.mxu0 0.0
        %2384 = vmatprep.subr.mxu0 0.0
        %2385 = vmatpush1.msra.mxu0 0.0
        %2386 = vmatprep.subr.mxu0 0.0
        %2387 = vmatpush1.msra.mxu0 0.0
        %2388 = vmatprep.subr.mxu0 0.0
        %2389 = vmatpush1.msra.mxu0 0.0
        %2390 = vmatprep.subr.mxu0 0.0
        %2391 = vmatpush1.msra.mxu0 0.0
        %2392 = vmatprep.subr.mxu0 0.0
        %2393 = vmatpush1.msra.mxu0 0.0
        %2394 = vmatprep.subr.mxu0 0.0
        %2395 = vmatpush1.msra.mxu0 0.0
        %2396 = vmatprep.subr.mxu0 0.0
        %2397 = vmatpush1.msra.mxu0 0.0
        %2398 = vmatprep.subr.mxu0 0.0
        %2399 = vmatpush1.msra.mxu0 0.0
        %2400 = vmatprep.subr.mxu0 0.0
        %2401 = vmatpush1.msra.mxu0 0.0
        %2402 = vmatprep.subr.mxu0 0.0
        %2403 = vmatpush1.msra.mxu0 0.0
        %2404 = vmatprep.subr.mxu0 0.0
        %2405 = vmatpush1.msra.mxu0 0.0
        %2406 = vmatprep.subr.mxu0 0.0
        %2407 = vmatpush1.msra.mxu0 0.0
        %2408 = vmatprep.subr.mxu0 0.0
        %2409 = vmatpush1.msra.mxu0 0.0
        %2410 = vmatprep.subr.mxu0 0.0
        %2411 = vmatpush1.msra.mxu0 0.0
        %2412 = vmatprep.subr.mxu0 0.0
        %2413 = vmatpush1.msra.mxu0 0.0
        %2414 = vmatprep.subr.mxu0 0.0
        %2415 = vmatpush1.msra.mxu0 0.0
        %2416 = vmatprep.subr.mxu0 0.0
        %2417 = vmatpush1.msra.mxu0 0.0
        %2418 = vmatprep.subr.mxu0 0.0
        %2419 = vmatpush1.msra.mxu0 0.0
        %2420 = vmatprep.mubr.f32.mxu0 0.0
        %2421 = vmatmul.mubr.f32.gmra.mrb[0].mxu0 %v2354
        %v2422 = vpop.f32.mrb[0].mxu0
        %v2423 = vadd.f32 0.0, %v2422
        %v2424 = vpop.f32.mrb[0].mxu0
        %2425 = vdwg.mxu0
        %v2426 = vadd.f32 %v2343, %v2423
        %v2427 = vsel %vm607, %v906, -inf
        %v2428 = vsel %vm607, %v911, -inf
        %v2429 = vmax.f32 %v2427, %v2428
        %v2430 = vrot.slane %v2429, 4
        %v2431 = vmax.f32 %v2429, %v2430
        %v2432 = vrot.slane %v2431, 2
        %v2433 = vmax.f32 %v2431, %v2432
        %v2434 = vrot.slane %v2433, 1
        %v2435 = vmax.f32 %v2433, %v2434
        %v2437 = vsel %vm607, %v2435, 0
        %2439 = vmatprep.subr.mxu0 0.0
        %2440 = vmatpush1.msra.mxu0 %v1999
        %2441 = vmatprep.subr.mxu0 0.0
        %2442 = vmatpush1.msra.mxu0 %v2000
        %2443 = vmatprep.subr.mxu0 0.0
        %2444 = vmatpush1.msra.mxu0 %v2001
        %2445 = vmatprep.subr.mxu0 0.0
        %2446 = vmatpush1.msra.mxu0 %v2002
        %2447 = vmatprep.subr.mxu0 0.0
        %2448 = vmatpush1.msra.mxu0 0.0
        %2449 = vmatprep.subr.mxu0 0.0
        %2450 = vmatpush1.msra.mxu0 0.0
        %2451 = vmatprep.subr.mxu0 0.0
        %2452 = vmatpush1.msra.mxu0 0.0
        %2453 = vmatprep.subr.mxu0 0.0
        %2454 = vmatpush1.msra.mxu0 0.0
        %2455 = vmatprep.subr.mxu0 0.0
        %2456 = vmatpush1.msra.mxu0 0.0
        %2457 = vmatprep.subr.mxu0 0.0
        %2458 = vmatpush1.msra.mxu0 0.0
        %2459 = vmatprep.subr.mxu0 0.0
        %2460 = vmatpush1.msra.mxu0 0.0
        %2461 = vmatprep.subr.mxu0 0.0
        %2462 = vmatpush1.msra.mxu0 0.0
        %2463 = vmatprep.subr.mxu0 0.0
        %2464 = vmatpush1.msra.mxu0 0.0
        %2465 = vmatprep.subr.mxu0 0.0
        %2466 = vmatpush1.msra.mxu0 0.0
        %2467 = vmatprep.subr.mxu0 0.0
        %2468 = vmatpush1.msra.mxu0 0.0
        %2469 = vmatprep.subr.mxu0 0.0
        %2470 = vmatpush1.msra.mxu0 0.0
        %2471 = vmatprep.subr.mxu0 0.0
        %2472 = vmatpush1.msra.mxu0 0.0
        %2473 = vmatprep.subr.mxu0 0.0
        %2474 = vmatpush1.msra.mxu0 0.0
        %2475 = vmatprep.subr.mxu0 0.0
        %2476 = vmatpush1.msra.mxu0 0.0
        %2477 = vmatprep.subr.mxu0 0.0
        %2478 = vmatpush1.msra.mxu0 0.0
        %2479 = vmatprep.subr.mxu0 0.0
        %2480 = vmatpush1.msra.mxu0 0.0
        %2481 = vmatprep.subr.mxu0 0.0
        %2482 = vmatpush1.msra.mxu0 0.0
        %2483 = vmatprep.subr.mxu0 0.0
        %2484 = vmatpush1.msra.mxu0 0.0
        %2485 = vmatprep.subr.mxu0 0.0
        %2486 = vmatpush1.msra.mxu0 0.0
        %2487 = vmatprep.subr.mxu0 0.0
        %2488 = vmatpush1.msra.mxu0 0.0
        %2489 = vmatprep.subr.mxu0 0.0
        %2490 = vmatpush1.msra.mxu0 0.0
        %2491 = vmatprep.subr.mxu0 0.0
        %2492 = vmatpush1.msra.mxu0 0.0
        %2493 = vmatprep.subr.mxu0 0.0
        %2494 = vmatpush1.msra.mxu0 0.0
        %2495 = vmatprep.subr.mxu0 0.0
        %2496 = vmatpush1.msra.mxu0 0.0
        %2497 = vmatprep.subr.mxu0 0.0
        %2498 = vmatpush1.msra.mxu0 0.0
        %2499 = vmatprep.subr.mxu0 0.0
        %2500 = vmatpush1.msra.mxu0 0.0
        %2501 = vmatprep.subr.mxu0 0.0
        %2502 = vmatpush1.msra.mxu0 0.0
        %2503 = vmatprep.mubr.f32.mxu0 0.0
        %2504 = vmatmul.mubr.f32.gmra.mrb[0].mxu0 %v2437
        %v2505 = vpop.f32.mrb[0].mxu0
        %v2506 = vadd.f32 0.0, %v2505
        %v2507 = vpop.f32.mrb[0].mxu0
        %2508 = vdwg.mxu0
        %v2509 = vadd.f32 %v2426, %v2506
        %v2510 = vsel %vm607, %v1103, -inf
        %v2511 = vsel %vm607, %v1108, -inf
        %v2512 = vmax.f32 %v2510, %v2511
        %v2513 = vrot.slane %v2512, 4
        %v2514 = vmax.f32 %v2512, %v2513
        %v2515 = vrot.slane %v2514, 2
        %v2516 = vmax.f32 %v2514, %v2515
        %v2517 = vrot.slane %v2516, 1
        %v2518 = vmax.f32 %v2516, %v2517
        %v2520 = vsel %vm607, %v2518, 0
        %2522 = vmatprep.subr.mxu0 0.0
        %2523 = vmatpush1.msra.mxu0 %v2003
        %2524 = vmatprep.subr.mxu0 0.0
        %2525 = vmatpush1.msra.mxu0 %v2004
        %2526 = vmatprep.subr.mxu0 0.0
        %2527 = vmatpush1.msra.mxu0 %v2005
        %2528 = vmatprep.subr.mxu0 0.0
        %2529 = vmatpush1.msra.mxu0 %v2006
        %2530 = vmatprep.subr.mxu0 0.0
        %2531 = vmatpush1.msra.mxu0 0.0
        %2532 = vmatprep.subr.mxu0 0.0
        %2533 = vmatpush1.msra.mxu0 0.0
        %2534 = vmatprep.subr.mxu0 0.0
        %2535 = vmatpush1.msra.mxu0 0.0
        %2536 = vmatprep.subr.mxu0 0.0
        %2537 = vmatpush1.msra.mxu0 0.0
        %2538 = vmatprep.subr.mxu0 0.0
        %2539 = vmatpush1.msra.mxu0 0.0
        %2540 = vmatprep.subr.mxu0 0.0
        %2541 = vmatpush1.msra.mxu0 0.0
        %2542 = vmatprep.subr.mxu0 0.0
        %2543 = vmatpush1.msra.mxu0 0.0
        %2544 = vmatprep.subr.mxu0 0.0
        %2545 = vmatpush1.msra.mxu0 0.0
        %2546 = vmatprep.subr.mxu0 0.0
        %2547 = vmatpush1.msra.mxu0 0.0
        %2548 = vmatprep.subr.mxu0 0.0
        %2549 = vmatpush1.msra.mxu0 0.0
        %2550 = vmatprep.subr.mxu0 0.0
        %2551 = vmatpush1.msra.mxu0 0.0
        %2552 = vmatprep.subr.mxu0 0.0
        %2553 = vmatpush1.msra.mxu0 0.0
        %2554 = vmatprep.subr.mxu0 0.0
        %2555 = vmatpush1.msra.mxu0 0.0
        %2556 = vmatprep.subr.mxu0 0.0
        %2557 = vmatpush1.msra.mxu0 0.0
        %2558 = vmatprep.subr.mxu0 0.0
        %2559 = vmatpush1.msra.mxu0 0.0
        %2560 = vmatprep.subr.mxu0 0.0
        %2561 = vmatpush1.msra.mxu0 0.0
        %2562 = vmatprep.subr.mxu0 0.0
        %2563 = vmatpush1.msra.mxu0 0.0
        %2564 = vmatprep.subr.mxu0 0.0
        %2565 = vmatpush1.msra.mxu0 0.0
        %2566 = vmatprep.subr.mxu0 0.0
        %2567 = vmatpush1.msra.mxu0 0.0
        %2568 = vmatprep.subr.mxu0 0.0
        %2569 = vmatpush1.msra.mxu0 0.0
        %2570 = vmatprep.subr.mxu0 0.0
        %2571 = vmatpush1.msra.mxu0 0.0
        %2572 = vmatprep.subr.mxu0 0.0
        %2573 = vmatpush1.msra.mxu0 0.0
        %2574 = vmatprep.subr.mxu0 0.0
        %2575 = vmatpush1.msra.mxu0 0.0
        %2576 = vmatprep.subr.mxu0 0.0
        %2577 = vmatpush1.msra.mxu0 0.0
        %2578 = vmatprep.subr.mxu0 0.0
        %2579 = vmatpush1.msra.mxu0 0.0
        %2580 = vmatprep.subr.mxu0 0.0
        %2581 = vmatpush1.msra.mxu0 0.0
        %2582 = vmatprep.subr.mxu0 0.0
        %2583 = vmatpush1.msra.mxu0 0.0
        %2584 = vmatprep.subr.mxu0 0.0
        %2585 = vmatpush1.msra.mxu0 0.0
        %2586 = vmatprep.mubr.f32.mxu0 0.0
        %2587 = vmatmul.mubr.f32.gmra.mrb[0].mxu0 %v2520
        %v2588 = vpop.f32.mrb[0].mxu0
        %v2589 = vadd.f32 0.0, %v2588
        %v2590 = vpop.f32.mrb[0].mxu0
        %2591 = vdwg.mxu0
        %v2592 = vadd.f32 %v2509, %v2589
        %v2593 = vsel %vm607, %v1300, -inf
        %v2594 = vsel %vm607, %v1305, -inf
        %v2595 = vmax.f32 %v2593, %v2594
        %v2596 = vrot.slane %v2595, 4
        %v2597 = vmax.f32 %v2595, %v2596
        %v2598 = vrot.slane %v2597, 2
        %v2599 = vmax.f32 %v2597, %v2598
        %v2600 = vrot.slane %v2599, 1
        %v2601 = vmax.f32 %v2599, %v2600
        %v2603 = vsel %vm607, %v2601, 0
        %2605 = vmatprep.subr.mxu0 0.0
        %2606 = vmatpush1.msra.mxu0 %v2007
        %2607 = vmatprep.subr.mxu0 0.0
        %2608 = vmatpush1.msra.mxu0 %v2008
        %2609 = vmatprep.subr.mxu0 0.0
        %2610 = vmatpush1.msra.mxu0 %v2009
        %2611 = vmatprep.subr.mxu0 0.0
        %2612 = vmatpush1.msra.mxu0 %v2010
        %2613 = vmatprep.subr.mxu0 0.0
        %2614 = vmatpush1.msra.mxu0 0.0
        %2615 = vmatprep.subr.mxu0 0.0
        %2616 = vmatpush1.msra.mxu0 0.0
        %2617 = vmatprep.subr.mxu0 0.0
        %2618 = vmatpush1.msra.mxu0 0.0
        %2619 = vmatprep.subr.mxu0 0.0
        %2620 = vmatpush1.msra.mxu0 0.0
        %2621 = vmatprep.subr.mxu0 0.0
        %2622 = vmatpush1.msra.mxu0 0.0
        %2623 = vmatprep.subr.mxu0 0.0
        %2624 = vmatpush1.msra.mxu0 0.0
        %2625 = vmatprep.subr.mxu0 0.0
        %2626 = vmatpush1.msra.mxu0 0.0
        %2627 = vmatprep.subr.mxu0 0.0
        %2628 = vmatpush1.msra.mxu0 0.0
        %2629 = vmatprep.subr.mxu0 0.0
        %2630 = vmatpush1.msra.mxu0 0.0
        %2631 = vmatprep.subr.mxu0 0.0
        %2632 = vmatpush1.msra.mxu0 0.0
        %2633 = vmatprep.subr.mxu0 0.0
        %2634 = vmatpush1.msra.mxu0 0.0
        %2635 = vmatprep.subr.mxu0 0.0
        %2636 = vmatpush1.msra.mxu0 0.0
        %2637 = vmatprep.subr.mxu0 0.0
        %2638 = vmatpush1.msra.mxu0 0.0
        %2639 = vmatprep.subr.mxu0 0.0
        %2640 = vmatpush1.msra.mxu0 0.0
        %2641 = vmatprep.subr.mxu0 0.0
        %2642 = vmatpush1.msra.mxu0 0.0
        %2643 = vmatprep.subr.mxu0 0.0
        %2644 = vmatpush1.msra.mxu0 0.0
        %2645 = vmatprep.subr.mxu0 0.0
        %2646 = vmatpush1.msra.mxu0 0.0
        %2647 = vmatprep.subr.mxu0 0.0
        %2648 = vmatpush1.msra.mxu0 0.0
        %2649 = vmatprep.subr.mxu0 0.0
        %2650 = vmatpush1.msra.mxu0 0.0
        %2651 = vmatprep.subr.mxu0 0.0
        %2652 = vmatpush1.msra.mxu0 0.0
        %2653 = vmatprep.subr.mxu0 0.0
        %2654 = vmatpush1.msra.mxu0 0.0
        %2655 = vmatprep.subr.mxu0 0.0
        %2656 = vmatpush1.msra.mxu0 0.0
        %2657 = vmatprep.subr.mxu0 0.0
        %2658 = vmatpush1.msra.mxu0 0.0
        %2659 = vmatprep.subr.mxu0 0.0
        %2660 = vmatpush1.msra.mxu0 0.0
        %2661 = vmatprep.subr.mxu0 0.0
        %2662 = vmatpush1.msra.mxu0 0.0
        %2663 = vmatprep.subr.mxu0 0.0
        %2664 = vmatpush1.msra.mxu0 0.0
        %2665 = vmatprep.subr.mxu0 0.0
        %2666 = vmatpush1.msra.mxu0 0.0
        %2667 = vmatprep.subr.mxu0 0.0
        %2668 = vmatpush1.msra.mxu0 0.0
        %2669 = vmatprep.mubr.f32.mxu0 0.0
        %2670 = vmatmul.mubr.f32.gmra.mrb[0].mxu0 %v2603
        %v2671 = vpop.f32.mrb[0].mxu0
        %v2672 = vadd.f32 0.0, %v2671
        %v2673 = vpop.f32.mrb[0].mxu0
        %2674 = vdwg.mxu0
        %v2675 = vadd.f32 %v2592, %v2672
        %v2676 = vmax.f32 %v2675, 0.0
        %v2677 = vld [vmem:[%s13] sm:$0xff]
        %v2678 = vld [vmem:[%s13 + $0x8] sm:$0xff]
        %v2679 = vld [vmem:[%s13 + $0x10] sm:$0xff]
        %v2680 = vld [vmem:[%s13 + $0x18] sm:$0xff]
        %v2681 = vld [vmem:[%s13 + $0x20] sm:$0xff]
        %v2682 = vld [vmem:[%s13 + $0x28] sm:$0xff]
        %v2683 = vld [vmem:[%s13 + $0x30] sm:$0xff]
        %v2684 = vld [vmem:[%s13 + $0x38] sm:$0xff]
        %v2685 = vld [vmem:[#allocation2] sm:$0x1]
        %vm2686 = vcmask 523264
        %v2688 = vsel %vm2686, %v2676, 0
        %2690 = vmatprep.subr.mxu0 0.0
        %2691 = vmatpush1.msra.mxu0 %v2677
        %2692 = vmatprep.subr.mxu0 0.0
        %2693 = vmatpush1.msra.mxu0 %v2678
        %2694 = vmatprep.subr.mxu0 0.0
        %2695 = vmatpush1.msra.mxu0 %v2679
        %2696 = vmatprep.subr.mxu0 0.0
        %2697 = vmatpush1.msra.mxu0 %v2680
        %2698 = vmatprep.subr.mxu0 0.0
        %2699 = vmatpush1.msra.mxu0 %v2681
        %2700 = vmatprep.subr.mxu0 0.0
        %2701 = vmatpush1.msra.mxu0 %v2682
        %2702 = vmatprep.subr.mxu0 0.0
        %2703 = vmatpush1.msra.mxu0 %v2683
        %2704 = vmatprep.subr.mxu0 0.0
        %2705 = vmatpush1.msra.mxu0 %v2684
        %2706 = vmatprep.subr.mxu0 0.0
        %2707 = vmatpush1.msra.mxu0 0.0
        %2708 = vmatprep.subr.mxu0 0.0
        %2709 = vmatpush1.msra.mxu0 0.0
        %2710 = vmatprep.subr.mxu0 0.0
        %2711 = vmatpush1.msra.mxu0 0.0
        %2712 = vmatprep.subr.mxu0 0.0
        %2713 = vmatpush1.msra.mxu0 0.0
        %2714 = vmatprep.subr.mxu0 0.0
        %2715 = vmatpush1.msra.mxu0 0.0
        %2716 = vmatprep.subr.mxu0 0.0
        %2717 = vmatpush1.msra.mxu0 0.0
        %2718 = vmatprep.subr.mxu0 0.0
        %2719 = vmatpush1.msra.mxu0 0.0
        %2720 = vmatprep.subr.mxu0 0.0
        %2721 = vmatpush1.msra.mxu0 0.0
        %2722 = vmatprep.subr.mxu0 0.0
        %2723 = vmatpush1.msra.mxu0 0.0
        %2724 = vmatprep.subr.mxu0 0.0
        %2725 = vmatpush1.msra.mxu0 0.0
        %2726 = vmatprep.subr.mxu0 0.0
        %2727 = vmatpush1.msra.mxu0 0.0
        %2728 = vmatprep.subr.mxu0 0.0
        %2729 = vmatpush1.msra.mxu0 0.0
        %2730 = vmatprep.subr.mxu0 0.0
        %2731 = vmatpush1.msra.mxu0 0.0
        %2732 = vmatprep.subr.mxu0 0.0
        %2733 = vmatpush1.msra.mxu0 0.0
        %2734 = vmatprep.subr.mxu0 0.0
        %2735 = vmatpush1.msra.mxu0 0.0
        %2736 = vmatprep.subr.mxu0 0.0
        %2737 = vmatpush1.msra.mxu0 0.0
        %2738 = vmatprep.subr.mxu0 0.0
        %2739 = vmatpush1.msra.mxu0 0.0
        %2740 = vmatprep.subr.mxu0 0.0
        %2741 = vmatpush1.msra.mxu0 0.0
        %2742 = vmatprep.subr.mxu0 0.0
        %2743 = vmatpush1.msra.mxu0 0.0
        %2744 = vmatprep.subr.mxu0 0.0
        %2745 = vmatpush1.msra.mxu0 0.0
        %2746 = vmatprep.subr.mxu0 0.0
        %2747 = vmatpush1.msra.mxu0 0.0
        %2748 = vmatprep.subr.mxu0 0.0
        %2749 = vmatpush1.msra.mxu0 0.0
        %2750 = vmatprep.subr.mxu0 0.0
        %2751 = vmatpush1.msra.mxu0 0.0
        %2752 = vmatprep.subr.mxu0 0.0
        %2753 = vmatpush1.msra.mxu0 0.0
        %2754 = vmatprep.mubr.f32.mxu0 0.0
        %2755 = vmatmul.mubr.f32.gmra.mrb[0].mxu0 %v2688
        %v2756 = vpop.f32.mrb[0].mxu0
        %v2757 = vadd.f32 %v2685, %v2756
        %v2758 = vpop.f32.mrb[0].mxu0
        %2759 = vdwg.mxu0
        %v2760 = vxor.u32 %v2757, 2147483648
        %v2761 = vmul.f32 %v2760, 1.442695
        %v2762 = vpow.pop %v2761
        %v2763 = vadd.f32 %v2762, 1.0
        %v2764 = vrcp.pop %v2763
        %v2765 = vmul.f32 1.0, %v2764
        %vm2766 = vcmask 0
        %2767 = vst.msk [vmem:[%s587] sm:$0x1] %vm2766, %v2765
        %p2768 = scmp.lt.s32.totalorder %s37, 1
        %s2769 = scalar_select %p2768, %s37, 1
        %s2770 = scalar_lea.vmem %s15, %s2769
        %s2771 = sand.u32 %s396, 1
        %s2772 = scalar_lea.sflag [#allocation4], %s2771
        %s2773 = sand.u32 %s396, 1
        %s2774 = smul.addr %s2773, 16
        %s2775 = scalar_lea.vmem [#allocation3], %s2774
        %s2776 = sand.u32 %s422, 1
        %s2777 = scalar_lea.sflag [#allocation6], %s2776
        %s2778 = sand.u32 %s422, 1
        %s2779 = smul.addr %s2778, 16
        %s2780 = scalar_lea.vmem [#allocation5], %s2779
        // Predicated region
        $region81: #{tpu_custom_call.1} parent=79 // pred_check
          %p2781 = pneg %p380
        $region82: #{tpu_custom_call.1} parent=79 // pred_check_branch
          %2783 = sbr.rel (%p2781) target = $region84
        $region83: #{tpu_custom_call.1} parent=79 // pred_region
          _
        $region84: #{tpu_custom_call.1} parent=79 // pred_fallthru
          _
        // Predicated region
        $region85: #{tpu_custom_call.1} parent=79 // pred_check
          %p2784 = pneg %p406
        $region86: #{tpu_custom_call.1} parent=79 // pred_check_branch
          %2786 = sbr.rel (%p2784) target = $region88
        $region87: #{tpu_custom_call.1} parent=79 // pred_region
          %s2788 = ssub.s32 256, 256
          %2789 = vsyncadd %s2772, %s2788
          %s2790 = smul.addr %s37, 2
          %s2791 = smul.addr %s2790, 128
          %s2792 = scalar_lea.hbm %s16, %s2791
          %s2793 = sshll.u32 %s2775, 4
          %s2794 = int_to_ptr.vmem [resolvable:$true] %s2793
          %2799 = dma.vmem_to_hbm [thread:$0]  %s2794, 256, %s2792, %s2772, 128, 128, 8
        $region88: #{tpu_custom_call.1} parent=79 // pred_fallthru
          _
        // Predicated region
        $region89: #{tpu_custom_call.1} parent=79 // pred_check
          %p2800 = pneg %p432
        $region90: #{tpu_custom_call.1} parent=79 // pred_check_branch
          %2802 = sbr.rel (%p2800) target = $region92
        $region91: #{tpu_custom_call.1} parent=79 // pred_region
          %s2804 = ssub.s32 256, 256
          %2805 = vsyncadd %s2777, %s2804
          %s2806 = smul.addr %s37, 2
          %s2807 = smul.addr %s2806, 128
          %s2808 = scalar_lea.hbm %s17, %s2807
          %s2809 = sshll.u32 %s2780, 4
          %s2810 = int_to_ptr.vmem [resolvable:$true] %s2809
          %2815 = dma.vmem_to_hbm [thread:$0]  %s2810, 256, %s2808, %s2777, 128, 128, 8
        $region92: #{tpu_custom_call.1} parent=79 // pred_fallthru
          _
      $region80: #{tpu_custom_call.1} parent=5 // pred_fallthru
        _
      %p2816 = scmp.le.s32.totalorder 2, %s32
      // Predicated region
      $region93: #{tpu_custom_call.1} parent=5 // pred_check
        %p2817 = pneg %p2816
      $region94: #{tpu_custom_call.1} parent=5 // pred_check_branch
        %2819 = sbr.rel (%p2817) target = $region96
      $region95: #{tpu_custom_call.1} parent=5 // pred_region
        %s2820 = ssub.s32 %s32, 2
        // Predicated region
        $region97: #{tpu_custom_call.1} parent=95 // pred_check
          %p2821 = pneg %p386
        $region98: #{tpu_custom_call.1} parent=95 // pred_check_branch
          %2823 = sbr.rel (%p2821) target = $region100
        $region99: #{tpu_custom_call.1} parent=95 // pred_region
          %p2824 = scmp.lt.s32.totalorder %s38, 1
          %s2825 = scalar_select %p2824, %s38, 1
          %s2826 = scalar_lea.vmem %s15, %s2825
        $region100: #{tpu_custom_call.1} parent=95 // pred_fallthru
          _
        // Predicated region
        $region101: #{tpu_custom_call.1} parent=95 // pred_check
          %p2827 = pneg %p412
        $region102: #{tpu_custom_call.1} parent=95 // pred_check_branch
          %2829 = sbr.rel (%p2827) target = $region104
        $region103: #{tpu_custom_call.1} parent=95 // pred_region
          %s2830 = sand.u32 %s397, 1
          %s2831 = scalar_lea.sflag [#allocation4], %s2830
          %s2832 = sand.u32 %s397, 1
          %s2833 = smul.addr %s2832, 16
          %s2834 = scalar_lea.vmem [#allocation3], %s2833
          %2835 = dma.done %s2831, 256
        $region104: #{tpu_custom_call.1} parent=95 // pred_fallthru
          _
        // Predicated region
        $region105: #{tpu_custom_call.1} parent=95 // pred_check
          %p2836 = pneg %p438
        $region106: #{tpu_custom_call.1} parent=95 // pred_check_branch
          %2838 = sbr.rel (%p2836) target = $region108
        $region107: #{tpu_custom_call.1} parent=95 // pred_region
          %s2839 = sand.u32 %s423, 1
          %s2840 = scalar_lea.sflag [#allocation6], %s2839
          %s2841 = sand.u32 %s423, 1
          %s2842 = smul.addr %s2841, 16
          %s2843 = scalar_lea.vmem [#allocation5], %s2842
          %2844 = dma.done %s2840, 256
        $region108: #{tpu_custom_call.1} parent=95 // pred_fallthru
          _
      $region96: #{tpu_custom_call.1} parent=5 // pred_fallthru
        _
    $region6: #{tpu_custom_call.1} parent=1 // loop_footer
      %s36 = sadd.s32 1, %s32
    $region7: #{tpu_custom_call.1} parent=1 // loop_footer_branch
      %31 = sbr.rel target = $region3
    $region8: #{tpu_custom_call.1} parent=1 // loop_exit
      _
    %2845 = vsyncpa [#allocation4], 1
    %s2846 = scalar_lea.sflag [#allocation4], 1
    %2847 = vsyncpa %s2846, 1
    %2848 = vsyncpa [#allocation6], 1
    %s2849 = scalar_lea.sflag [#allocation6], 1
    %2850 = vsyncpa %s2849, 1

</llo_original>
